<compile_context>
chip_gen: v7x
topology: tpu7x:2x2x1
jax: 0.10.0
libtpu: 0.0.40
codegen_flags: <defaults>
</compile_context>

<pallas_src>
import functools

import jax
import jax.numpy as jnp
from jax.experimental import pallas as pl
from jax.experimental.pallas import tpu as pltpu


# ---------------------------------------------------------------------------
# Kernel
# ---------------------------------------------------------------------------
def _free_energy_kernel(v_ref, w_ref, hb_ref, out_ref, *, stable_softplus):
    # One MXU pass computes both terms:
    #   z[:, :H] = v @ W        z[:, H] = v @ v_bias
    z = jnp.dot(v_ref[...], w_ref[...],
                preferred_element_type=jnp.float32)          # (tb, H+1) f32
    h = hb_ref.shape[-1]

    wx_b = z[:, :h] + hb_ref[...].astype(jnp.float32)        # (tb, H)
    if stable_softplus:
        sp = jnp.where(wx_b > 0,
                       wx_b + jnp.log1p(jnp.exp(-wx_b)),
                       jnp.log1p(jnp.exp(wx_b)))
    else:
        # Exact torch semantics: log1p(exp(x)) overflows to +inf for x >~ 88,
        # matching torch.log1p(torch.exp(...)) by design.
        sp = jnp.log1p(jnp.exp(wx_b))
    h_term = jnp.sum(sp, axis=1)                              # (tb,)
    vbias_term = jnp.sum(z[:, h:h + 1], axis=1)               # (tb,) == v @ v_bias

    # Lane-dense row store: batch lives on the lane axis of the output block.
    out_ref[...] = (-(vbias_term + h_term))[None, :]          # (1, tb)


# ---------------------------------------------------------------------------
# Per-generation hardware queries (with safe fallbacks)
# ---------------------------------------------------------------------------
def _device_kind():
    try:
        return jax.local_devices()[0].device_kind.lower()
    except Exception:
        return ""


def _tpu_vmem_capacity_bytes():
    try:
        info = pltpu.get_tpu_info()
        cap = int(getattr(info, "vmem_capacity_bytes", 0) or 0)
        if cap > 0:
            return cap
    except Exception:
        pass
    kind = _device_kind()
    if "v7" in kind:
        return 64 << 20
    if any(t in kind for t in ("v5", "v6")):
        return 128 << 20
    return 64 << 20  # conservative default for unknown chips


def _num_tensorcores_per_chip():
    return 2 if "v7" in _device_kind() else 1


# ---------------------------------------------------------------------------
# Tiling / budgeting
# ---------------------------------------------------------------------------
def _select_tile_b(batch, per_row_bytes, budget_bytes, num_cores):
    """Largest lane-friendly (multiple-of-128 or full-B) divisor of `batch`
    whose streamed per-tile footprint fits the VMEM budget.  On multi-TC chips
    prefer the largest candidate that yields an even >=2-step parallel grid."""
    cands = {batch}
    cands.update(d for d in range(128, batch, 128) if batch % d == 0)
    cands = sorted(cands)
    fitting = [c for c in cands if c * per_row_bytes <= budget_bytes]
    if not fitting:
        fitting = [cands[0]]
    if num_cores >= 2:
        even = [c for c in fitting if (batch // c) >= 2 and (batch // c) % 2 == 0]
        if even:
            return max(even)
    return max(fitting)


def _const_spec(block_shape, single_buffer):
    """BlockSpec for a grid-invariant operand; single-buffered when requested."""
    index_map = lambda i: tuple(0 for _ in block_shape)
    if single_buffer and hasattr(pl, "Buffered"):
        try:
            return pl.BlockSpec(block_shape, index_map,
                                pipeline_mode=pl.Buffered(1))
        except TypeError:
            pass
    return pl.BlockSpec(block_shape, index_map)


# ---------------------------------------------------------------------------
# Wrapper
# ---------------------------------------------------------------------------
def rbm_free_energy(v, W, v_bias, h_bias, *, tile_b=None, operand_dtype=None,
                    stable_softplus=False):
    """free_energy(v) = -(v @ v_bias) - sum(log1p(exp(v @ W + h_bias)), axis=1).

    operand_dtype: optional narrow dtype (e.g. jnp.bfloat16) for the MXU
      operands v and W' (HBM-traffic optimization).  NOTE: this also rounds the
      folded v_bias column to operand_dtype; the torch reference computes both
      matmuls in f32, so expect a looser tolerance in that mode.
    """
    B, V = v.shape
    Vw, H = W.shape
    assert V == Vw, (V, Vw)

    if operand_dtype is not None:
        v = v.astype(operand_dtype)
        W = W.astype(operand_dtype)
        vb_col = v_bias.astype(operand_dtype)
    else:
        vb_col = v_bias.astype(W.dtype)

    # Fold v_bias into the weight matrix as one extra column so a single MXU
    # pass produces both the hidden pre-activations and the visible-bias term.
    w_aug = jnp.concatenate([W, vb_col.reshape(V, 1)], axis=1)   # (V, H+1)
    hb2 = h_bias.reshape(1, H)

    itemsize_v = jnp.dtype(v.dtype).itemsize
    itemsize_w = jnp.dtype(w_aug.dtype).itemsize

    # Per-generation VMEM budget.
    phys_vmem = _tpu_vmem_capacity_bytes()
    usable = int(phys_vmem * 0.6)                 # ~0.5-0.75 of physical VMEM

    w_bytes = V * (H + 1) * itemsize_w
    single_buffer_consts = w_bytes > (2 << 20)    # only worth it when W' is big
    w_bufs = 1 if single_buffer_consts else 2

    # Streamed per-batch-row cost: double-buffered v tile + f32 intermediates
    # (z / wx_b / softplus headroom) + double-buffered output row.
    per_row = 2 * V * itemsize_v + 8 * (H + 1) * 4 + 2 * 4
    fixed = w_bufs * w_bytes + 2 * H * 4 + (1 << 20)

    num_cores = _num_tensorcores_per_chip()
    if tile_b is None:
        tile_budget = max(usable - fixed, per_row * min(B, 128))
        tile_b = _select_tile_b(B, per_row, tile_budget, num_cores)
    assert B % tile_b == 0, (B, tile_b)
    num_tiles = B // tile_b

    # VMEM limit from the actual footprint, bounded only by physical VMEM.
    vmem_need = fixed + tile_b * per_row + (2 << 20)
    vmem_limit = int(min(max(vmem_need, 32 << 20), phys_vmem - (4 << 20)))

    cost = pl.CostEstimate(
        flops=2 * B * V * (H + 1),
        transcendentals=2 * B * H,
        bytes_accessed=B * V * itemsize_v + V * (H + 1) * itemsize_w
                       + H * 4 + B * 4,
    )

    kernel = functools.partial(_free_energy_kernel,
                               stable_softplus=stable_softplus)

    out2d = pl.pallas_call(
        kernel,
        out_shape=jax.ShapeDtypeStruct((1, B), jnp.float32),
        grid_spec=pltpu.PrefetchScalarGridSpec(
            num_scalar_prefetch=0,
            grid=(num_tiles,),
            in_specs=[
                pl.BlockSpec((tile_b, V), lambda i: (i, 0)),      # v (streamed)
                _const_spec((V, H + 1), single_buffer_consts),    # W' = [W|v_bias]
                _const_spec((1, H), single_buffer_consts),        # h_bias
            ],
            out_specs=pl.BlockSpec((1, tile_b), lambda i: (0, i)),  # lane-dense
        ),
        compiler_params=pltpu.CompilerParams(
            dimension_semantics=("parallel",),
            vmem_limit_bytes=vmem_limit,
        ),
        cost_estimate=cost,
    )(v, w_aug, hb2)

    return out2d.reshape(B)


def rbm_free_energy_ref(v, W, v_bias, h_bias):
    wx_b = v @ W + h_bias
    h_term = jnp.sum(jnp.log1p(jnp.exp(wx_b)), axis=1)
    vbias_term = v @ v_bias
    return -vbias_term - h_term


# ---------------------------------------------------------------------------
# Self-test
# ---------------------------------------------------------------------------
if __name__ == "__main__":
    # Shapes consistent with the module (visible_dim=512, hidden_dim=32).
    B, V, H = 256, 512, 32

    key = jax.random.PRNGKey(0)
    k_w, k_vb, k_hb, k_v = jax.random.split(key, 4)

    W = jax.random.normal(k_w, (V, H), dtype=jnp.float32) * 0.01
    v_bias = jax.random.normal(k_vb, (V,), dtype=jnp.float32) * 0.01
    h_bias = jax.random.normal(k_hb, (H,), dtype=jnp.float32) * 0.01
    v = jax.random.uniform(k_v, (B, V), dtype=jnp.float32)

    ref = rbm_free_energy_ref(v, W, v_bias, h_bias)

    # Default path: f32 operands, exact torch semantics.
    out = jax.block_until_ready(rbm_free_energy(v, W, v_bias, h_bias))
    assert out.shape == (B,), out.shape
    assert jnp.allclose(out, ref, rtol=1e-4, atol=1e-4), (
        float(jnp.max(jnp.abs(out - ref))))

    # bf16 operand path (halves HBM bytes on the dominant v stream); softplus /
    # reduction stay f32, so only matmul-operand rounding differs.
    out_bf16 = jax.block_until_ready(
        rbm_free_energy(v, W, v_bias, h_bias, operand_dtype=jnp.bfloat16))
    assert jnp.allclose(out_bf16, ref, rtol=5e-2, atol=5e-2), (
        float(jnp.max(jnp.abs(out_bf16 - ref))))

    print("KERNEL_OK")
</pallas_src>

<mosaic_0001>
module attributes {stable_mosaic.version = 11 : i64} {
  func.func @_free_energy_kernel(%arg0: i32, %arg1: memref<256x512xf32, #tpu.memory_space<vmem>>, %arg2: memref<512x33xf32, #tpu.memory_space<vmem>>, %arg3: memref<1x32xf32, #tpu.memory_space<vmem>>, %arg4: memref<1x256xf32, #tpu.memory_space<vmem>>) attributes {dimension_semantics = [#tpu.dimension_semantics<parallel>], iteration_bounds = array<i64: 1>, scalar_prefetch = 0 : i64, scratch_operands = 0 : i64, tpu.core_type = #tpu.core_type<tc>, window_params = [{transform_indices = @transform_0, window_bounds = array<i64: 256, 512>}, {pipeline_mode = #tpu.pipeline_mode<synchronous>, transform_indices = @transform_1, window_bounds = array<i64: 512, 33>}, {pipeline_mode = #tpu.pipeline_mode<synchronous>, transform_indices = @transform_2, window_bounds = array<i64: 1, 32>}, {transform_indices = @transform_3, window_bounds = array<i64: 1, 256>}]} {
    %c0 = arith.constant 0 : index
    %c0_0 = arith.constant 0 : index
    %0 = vector.load %arg1[%c0, %c0_0] : memref<256x512xf32, #tpu.memory_space<vmem>>, vector<256x512xf32>
    %c0_1 = arith.constant 0 : index
    %c0_2 = arith.constant 0 : index
    %1 = vector.load %arg2[%c0_1, %c0_2] : memref<512x33xf32, #tpu.memory_space<vmem>>, vector<512x33xf32>
    %cst = arith.constant dense<0.000000e+00> : vector<256x33xf32>
    %2 = tpu.matmul %0, %1, %cst {dimension_numbers = #tpu.dot_dimension_numbers<[1], [0], [0], [1], [0, 0, 1, 1], [], []>} : vector<256x512xf32>, vector<512x33xf32>, vector<256x33xf32> -> vector<256x33xf32>
    %3 = vector.extract_strided_slice %2 {offsets = [0, 0], sizes = [256, 32], strides = [1, 1]} : vector<256x33xf32> to vector<256x32xf32>
    %c0_3 = arith.constant 0 : index
    %c0_4 = arith.constant 0 : index
    %4 = vector.load %arg3[%c0_3, %c0_4] : memref<1x32xf32, #tpu.memory_space<vmem>>, vector<1x32xf32>
    %5 = vector.broadcast %4 : vector<1x32xf32> to vector<256x32xf32>
    %6 = arith.addf %3, %5 : vector<256x32xf32>
    %7 = math.exp %6 : vector<256x32xf32>
    %8 = math.log1p %7 : vector<256x32xf32>
    %cst_5 = arith.constant dense<0.000000e+00> : vector<256xf32>
    %9 = vector.multi_reduction <add>, %8, %cst_5 [1] : vector<256x32xf32> to vector<256xf32>
    %10 = vector.extract_strided_slice %2 {offsets = [0, 32], sizes = [256, 1], strides = [1, 1]} : vector<256x33xf32> to vector<256x1xf32>
    %cst_6 = arith.constant dense<0.000000e+00> : vector<256xf32>
    %11 = vector.multi_reduction <add>, %10, %cst_6 [1] : vector<256x1xf32> to vector<256xf32>
    %12 = arith.addf %11, %9 : vector<256xf32>
    %cst_7 = arith.constant 0.000000e+00 : f32
    %13 = vector.broadcast %cst_7 : f32 to vector<256xf32>
    %14 = arith.subf %13, %12 : vector<256xf32>
    %15 = vector.shape_cast %14 : vector<256xf32> to vector<1x256xf32>
    %c0_8 = arith.constant 0 : index
    %c0_9 = arith.constant 0 : index
    %16 = vector.load %arg4[%c0_8, %c0_9] : memref<1x256xf32, #tpu.memory_space<vmem>>, vector<1x256xf32>
    tpu.vector_store %arg4[%c0_8, %c0_9], %15 {strides = array<i32>} : memref<1x256xf32, #tpu.memory_space<vmem>>, vector<1x256xf32>,
    return
  }
  func.func @transform_0(%arg0: i32) -> (i32, i32) {
    %c0_i32 = arith.constant 0 : i32
    %c0_i32_0 = arith.constant 0 : i32
    return %arg0, %c0_i32 : i32, i32
  }
  func.func @transform_1(%arg0: i32) -> (i32, i32) {
    %c0_i32 = arith.constant 0 : i32
    %c0_i32_0 = arith.constant 0 : i32
    %c0_i32_1 = arith.constant 0 : i32
    return %c0_i32, %c0_i32_0 : i32, i32
  }
  func.func @transform_2(%arg0: i32) -> (i32, i32) {
    %c0_i32 = arith.constant 0 : i32
    %c0_i32_0 = arith.constant 0 : i32
    %c0_i32_1 = arith.constant 0 : i32
    return %c0_i32, %c0_i32_0 : i32, i32
  }
  func.func @transform_3(%arg0: i32) -> (i32, i32) {
    %c0_i32 = arith.constant 0 : i32
    %c0_i32_0 = arith.constant 0 : i32
    return %c0_i32, %arg0 : i32, i32
  }
}

</mosaic_0001>

<llo_original>
// kernel: tpu_custom_call.1
$region0: #{tpu_custom_call.1}
  #allocation0 [shape = 'u32[]', space=smem, size = 0x4, offset = 0x4, fixed_abs, tag = 'smem constant byte address 0x4 - core index']
  #allocation1 [shape = 'u32[144,128]{1,0:T(1,128)}', space=vmem, size = 0x12000, scoped, tag = 'internal scratch']
  %s0 = inlined_call_operand.hbm [shape: f32[256,512], index: 0, kind: input, shape index: {}]
  %s1 = inlined_call_operand.vmem [shape: f32[512,33], index: 1, kind: input, shape index: {}]
  %s2 = inlined_call_operand.vmem [shape: f32[1,32], index: 2, kind: input, shape index: {}]
  %s3 = inlined_call_operand.hbm [shape: f32[1,256], index: 3, kind: output, shape index: {}]
  %s4 = sld [smem:[#allocation0]]
  $region26: #{tpu_custom_call.1} parent=0
    _
  %s6 = ssub.s32 1, %s4
  %s7 = scalar_select 0, %s6, %s4
  $region1: #{tpu_custom_call.1} parent=0
    #allocation2 [shape = 'u8[524288]{0}', space=vmem, size = 0x80000, scoped, tag = 'input window, operand 0, single buffered']
    #allocation3 [shape = 's32[1]{0}', space=sflag, size = 0x4, scoped, tag = 'scoped memory for tpu_custom_call.1']
    #allocation4 [shape = 's32[1]{0}', space=sflag, size = 0x4, scoped, tag = 'scoped memory for tpu_custom_call.1']
    #allocation5 [shape = 'u8[1024]{0}', space=vmem, size = 0x400, scoped, tag = 'output window, operand 0, single buffered']
    %8 = vsyncpa [#allocation3], 0
    %9 = vsyncpa [#allocation4], 0
    // Predicated region
    $region2: #{tpu_custom_call.1} parent=1 // pred_check
      _
    $region3: #{tpu_custom_call.1} parent=1 // pred_check_branch
      %11 = sbr.rel (0) target = $region5
    $region4: #{tpu_custom_call.1} parent=1 // pred_region
      %s13 = ssub.s32 16384, 16384
      %14 = vsyncadd [#allocation3], %s13
      %s15 = sshll.u32 [#allocation2], 4
      %s16 = int_to_ptr.vmem [resolvable:$true] %s15
      %21 = dma.hbm_to_vmem [thread:$0]  %s0, 16384, %s16, [#allocation3], 512, 512, 32
    $region5: #{tpu_custom_call.1} parent=1 // pred_fallthru
      _
    // Predicated region
    $region6: #{tpu_custom_call.1} parent=1 // pred_check
      _
    $region7: #{tpu_custom_call.1} parent=1 // pred_check_branch
      %23 = sbr.rel (0) target = $region9
    $region8: #{tpu_custom_call.1} parent=1 // pred_region
      _
    $region9: #{tpu_custom_call.1} parent=1 // pred_fallthru
      _
    // Predicated region
    $region10: #{tpu_custom_call.1} parent=1 // pred_check
      _
    $region11: #{tpu_custom_call.1} parent=1 // pred_check_branch
      %25 = sbr.rel (0) target = $region13
    $region12: #{tpu_custom_call.1} parent=1 // pred_region
      _
    $region13: #{tpu_custom_call.1} parent=1 // pred_fallthru
      _
    // Predicated region
    $region14: #{tpu_custom_call.1} parent=1 // pred_check
      _
    $region15: #{tpu_custom_call.1} parent=1 // pred_check_branch
      %27 = sbr.rel (0) target = $region17
    $region16: #{tpu_custom_call.1} parent=1 // pred_region
      %28 = dma.done [#allocation3], 16384
    $region17: #{tpu_custom_call.1} parent=1 // pred_fallthru
      _
    %v29 = vld [vmem:[#allocation2] sm:$0xff]
    %v30 = vld [vmem:[#allocation2 + $0x8] sm:$0xff]
    %v31 = vld [vmem:[#allocation2 + $0x10] sm:$0xff]
    %v32 = vld [vmem:[#allocation2 + $0x18] sm:$0xff]
    %v33 = vld [vmem:[#allocation2 + $0x20] sm:$0xff]
    %v34 = vld [vmem:[#allocation2 + $0x28] sm:$0xff]
    %v35 = vld [vmem:[#allocation2 + $0x30] sm:$0xff]
    %v36 = vld [vmem:[#allocation2 + $0x38] sm:$0xff]
    %v37 = vld [vmem:[#allocation2 + $0x40] sm:$0xff]
    %v38 = vld [vmem:[#allocation2 + $0x48] sm:$0xff]
    %v39 = vld [vmem:[#allocation2 + $0x50] sm:$0xff]
    %v40 = vld [vmem:[#allocation2 + $0x58] sm:$0xff]
    %v41 = vld [vmem:[#allocation2 + $0x60] sm:$0xff]
    %v42 = vld [vmem:[#allocation2 + $0x68] sm:$0xff]
    %v43 = vld [vmem:[#allocation2 + $0x70] sm:$0xff]
    %v44 = vld [vmem:[#allocation2 + $0x78] sm:$0xff]
    %v45 = vld [vmem:[#allocation2 + $0x80] sm:$0xff]
    %v46 = vld [vmem:[#allocation2 + $0x88] sm:$0xff]
    %v47 = vld [vmem:[#allocation2 + $0x90] sm:$0xff]
    %v48 = vld [vmem:[#allocation2 + $0x98] sm:$0xff]
    %v49 = vld [vmem:[#allocation2 + $0xa0] sm:$0xff]
    %v50 = vld [vmem:[#allocation2 + $0xa8] sm:$0xff]
    %v51 = vld [vmem:[#allocation2 + $0xb0] sm:$0xff]
    %v52 = vld [vmem:[#allocation2 + $0xb8] sm:$0xff]
    %v53 = vld [vmem:[#allocation2 + $0xc0] sm:$0xff]
    %v54 = vld [vmem:[#allocation2 + $0xc8] sm:$0xff]
    %v55 = vld [vmem:[#allocation2 + $0xd0] sm:$0xff]
    %v56 = vld [vmem:[#allocation2 + $0xd8] sm:$0xff]
    %v57 = vld [vmem:[#allocation2 + $0xe0] sm:$0xff]
    %v58 = vld [vmem:[#allocation2 + $0xe8] sm:$0xff]
    %v59 = vld [vmem:[#allocation2 + $0xf0] sm:$0xff]
    %v60 = vld [vmem:[#allocation2 + $0xf8] sm:$0xff]
    %v61 = vld [vmem:[#allocation2 + $0x100] sm:$0xff]
    %v62 = vld [vmem:[#allocation2 + $0x108] sm:$0xff]
    %v63 = vld [vmem:[#allocation2 + $0x110] sm:$0xff]
    %v64 = vld [vmem:[#allocation2 + $0x118] sm:$0xff]
    %v65 = vld [vmem:[#allocation2 + $0x120] sm:$0xff]
    %v66 = vld [vmem:[#allocation2 + $0x128] sm:$0xff]
    %v67 = vld [vmem:[#allocation2 + $0x130] sm:$0xff]
    %v68 = vld [vmem:[#allocation2 + $0x138] sm:$0xff]
    %v69 = vld [vmem:[#allocation2 + $0x140] sm:$0xff]
    %v70 = vld [vmem:[#allocation2 + $0x148] sm:$0xff]
    %v71 = vld [vmem:[#allocation2 + $0x150] sm:$0xff]
    %v72 = vld [vmem:[#allocation2 + $0x158] sm:$0xff]
    %v73 = vld [vmem:[#allocation2 + $0x160] sm:$0xff]
    %v74 = vld [vmem:[#allocation2 + $0x168] sm:$0xff]
    %v75 = vld [vmem:[#allocation2 + $0x170] sm:$0xff]
    %v76 = vld [vmem:[#allocation2 + $0x178] sm:$0xff]
    %v77 = vld [vmem:[#allocation2 + $0x180] sm:$0xff]
    %v78 = vld [vmem:[#allocation2 + $0x188] sm:$0xff]
    %v79 = vld [vmem:[#allocation2 + $0x190] sm:$0xff]
    %v80 = vld [vmem:[#allocation2 + $0x198] sm:$0xff]
    %v81 = vld [vmem:[#allocation2 + $0x1a0] sm:$0xff]
    %v82 = vld [vmem:[#allocation2 + $0x1a8] sm:$0xff]
    %v83 = vld [vmem:[#allocation2 + $0x1b0] sm:$0xff]
    %v84 = vld [vmem:[#allocation2 + $0x1b8] sm:$0xff]
    %v85 = vld [vmem:[#allocation2 + $0x1c0] sm:$0xff]
    %v86 = vld [vmem:[#allocation2 + $0x1c8] sm:$0xff]
    %v87 = vld [vmem:[#allocation2 + $0x1d0] sm:$0xff]
    %v88 = vld [vmem:[#allocation2 + $0x1d8] sm:$0xff]
    %v89 = vld [vmem:[#allocation2 + $0x1e0] sm:$0xff]
    %v90 = vld [vmem:[#allocation2 + $0x1e8] sm:$0xff]
    %v91 = vld [vmem:[#allocation2 + $0x1f0] sm:$0xff]
    %v92 = vld [vmem:[#allocation2 + $0x1f8] sm:$0xff]
    %v93 = vld [vmem:[#allocation2 + $0x200] sm:$0xff]
    %v94 = vld [vmem:[#allocation2 + $0x208] sm:$0xff]
    %v95 = vld [vmem:[#allocation2 + $0x210] sm:$0xff]
    %v96 = vld [vmem:[#allocation2 + $0x218] sm:$0xff]
    %v97 = vld [vmem:[#allocation2 + $0x220] sm:$0xff]
    %v98 = vld [vmem:[#allocation2 + $0x228] sm:$0xff]
    %v99 = vld [vmem:[#allocation2 + $0x230] sm:$0xff]
    %v100 = vld [vmem:[#allocation2 + $0x238] sm:$0xff]
    %v101 = vld [vmem:[#allocation2 + $0x240] sm:$0xff]
    %v102 = vld [vmem:[#allocation2 + $0x248] sm:$0xff]
    %v103 = vld [vmem:[#allocation2 + $0x250] sm:$0xff]
    %v104 = vld [vmem:[#allocation2 + $0x258] sm:$0xff]
    %v105 = vld [vmem:[#allocation2 + $0x260] sm:$0xff]
    %v106 = vld [vmem:[#allocation2 + $0x268] sm:$0xff]
    %v107 = vld [vmem:[#allocation2 + $0x270] sm:$0xff]
    %v108 = vld [vmem:[#allocation2 + $0x278] sm:$0xff]
    %v109 = vld [vmem:[#allocation2 + $0x280] sm:$0xff]
    %v110 = vld [vmem:[#allocation2 + $0x288] sm:$0xff]
    %v111 = vld [vmem:[#allocation2 + $0x290] sm:$0xff]
    %v112 = vld [vmem:[#allocation2 + $0x298] sm:$0xff]
    %v113 = vld [vmem:[#allocation2 + $0x2a0] sm:$0xff]
    %v114 = vld [vmem:[#allocation2 + $0x2a8] sm:$0xff]
    %v115 = vld [vmem:[#allocation2 + $0x2b0] sm:$0xff]
    %v116 = vld [vmem:[#allocation2 + $0x2b8] sm:$0xff]
    %v117 = vld [vmem:[#allocation2 + $0x2c0] sm:$0xff]
    %v118 = vld [vmem:[#allocation2 + $0x2c8] sm:$0xff]
    %v119 = vld [vmem:[#allocation2 + $0x2d0] sm:$0xff]
    %v120 = vld [vmem:[#allocation2 + $0x2d8] sm:$0xff]
    %v121 = vld [vmem:[#allocation2 + $0x2e0] sm:$0xff]
    %v122 = vld [vmem:[#allocation2 + $0x2e8] sm:$0xff]
    %v123 = vld [vmem:[#allocation2 + $0x2f0] sm:$0xff]
    %v124 = vld [vmem:[#allocation2 + $0x2f8] sm:$0xff]
    %v125 = vld [vmem:[#allocation2 + $0x300] sm:$0xff]
    %v126 = vld [vmem:[#allocation2 + $0x308] sm:$0xff]
    %v127 = vld [vmem:[#allocation2 + $0x310] sm:$0xff]
    %v128 = vld [vmem:[#allocation2 + $0x318] sm:$0xff]
    %v129 = vld [vmem:[#allocation2 + $0x320] sm:$0xff]
    %v130 = vld [vmem:[#allocation2 + $0x328] sm:$0xff]
    %v131 = vld [vmem:[#allocation2 + $0x330] sm:$0xff]
    %v132 = vld [vmem:[#allocation2 + $0x338] sm:$0xff]
    %v133 = vld [vmem:[#allocation2 + $0x340] sm:$0xff]
    %v134 = vld [vmem:[#allocation2 + $0x348] sm:$0xff]
    %v135 = vld [vmem:[#allocation2 + $0x350] sm:$0xff]
    %v136 = vld [vmem:[#allocation2 + $0x358] sm:$0xff]
    %v137 = vld [vmem:[#allocation2 + $0x360] sm:$0xff]
    %v138 = vld [vmem:[#allocation2 + $0x368] sm:$0xff]
    %v139 = vld [vmem:[#allocation2 + $0x370] sm:$0xff]
    %v140 = vld [vmem:[#allocation2 + $0x378] sm:$0xff]
    %v141 = vld [vmem:[#allocation2 + $0x380] sm:$0xff]
    %v142 = vld [vmem:[#allocation2 + $0x388] sm:$0xff]
    %v143 = vld [vmem:[#allocation2 + $0x390] sm:$0xff]
    %v144 = vld [vmem:[#allocation2 + $0x398] sm:$0xff]
    %v145 = vld [vmem:[#allocation2 + $0x3a0] sm:$0xff]
    %v146 = vld [vmem:[#allocation2 + $0x3a8] sm:$0xff]
    %v147 = vld [vmem:[#allocation2 + $0x3b0] sm:$0xff]
    %v148 = vld [vmem:[#allocation2 + $0x3b8] sm:$0xff]
    %v149 = vld [vmem:[#allocation2 + $0x3c0] sm:$0xff]
    %v150 = vld [vmem:[#allocation2 + $0x3c8] sm:$0xff]
    %v151 = vld [vmem:[#allocation2 + $0x3d0] sm:$0xff]
    %v152 = vld [vmem:[#allocation2 + $0x3d8] sm:$0xff]
    %v153 = vld [vmem:[#allocation2 + $0x3e0] sm:$0xff]
    %v154 = vld [vmem:[#allocation2 + $0x3e8] sm:$0xff]
    %v155 = vld [vmem:[#allocation2 + $0x3f0] sm:$0xff]
    %v156 = vld [vmem:[#allocation2 + $0x3f8] sm:$0xff]
    %v157 = vld [vmem:[%s1] sm:$0xff]
    %v158 = vld [vmem:[%s1 + $0x8] sm:$0xff]
    %v159 = vld [vmem:[%s1 + $0x10] sm:$0xff]
    %v160 = vld [vmem:[%s1 + $0x18] sm:$0xff]
    %v161 = vld [vmem:[%s1 + $0x20] sm:$0xff]
    %v162 = vld [vmem:[%s1 + $0x28] sm:$0xff]
    %v163 = vld [vmem:[%s1 + $0x30] sm:$0xff]
    %v164 = vld [vmem:[%s1 + $0x38] sm:$0xff]
    %v165 = vld [vmem:[%s1 + $0x40] sm:$0xff]
    %v166 = vld [vmem:[%s1 + $0x48] sm:$0xff]
    %v167 = vld [vmem:[%s1 + $0x50] sm:$0xff]
    %v168 = vld [vmem:[%s1 + $0x58] sm:$0xff]
    %v169 = vld [vmem:[%s1 + $0x60] sm:$0xff]
    %v170 = vld [vmem:[%s1 + $0x68] sm:$0xff]
    %v171 = vld [vmem:[%s1 + $0x70] sm:$0xff]
    %v172 = vld [vmem:[%s1 + $0x78] sm:$0xff]
    %v173 = vld [vmem:[%s1 + $0x80] sm:$0xff]
    %v174 = vld [vmem:[%s1 + $0x88] sm:$0xff]
    %v175 = vld [vmem:[%s1 + $0x90] sm:$0xff]
    %v176 = vld [vmem:[%s1 + $0x98] sm:$0xff]
    %v177 = vld [vmem:[%s1 + $0xa0] sm:$0xff]
    %v178 = vld [vmem:[%s1 + $0xa8] sm:$0xff]
    %v179 = vld [vmem:[%s1 + $0xb0] sm:$0xff]
    %v180 = vld [vmem:[%s1 + $0xb8] sm:$0xff]
    %v181 = vld [vmem:[%s1 + $0xc0] sm:$0xff]
    %v182 = vld [vmem:[%s1 + $0xc8] sm:$0xff]
    %v183 = vld [vmem:[%s1 + $0xd0] sm:$0xff]
    %v184 = vld [vmem:[%s1 + $0xd8] sm:$0xff]
    %v185 = vld [vmem:[%s1 + $0xe0] sm:$0xff]
    %v186 = vld [vmem:[%s1 + $0xe8] sm:$0xff]
    %v187 = vld [vmem:[%s1 + $0xf0] sm:$0xff]
    %v188 = vld [vmem:[%s1 + $0xf8] sm:$0xff]
    %v189 = vld [vmem:[%s1 + $0x100] sm:$0xff]
    %v190 = vld [vmem:[%s1 + $0x108] sm:$0xff]
    %v191 = vld [vmem:[%s1 + $0x110] sm:$0xff]
    %v192 = vld [vmem:[%s1 + $0x118] sm:$0xff]
    %v193 = vld [vmem:[%s1 + $0x120] sm:$0xff]
    %v194 = vld [vmem:[%s1 + $0x128] sm:$0xff]
    %v195 = vld [vmem:[%s1 + $0x130] sm:$0xff]
    %v196 = vld [vmem:[%s1 + $0x138] sm:$0xff]
    %v197 = vld [vmem:[%s1 + $0x140] sm:$0xff]
    %v198 = vld [vmem:[%s1 + $0x148] sm:$0xff]
    %v199 = vld [vmem:[%s1 + $0x150] sm:$0xff]
    %v200 = vld [vmem:[%s1 + $0x158] sm:$0xff]
    %v201 = vld [vmem:[%s1 + $0x160] sm:$0xff]
    %v202 = vld [vmem:[%s1 + $0x168] sm:$0xff]
    %v203 = vld [vmem:[%s1 + $0x170] sm:$0xff]
    %v204 = vld [vmem:[%s1 + $0x178] sm:$0xff]
    %v205 = vld [vmem:[%s1 + $0x180] sm:$0xff]
    %v206 = vld [vmem:[%s1 + $0x188] sm:$0xff]
    %v207 = vld [vmem:[%s1 + $0x190] sm:$0xff]
    %v208 = vld [vmem:[%s1 + $0x198] sm:$0xff]
    %v209 = vld [vmem:[%s1 + $0x1a0] sm:$0xff]
    %v210 = vld [vmem:[%s1 + $0x1a8] sm:$0xff]
    %v211 = vld [vmem:[%s1 + $0x1b0] sm:$0xff]
    %v212 = vld [vmem:[%s1 + $0x1b8] sm:$0xff]
    %v213 = vld [vmem:[%s1 + $0x1c0] sm:$0xff]
    %v214 = vld [vmem:[%s1 + $0x1c8] sm:$0xff]
    %v215 = vld [vmem:[%s1 + $0x1d0] sm:$0xff]
    %v216 = vld [vmem:[%s1 + $0x1d8] sm:$0xff]
    %v217 = vld [vmem:[%s1 + $0x1e0] sm:$0xff]
    %v218 = vld [vmem:[%s1 + $0x1e8] sm:$0xff]
    %v219 = vld [vmem:[%s1 + $0x1f0] sm:$0xff]
    %v220 = vld [vmem:[%s1 + $0x1f8] sm:$0xff]
    %221 = vmatprep.subr.mxu0 0.0
    %222 = vmatpush1.msra.mxu0 %v157
    %223 = vmatprep.subr.mxu0 0.0
    %224 = vmatpush1.msra.mxu0 %v158
    %225 = vmatprep.subr.mxu0 0.0
    %226 = vmatpush1.msra.mxu0 %v159
    %227 = vmatprep.subr.mxu0 0.0
    %228 = vmatpush1.msra.mxu0 %v160
    %229 = vmatprep.subr.mxu0 0.0
    %230 = vmatpush1.msra.mxu0 %v161
    %231 = vmatprep.subr.mxu0 0.0
    %232 = vmatpush1.msra.mxu0 %v162
    %233 = vmatprep.subr.mxu0 0.0
    %234 = vmatpush1.msra.mxu0 %v163
    %235 = vmatprep.subr.mxu0 0.0
    %236 = vmatpush1.msra.mxu0 %v164
    %237 = vmatprep.subr.mxu0 0.0
    %238 = vmatpush1.msra.mxu0 %v165
    %239 = vmatprep.subr.mxu0 0.0
    %240 = vmatpush1.msra.mxu0 %v166
    %241 = vmatprep.subr.mxu0 0.0
    %242 = vmatpush1.msra.mxu0 %v167
    %243 = vmatprep.subr.mxu0 0.0
    %244 = vmatpush1.msra.mxu0 %v168
    %245 = vmatprep.subr.mxu0 0.0
    %246 = vmatpush1.msra.mxu0 %v169
    %247 = vmatprep.subr.mxu0 0.0
    %248 = vmatpush1.msra.mxu0 %v170
    %249 = vmatprep.subr.mxu0 0.0
    %250 = vmatpush1.msra.mxu0 %v171
    %251 = vmatprep.subr.mxu0 0.0
    %252 = vmatpush1.msra.mxu0 %v172
    %253 = vmatprep.subr.mxu0 0.0
    %254 = vmatpush1.msra.mxu0 %v173
    %255 = vmatprep.subr.mxu0 0.0
    %256 = vmatpush1.msra.mxu0 %v174
    %257 = vmatprep.subr.mxu0 0.0
    %258 = vmatpush1.msra.mxu0 %v175
    %259 = vmatprep.subr.mxu0 0.0
    %260 = vmatpush1.msra.mxu0 %v176
    %261 = vmatprep.subr.mxu0 0.0
    %262 = vmatpush1.msra.mxu0 %v177
    %263 = vmatprep.subr.mxu0 0.0
    %264 = vmatpush1.msra.mxu0 %v178
    %265 = vmatprep.subr.mxu0 0.0
    %266 = vmatpush1.msra.mxu0 %v179
    %267 = vmatprep.subr.mxu0 0.0
    %268 = vmatpush1.msra.mxu0 %v180
    %269 = vmatprep.subr.mxu0 0.0
    %270 = vmatpush1.msra.mxu0 %v181
    %271 = vmatprep.subr.mxu0 0.0
    %272 = vmatpush1.msra.mxu0 %v182
    %273 = vmatprep.subr.mxu0 0.0
    %274 = vmatpush1.msra.mxu0 %v183
    %275 = vmatprep.subr.mxu0 0.0
    %276 = vmatpush1.msra.mxu0 %v184
    %277 = vmatprep.subr.mxu0 0.0
    %278 = vmatpush1.msra.mxu0 %v185
    %279 = vmatprep.subr.mxu0 0.0
    %280 = vmatpush1.msra.mxu0 %v186
    %281 = vmatprep.subr.mxu0 0.0
    %282 = vmatpush1.msra.mxu0 %v187
    %283 = vmatprep.subr.mxu0 0.0
    %284 = vmatpush1.msra.mxu0 %v188
    %285 = vmatprep.mubr.f32.mxu0 %v30
    %286 = vmatmul.mubr.f32.gmra.mrb[0].mxu0 %v29
    %v287 = vpop.f32.mrb[0].mxu0
    %v288 = vadd.f32 0.0, %v287
    %v289 = vpop.f32.mrb[0].mxu0
    %290 = vmatprep.mubr.f32.mxu0 %v34
    %291 = vmatmul.mubr.f32.gmra.mrb[0].mxu0 %v33
    %v292 = vpop.f32.mrb[0].mxu0
    %v293 = vadd.f32 0.0, %v292
    %v294 = vpop.f32.mrb[0].mxu0
    %295 = vmatprep.mubr.f32.mxu0 %v38
    %296 = vmatmul.mubr.f32.gmra.mrb[0].mxu0 %v37
    %v297 = vpop.f32.mrb[0].mxu0
    %v298 = vadd.f32 0.0, %v297
    %v299 = vpop.f32.mrb[0].mxu0
    %300 = vmatprep.mubr.f32.mxu0 %v42
    %301 = vmatmul.mubr.f32.gmra.mrb[0].mxu0 %v41
    %v302 = vpop.f32.mrb[0].mxu0
    %v303 = vadd.f32 0.0, %v302
    %v304 = vpop.f32.mrb[0].mxu0
    %305 = vmatprep.mubr.f32.mxu0 %v46
    %306 = vmatmul.mubr.f32.gmra.mrb[0].mxu0 %v45
    %v307 = vpop.f32.mrb[0].mxu0
    %v308 = vadd.f32 0.0, %v307
    %v309 = vpop.f32.mrb[0].mxu0
    %310 = vmatprep.mubr.f32.mxu0 %v50
    %311 = vmatmul.mubr.f32.gmra.mrb[0].mxu0 %v49
    %v312 = vpop.f32.mrb[0].mxu0
    %v313 = vadd.f32 0.0, %v312
    %v314 = vpop.f32.mrb[0].mxu0
    %315 = vmatprep.mubr.f32.mxu0 %v54
    %316 = vmatmul.mubr.f32.gmra.mrb[0].mxu0 %v53
    %v317 = vpop.f32.mrb[0].mxu0
    %v318 = vadd.f32 0.0, %v317
    %v319 = vpop.f32.mrb[0].mxu0
    %320 = vmatprep.mubr.f32.mxu0 %v58
    %321 = vmatmul.mubr.f32.gmra.mrb[0].mxu0 %v57
    %v322 = vpop.f32.mrb[0].mxu0
    %v323 = vadd.f32 0.0, %v322
    %v324 = vpop.f32.mrb[0].mxu0
    %325 = vmatprep.mubr.f32.mxu0 %v62
    %326 = vmatmul.mubr.f32.gmra.mrb[0].mxu0 %v61
    %v327 = vpop.f32.mrb[0].mxu0
    %v328 = vadd.f32 0.0, %v327
    %v329 = vpop.f32.mrb[0].mxu0
    %330 = vmatprep.mubr.f32.mxu0 %v66
    %331 = vmatmul.mubr.f32.gmra.mrb[0].mxu0 %v65
    %v332 = vpop.f32.mrb[0].mxu0
    %v333 = vadd.f32 0.0, %v332
    %v334 = vpop.f32.mrb[0].mxu0
    %335 = vmatprep.mubr.f32.mxu0 %v70
    %336 = vmatmul.mubr.f32.gmra.mrb[0].mxu0 %v69
    %v337 = vpop.f32.mrb[0].mxu0
    %v338 = vadd.f32 0.0, %v337
    %v339 = vpop.f32.mrb[0].mxu0
    %340 = vmatprep.mubr.f32.mxu0 %v74
    %341 = vmatmul.mubr.f32.gmra.mrb[0].mxu0 %v73
    %v342 = vpop.f32.mrb[0].mxu0
    %v343 = vadd.f32 0.0, %v342
    %v344 = vpop.f32.mrb[0].mxu0
    %345 = vmatprep.mubr.f32.mxu0 %v78
    %346 = vmatmul.mubr.f32.gmra.mrb[0].mxu0 %v77
    %v347 = vpop.f32.mrb[0].mxu0
    %v348 = vadd.f32 0.0, %v347
    %v349 = vpop.f32.mrb[0].mxu0
    %350 = vmatprep.mubr.f32.mxu0 %v82
    %351 = vmatmul.mubr.f32.gmra.mrb[0].mxu0 %v81
    %v352 = vpop.f32.mrb[0].mxu0
    %v353 = vadd.f32 0.0, %v352
    %v354 = vpop.f32.mrb[0].mxu0
    %355 = vmatprep.mubr.f32.mxu0 %v86
    %356 = vmatmul.mubr.f32.gmra.mrb[0].mxu0 %v85
    %v357 = vpop.f32.mrb[0].mxu0
    %v358 = vadd.f32 0.0, %v357
    %v359 = vpop.f32.mrb[0].mxu0
    %360 = vmatprep.mubr.f32.mxu0 %v90
    %361 = vmatmul.mubr.f32.gmra.mrb[0].mxu0 %v89
    %v362 = vpop.f32.mrb[0].mxu0
    %v363 = vadd.f32 0.0, %v362
    %v364 = vpop.f32.mrb[0].mxu0
    %365 = vmatprep.mubr.f32.mxu0 %v94
    %366 = vmatmul.mubr.f32.gmra.mrb[0].mxu0 %v93
    %v367 = vpop.f32.mrb[0].mxu0
    %v368 = vadd.f32 0.0, %v367
    %v369 = vpop.f32.mrb[0].mxu0
    %370 = vmatprep.mubr.f32.mxu0 %v98
    %371 = vmatmul.mubr.f32.gmra.mrb[0].mxu0 %v97
    %v372 = vpop.f32.mrb[0].mxu0
    %v373 = vadd.f32 0.0, %v372
    %v374 = vpop.f32.mrb[0].mxu0
    %375 = vmatprep.mubr.f32.mxu0 %v102
    %376 = vmatmul.mubr.f32.gmra.mrb[0].mxu0 %v101
    %v377 = vpop.f32.mrb[0].mxu0
    %v378 = vadd.f32 0.0, %v377
    %v379 = vpop.f32.mrb[0].mxu0
    %380 = vmatprep.mubr.f32.mxu0 %v106
    %381 = vmatmul.mubr.f32.gmra.mrb[0].mxu0 %v105
    %v382 = vpop.f32.mrb[0].mxu0
    %v383 = vadd.f32 0.0, %v382
    %v384 = vpop.f32.mrb[0].mxu0
    %385 = vmatprep.mubr.f32.mxu0 %v110
    %386 = vmatmul.mubr.f32.gmra.mrb[0].mxu0 %v109
    %v387 = vpop.f32.mrb[0].mxu0
    %v388 = vadd.f32 0.0, %v387
    %v389 = vpop.f32.mrb[0].mxu0
    %390 = vmatprep.mubr.f32.mxu0 %v114
    %391 = vmatmul.mubr.f32.gmra.mrb[0].mxu0 %v113
    %v392 = vpop.f32.mrb[0].mxu0
    %v393 = vadd.f32 0.0, %v392
    %v394 = vpop.f32.mrb[0].mxu0
    %395 = vmatprep.mubr.f32.mxu0 %v118
    %396 = vmatmul.mubr.f32.gmra.mrb[0].mxu0 %v117
    %v397 = vpop.f32.mrb[0].mxu0
    %v398 = vadd.f32 0.0, %v397
    %v399 = vpop.f32.mrb[0].mxu0
    %400 = vmatprep.mubr.f32.mxu0 %v122
    %401 = vmatmul.mubr.f32.gmra.mrb[0].mxu0 %v121
    %v402 = vpop.f32.mrb[0].mxu0
    %v403 = vadd.f32 0.0, %v402
    %v404 = vpop.f32.mrb[0].mxu0
    %405 = vmatprep.mubr.f32.mxu0 %v126
    %406 = vmatmul.mubr.f32.gmra.mrb[0].mxu0 %v125
    %v407 = vpop.f32.mrb[0].mxu0
    %v408 = vadd.f32 0.0, %v407
    %v409 = vpop.f32.mrb[0].mxu0
    %410 = vmatprep.mubr.f32.mxu0 %v130
    %411 = vmatmul.mubr.f32.gmra.mrb[0].mxu0 %v129
    %v412 = vpop.f32.mrb[0].mxu0
    %v413 = vadd.f32 0.0, %v412
    %v414 = vpop.f32.mrb[0].mxu0
    %415 = vmatprep.mubr.f32.mxu0 %v134
    %416 = vmatmul.mubr.f32.gmra.mrb[0].mxu0 %v133
    %v417 = vpop.f32.mrb[0].mxu0
    %v418 = vadd.f32 0.0, %v417
    %v419 = vpop.f32.mrb[0].mxu0
    %420 = vmatprep.mubr.f32.mxu0 %v138
    %421 = vmatmul.mubr.f32.gmra.mrb[0].mxu0 %v137
    %v422 = vpop.f32.mrb[0].mxu0
    %v423 = vadd.f32 0.0, %v422
    %v424 = vpop.f32.mrb[0].mxu0
    %425 = vmatprep.mubr.f32.mxu0 %v142
    %426 = vmatmul.mubr.f32.gmra.mrb[0].mxu0 %v141
    %v427 = vpop.f32.mrb[0].mxu0
    %v428 = vadd.f32 0.0, %v427
    %v429 = vpop.f32.mrb[0].mxu0
    %430 = vmatprep.mubr.f32.mxu0 %v146
    %431 = vmatmul.mubr.f32.gmra.mrb[0].mxu0 %v145
    %v432 = vpop.f32.mrb[0].mxu0
    %v433 = vadd.f32 0.0, %v432
    %v434 = vpop.f32.mrb[0].mxu0
    %435 = vmatprep.mubr.f32.mxu0 %v150
    %436 = vmatmul.mubr.f32.gmra.mrb[0].mxu0 %v149
    %v437 = vpop.f32.mrb[0].mxu0
    %v438 = vadd.f32 0.0, %v437
    %v439 = vpop.f32.mrb[0].mxu0
    %440 = vmatprep.mubr.f32.mxu0 %v154
    %441 = vmatmul.mubr.f32.gmra.mrb[0].mxu0 %v153
    %v442 = vpop.f32.mrb[0].mxu0
    %v443 = vadd.f32 0.0, %v442
    %v444 = vpop.f32.mrb[0].mxu0
    %445 = vdwg.mxu0
    %446 = vmatprep.subr.mxu0 0.0
    %447 = vmatpush1.msra.mxu0 %v189
    %448 = vmatprep.subr.mxu0 0.0
    %449 = vmatpush1.msra.mxu0 %v190
    %450 = vmatprep.subr.mxu0 0.0
    %451 = vmatpush1.msra.mxu0 %v191
    %452 = vmatprep.subr.mxu0 0.0
    %453 = vmatpush1.msra.mxu0 %v192
    %454 = vmatprep.subr.mxu0 0.0
    %455 = vmatpush1.msra.mxu0 %v193
    %456 = vmatprep.subr.mxu0 0.0
    %457 = vmatpush1.msra.mxu0 %v194
    %458 = vmatprep.subr.mxu0 0.0
    %459 = vmatpush1.msra.mxu0 %v195
    %460 = vmatprep.subr.mxu0 0.0
    %461 = vmatpush1.msra.mxu0 %v196
    %462 = vmatprep.subr.mxu0 0.0
    %463 = vmatpush1.msra.mxu0 %v197
    %464 = vmatprep.subr.mxu0 0.0
    %465 = vmatpush1.msra.mxu0 %v198
    %466 = vmatprep.subr.mxu0 0.0
    %467 = vmatpush1.msra.mxu0 %v199
    %468 = vmatprep.subr.mxu0 0.0
    %469 = vmatpush1.msra.mxu0 %v200
    %470 = vmatprep.subr.mxu0 0.0
    %471 = vmatpush1.msra.mxu0 %v201
    %472 = vmatprep.subr.mxu0 0.0
    %473 = vmatpush1.msra.mxu0 %v202
    %474 = vmatprep.subr.mxu0 0.0
    %475 = vmatpush1.msra.mxu0 %v203
    %476 = vmatprep.subr.mxu0 0.0
    %477 = vmatpush1.msra.mxu0 %v204
    %478 = vmatprep.subr.mxu0 0.0
    %479 = vmatpush1.msra.mxu0 %v205
    %480 = vmatprep.subr.mxu0 0.0
    %481 = vmatpush1.msra.mxu0 %v206
    %482 = vmatprep.subr.mxu0 0.0
    %483 = vmatpush1.msra.mxu0 %v207
    %484 = vmatprep.subr.mxu0 0.0
    %485 = vmatpush1.msra.mxu0 %v208
    %486 = vmatprep.subr.mxu0 0.0
    %487 = vmatpush1.msra.mxu0 %v209
    %488 = vmatprep.subr.mxu0 0.0
    %489 = vmatpush1.msra.mxu0 %v210
    %490 = vmatprep.subr.mxu0 0.0
    %491 = vmatpush1.msra.mxu0 %v211
    %492 = vmatprep.subr.mxu0 0.0
    %493 = vmatpush1.msra.mxu0 %v212
    %494 = vmatprep.subr.mxu0 0.0
    %495 = vmatpush1.msra.mxu0 %v213
    %496 = vmatprep.subr.mxu0 0.0
    %497 = vmatpush1.msra.mxu0 %v214
    %498 = vmatprep.subr.mxu0 0.0
    %499 = vmatpush1.msra.mxu0 %v215
    %500 = vmatprep.subr.mxu0 0.0
    %501 = vmatpush1.msra.mxu0 %v216
    %502 = vmatprep.subr.mxu0 0.0
    %503 = vmatpush1.msra.mxu0 %v217
    %504 = vmatprep.subr.mxu0 0.0
    %505 = vmatpush1.msra.mxu0 %v218
    %506 = vmatprep.subr.mxu0 0.0
    %507 = vmatpush1.msra.mxu0 %v219
    %508 = vmatprep.subr.mxu0 0.0
    %509 = vmatpush1.msra.mxu0 %v220
    %510 = vmatprep.mubr.f32.mxu0 %v32
    %511 = vmatmul.mubr.f32.gmra.mrb[0].mxu0 %v31
    %v512 = vpop.f32.mrb[0].mxu0
    %v513 = vadd.f32 %v288, %v512
    %v514 = vpop.f32.mrb[0].mxu0
    %515 = vmatprep.mubr.f32.mxu0 %v36
    %516 = vmatmul.mubr.f32.gmra.mrb[0].mxu0 %v35
    %v517 = vpop.f32.mrb[0].mxu0
    %v518 = vadd.f32 %v293, %v517
    %v519 = vpop.f32.mrb[0].mxu0
    %520 = vmatprep.mubr.f32.mxu0 %v40
    %521 = vmatmul.mubr.f32.gmra.mrb[0].mxu0 %v39
    %v522 = vpop.f32.mrb[0].mxu0
    %v523 = vadd.f32 %v298, %v522
    %v524 = vpop.f32.mrb[0].mxu0
    %525 = vmatprep.mubr.f32.mxu0 %v44
    %526 = vmatmul.mubr.f32.gmra.mrb[0].mxu0 %v43
    %v527 = vpop.f32.mrb[0].mxu0
    %v528 = vadd.f32 %v303, %v527
    %v529 = vpop.f32.mrb[0].mxu0
    %530 = vmatprep.mubr.f32.mxu0 %v48
    %531 = vmatmul.mubr.f32.gmra.mrb[0].mxu0 %v47
    %v532 = vpop.f32.mrb[0].mxu0
    %v533 = vadd.f32 %v308, %v532
    %v534 = vpop.f32.mrb[0].mxu0
    %535 = vmatprep.mubr.f32.mxu0 %v52
    %536 = vmatmul.mubr.f32.gmra.mrb[0].mxu0 %v51
    %v537 = vpop.f32.mrb[0].mxu0
    %v538 = vadd.f32 %v313, %v537
    %v539 = vpop.f32.mrb[0].mxu0
    %540 = vmatprep.mubr.f32.mxu0 %v56
    %541 = vmatmul.mubr.f32.gmra.mrb[0].mxu0 %v55
    %v542 = vpop.f32.mrb[0].mxu0
    %v543 = vadd.f32 %v318, %v542
    %v544 = vpop.f32.mrb[0].mxu0
    %545 = vmatprep.mubr.f32.mxu0 %v60
    %546 = vmatmul.mubr.f32.gmra.mrb[0].mxu0 %v59
    %v547 = vpop.f32.mrb[0].mxu0
    %v548 = vadd.f32 %v323, %v547
    %v549 = vpop.f32.mrb[0].mxu0
    %550 = vmatprep.mubr.f32.mxu0 %v64
    %551 = vmatmul.mubr.f32.gmra.mrb[0].mxu0 %v63
    %v552 = vpop.f32.mrb[0].mxu0
    %v553 = vadd.f32 %v328, %v552
    %v554 = vpop.f32.mrb[0].mxu0
    %555 = vmatprep.mubr.f32.mxu0 %v68
    %556 = vmatmul.mubr.f32.gmra.mrb[0].mxu0 %v67
    %v557 = vpop.f32.mrb[0].mxu0
    %v558 = vadd.f32 %v333, %v557
    %v559 = vpop.f32.mrb[0].mxu0
    %560 = vmatprep.mubr.f32.mxu0 %v72
    %561 = vmatmul.mubr.f32.gmra.mrb[0].mxu0 %v71
    %v562 = vpop.f32.mrb[0].mxu0
    %v563 = vadd.f32 %v338, %v562
    %v564 = vpop.f32.mrb[0].mxu0
    %565 = vmatprep.mubr.f32.mxu0 %v76
    %566 = vmatmul.mubr.f32.gmra.mrb[0].mxu0 %v75
    %v567 = vpop.f32.mrb[0].mxu0
    %v568 = vadd.f32 %v343, %v567
    %v569 = vpop.f32.mrb[0].mxu0
    %570 = vmatprep.mubr.f32.mxu0 %v80
    %571 = vmatmul.mubr.f32.gmra.mrb[0].mxu0 %v79
    %v572 = vpop.f32.mrb[0].mxu0
    %v573 = vadd.f32 %v348, %v572
    %v574 = vpop.f32.mrb[0].mxu0
    %575 = vmatprep.mubr.f32.mxu0 %v84
    %576 = vmatmul.mubr.f32.gmra.mrb[0].mxu0 %v83
    %v577 = vpop.f32.mrb[0].mxu0
    %v578 = vadd.f32 %v353, %v577
    %v579 = vpop.f32.mrb[0].mxu0
    %580 = vmatprep.mubr.f32.mxu0 %v88
    %581 = vmatmul.mubr.f32.gmra.mrb[0].mxu0 %v87
    %v582 = vpop.f32.mrb[0].mxu0
    %v583 = vadd.f32 %v358, %v582
    %v584 = vpop.f32.mrb[0].mxu0
    %585 = vmatprep.mubr.f32.mxu0 %v92
    %586 = vmatmul.mubr.f32.gmra.mrb[0].mxu0 %v91
    %v587 = vpop.f32.mrb[0].mxu0
    %v588 = vadd.f32 %v363, %v587
    %v589 = vpop.f32.mrb[0].mxu0
    %590 = vmatprep.mubr.f32.mxu0 %v96
    %591 = vmatmul.mubr.f32.gmra.mrb[0].mxu0 %v95
    %v592 = vpop.f32.mrb[0].mxu0
    %v593 = vadd.f32 %v368, %v592
    %v594 = vpop.f32.mrb[0].mxu0
    %595 = vmatprep.mubr.f32.mxu0 %v100
    %596 = vmatmul.mubr.f32.gmra.mrb[0].mxu0 %v99
    %v597 = vpop.f32.mrb[0].mxu0
    %v598 = vadd.f32 %v373, %v597
    %v599 = vpop.f32.mrb[0].mxu0
    %600 = vmatprep.mubr.f32.mxu0 %v104
    %601 = vmatmul.mubr.f32.gmra.mrb[0].mxu0 %v103
    %v602 = vpop.f32.mrb[0].mxu0
    %v603 = vadd.f32 %v378, %v602
    %v604 = vpop.f32.mrb[0].mxu0
    %605 = vmatprep.mubr.f32.mxu0 %v108
    %606 = vmatmul.mubr.f32.gmra.mrb[0].mxu0 %v107
    %v607 = vpop.f32.mrb[0].mxu0
    %v608 = vadd.f32 %v383, %v607
    %v609 = vpop.f32.mrb[0].mxu0
    %610 = vmatprep.mubr.f32.mxu0 %v112
    %611 = vmatmul.mubr.f32.gmra.mrb[0].mxu0 %v111
    %v612 = vpop.f32.mrb[0].mxu0
    %v613 = vadd.f32 %v388, %v612
    %v614 = vpop.f32.mrb[0].mxu0
    %615 = vmatprep.mubr.f32.mxu0 %v116
    %616 = vmatmul.mubr.f32.gmra.mrb[0].mxu0 %v115
    %v617 = vpop.f32.mrb[0].mxu0
    %v618 = vadd.f32 %v393, %v617
    %v619 = vpop.f32.mrb[0].mxu0
    %620 = vmatprep.mubr.f32.mxu0 %v120
    %621 = vmatmul.mubr.f32.gmra.mrb[0].mxu0 %v119
    %v622 = vpop.f32.mrb[0].mxu0
    %v623 = vadd.f32 %v398, %v622
    %v624 = vpop.f32.mrb[0].mxu0
    %625 = vmatprep.mubr.f32.mxu0 %v124
    %626 = vmatmul.mubr.f32.gmra.mrb[0].mxu0 %v123
    %v627 = vpop.f32.mrb[0].mxu0
    %v628 = vadd.f32 %v403, %v627
    %v629 = vpop.f32.mrb[0].mxu0
    %630 = vmatprep.mubr.f32.mxu0 %v128
    %631 = vmatmul.mubr.f32.gmra.mrb[0].mxu0 %v127
    %v632 = vpop.f32.mrb[0].mxu0
    %v633 = vadd.f32 %v408, %v632
    %v634 = vpop.f32.mrb[0].mxu0
    %635 = vmatprep.mubr.f32.mxu0 %v132
    %636 = vmatmul.mubr.f32.gmra.mrb[0].mxu0 %v131
    %v637 = vpop.f32.mrb[0].mxu0
    %v638 = vadd.f32 %v413, %v637
    %v639 = vpop.f32.mrb[0].mxu0
    %640 = vmatprep.mubr.f32.mxu0 %v136
    %641 = vmatmul.mubr.f32.gmra.mrb[0].mxu0 %v135
    %v642 = vpop.f32.mrb[0].mxu0
    %v643 = vadd.f32 %v418, %v642
    %v644 = vpop.f32.mrb[0].mxu0
    %645 = vmatprep.mubr.f32.mxu0 %v140
    %646 = vmatmul.mubr.f32.gmra.mrb[0].mxu0 %v139
    %v647 = vpop.f32.mrb[0].mxu0
    %v648 = vadd.f32 %v423, %v647
    %v649 = vpop.f32.mrb[0].mxu0
    %650 = vmatprep.mubr.f32.mxu0 %v144
    %651 = vmatmul.mubr.f32.gmra.mrb[0].mxu0 %v143
    %v652 = vpop.f32.mrb[0].mxu0
    %v653 = vadd.f32 %v428, %v652
    %v654 = vpop.f32.mrb[0].mxu0
    %655 = vmatprep.mubr.f32.mxu0 %v148
    %656 = vmatmul.mubr.f32.gmra.mrb[0].mxu0 %v147
    %v657 = vpop.f32.mrb[0].mxu0
    %v658 = vadd.f32 %v433, %v657
    %v659 = vpop.f32.mrb[0].mxu0
    %660 = vmatprep.mubr.f32.mxu0 %v152
    %661 = vmatmul.mubr.f32.gmra.mrb[0].mxu0 %v151
    %v662 = vpop.f32.mrb[0].mxu0
    %v663 = vadd.f32 %v438, %v662
    %v664 = vpop.f32.mrb[0].mxu0
    %665 = vmatprep.mubr.f32.mxu0 %v156
    %666 = vmatmul.mubr.f32.gmra.mrb[0].mxu0 %v155
    %v667 = vpop.f32.mrb[0].mxu0
    %v668 = vadd.f32 %v443, %v667
    %v669 = vpop.f32.mrb[0].mxu0
    %670 = vdwg.mxu0
    %v671 = vld [vmem:[%s2] sm:$0x1]
    %v673 = vlaneseq
    %v674 = vshrl.u32 %v673, 7
    %v675 = vsub.s32 0, %v674
    %v676 = vrot.slane %v671, %v675
    %v678 = vadd.f32 %v513, %v676
    %v679 = vadd.f32 %v518, %v676
    %v680 = vadd.f32 %v523, %v676
    %v681 = vadd.f32 %v528, %v676
    %v682 = vadd.f32 %v533, %v676
    %v683 = vadd.f32 %v538, %v676
    %v684 = vadd.f32 %v543, %v676
    %v685 = vadd.f32 %v548, %v676
    %v686 = vadd.f32 %v553, %v676
    %v687 = vadd.f32 %v558, %v676
    %v688 = vadd.f32 %v563, %v676
    %v689 = vadd.f32 %v568, %v676
    %v690 = vadd.f32 %v573, %v676
    %v691 = vadd.f32 %v578, %v676
    %v692 = vadd.f32 %v583, %v676
    %v693 = vadd.f32 %v588, %v676
    %v694 = vadd.f32 %v593, %v676
    %v695 = vadd.f32 %v598, %v676
    %v696 = vadd.f32 %v603, %v676
    %v697 = vadd.f32 %v608, %v676
    %v698 = vadd.f32 %v613, %v676
    %v699 = vadd.f32 %v618, %v676
    %v700 = vadd.f32 %v623, %v676
    %v701 = vadd.f32 %v628, %v676
    %v702 = vadd.f32 %v633, %v676
    %v703 = vadd.f32 %v638, %v676
    %v704 = vadd.f32 %v643, %v676
    %v705 = vadd.f32 %v648, %v676
    %v706 = vadd.f32 %v653, %v676
    %v707 = vadd.f32 %v658, %v676
    %v708 = vadd.f32 %v663, %v676
    %v709 = vadd.f32 %v668, %v676
    %v710 = vmul.f32 %v678, 1.442695
    %v711 = vpow.pop %v710
    %v712 = vmul.f32 %v679, 1.442695
    %v713 = vpow.pop %v712
    %v714 = vmul.f32 %v680, 1.442695
    %v715 = vpow.pop %v714
    %v716 = vmul.f32 %v681, 1.442695
    %v717 = vpow.pop %v716
    %v718 = vmul.f32 %v682, 1.442695
    %v719 = vpow.pop %v718
    %v720 = vmul.f32 %v683, 1.442695
    %v721 = vpow.pop %v720
    %v722 = vmul.f32 %v684, 1.442695
    %v723 = vpow.pop %v722
    %v724 = vmul.f32 %v685, 1.442695
    %v725 = vpow.pop %v724
    %v726 = vmul.f32 %v686, 1.442695
    %v727 = vpow.pop %v726
    %v728 = vmul.f32 %v687, 1.442695
    %v729 = vpow.pop %v728
    %v730 = vmul.f32 %v688, 1.442695
    %v731 = vpow.pop %v730
    %v732 = vmul.f32 %v689, 1.442695
    %v733 = vpow.pop %v732
    %v734 = vmul.f32 %v690, 1.442695
    %v735 = vpow.pop %v734
    %v736 = vmul.f32 %v691, 1.442695
    %v737 = vpow.pop %v736
    %v738 = vmul.f32 %v692, 1.442695
    %v739 = vpow.pop %v738
    %v740 = vmul.f32 %v693, 1.442695
    %v741 = vpow.pop %v740
    %v742 = vmul.f32 %v694, 1.442695
    %v743 = vpow.pop %v742
    %v744 = vmul.f32 %v695, 1.442695
    %v745 = vpow.pop %v744
    %v746 = vmul.f32 %v696, 1.442695
    %v747 = vpow.pop %v746
    %v748 = vmul.f32 %v697, 1.442695
    %v749 = vpow.pop %v748
    %v750 = vmul.f32 %v698, 1.442695
    %v751 = vpow.pop %v750
    %v752 = vmul.f32 %v699, 1.442695
    %v753 = vpow.pop %v752
    %v754 = vmul.f32 %v700, 1.442695
    %v755 = vpow.pop %v754
    %v756 = vmul.f32 %v701, 1.442695
    %v757 = vpow.pop %v756
    %v758 = vmul.f32 %v702, 1.442695
    %v759 = vpow.pop %v758
    %v760 = vmul.f32 %v703, 1.442695
    %v761 = vpow.pop %v760
    %v762 = vmul.f32 %v704, 1.442695
    %v763 = vpow.pop %v762
    %v764 = vmul.f32 %v705, 1.442695
    %v765 = vpow.pop %v764
    %v766 = vmul.f32 %v706, 1.442695
    %v767 = vpow.pop %v766
    %v768 = vmul.f32 %v707, 1.442695
    %v769 = vpow.pop %v768
    %v770 = vmul.f32 %v708, 1.442695
    %v771 = vpow.pop %v770
    %v772 = vmul.f32 %v709, 1.442695
    %v773 = vpow.pop %v772
    %v774 = vadd.f32 %v711, 1.0
    %v775 = vlog2.pop %v774
    %v776 = vmul.f32 %v775, 0.6931472
    %v777 = vmul.f32 -0.5, %v711
    %v778 = vadd.f32 %v777, 1.0
    %v779 = vmul.f32 %v778, %v711
    %v780 = vand.u32 2147483647, %v711
    %vm781 = vcmp.lt.f32.partialorder %v780, 0.0004427343
    %v782 = vsel %vm781, %v779, %v776
    %v783 = vadd.f32 %v713, 1.0
    %v784 = vlog2.pop %v783
    %v785 = vmul.f32 %v784, 0.6931472
    %v786 = vmul.f32 -0.5, %v713
    %v787 = vadd.f32 %v786, 1.0
    %v788 = vmul.f32 %v787, %v713
    %v789 = vand.u32 2147483647, %v713
    %vm790 = vcmp.lt.f32.partialorder %v789, 0.0004427343
    %v791 = vsel %vm790, %v788, %v785
    %v792 = vadd.f32 %v715, 1.0
    %v793 = vlog2.pop %v792
    %v794 = vmul.f32 %v793, 0.6931472
    %v795 = vmul.f32 -0.5, %v715
    %v796 = vadd.f32 %v795, 1.0
    %v797 = vmul.f32 %v796, %v715
    %v798 = vand.u32 2147483647, %v715
    %vm799 = vcmp.lt.f32.partialorder %v798, 0.0004427343
    %v800 = vsel %vm799, %v797, %v794
    %v801 = vadd.f32 %v717, 1.0
    %v802 = vlog2.pop %v801
    %v803 = vmul.f32 %v802, 0.6931472
    %v804 = vmul.f32 -0.5, %v717
    %v805 = vadd.f32 %v804, 1.0
    %v806 = vmul.f32 %v805, %v717
    %v807 = vand.u32 2147483647, %v717
    %vm808 = vcmp.lt.f32.partialorder %v807, 0.0004427343
    %v809 = vsel %vm808, %v806, %v803
    %v810 = vadd.f32 %v719, 1.0
    %v811 = vlog2.pop %v810
    %v812 = vmul.f32 %v811, 0.6931472
    %v813 = vmul.f32 -0.5, %v719
    %v814 = vadd.f32 %v813, 1.0
    %v815 = vmul.f32 %v814, %v719
    %v816 = vand.u32 2147483647, %v719
    %vm817 = vcmp.lt.f32.partialorder %v816, 0.0004427343
    %v818 = vsel %vm817, %v815, %v812
    %v819 = vadd.f32 %v721, 1.0
    %v820 = vlog2.pop %v819
    %v821 = vmul.f32 %v820, 0.6931472
    %v822 = vmul.f32 -0.5, %v721
    %v823 = vadd.f32 %v822, 1.0
    %v824 = vmul.f32 %v823, %v721
    %v825 = vand.u32 2147483647, %v721
    %vm826 = vcmp.lt.f32.partialorder %v825, 0.0004427343
    %v827 = vsel %vm826, %v824, %v821
    %v828 = vadd.f32 %v723, 1.0
    %v829 = vlog2.pop %v828
    %v830 = vmul.f32 %v829, 0.6931472
    %v831 = vmul.f32 -0.5, %v723
    %v832 = vadd.f32 %v831, 1.0
    %v833 = vmul.f32 %v832, %v723
    %v834 = vand.u32 2147483647, %v723
    %vm835 = vcmp.lt.f32.partialorder %v834, 0.0004427343
    %v836 = vsel %vm835, %v833, %v830
    %v837 = vadd.f32 %v725, 1.0
    %v838 = vlog2.pop %v837
    %v839 = vmul.f32 %v838, 0.6931472
    %v840 = vmul.f32 -0.5, %v725
    %v841 = vadd.f32 %v840, 1.0
    %v842 = vmul.f32 %v841, %v725
    %v843 = vand.u32 2147483647, %v725
    %vm844 = vcmp.lt.f32.partialorder %v843, 0.0004427343
    %v845 = vsel %vm844, %v842, %v839
    %v846 = vadd.f32 %v727, 1.0
    %v847 = vlog2.pop %v846
    %v848 = vmul.f32 %v847, 0.6931472
    %v849 = vmul.f32 -0.5, %v727
    %v850 = vadd.f32 %v849, 1.0
    %v851 = vmul.f32 %v850, %v727
    %v852 = vand.u32 2147483647, %v727
    %vm853 = vcmp.lt.f32.partialorder %v852, 0.0004427343
    %v854 = vsel %vm853, %v851, %v848
    %v855 = vadd.f32 %v729, 1.0
    %v856 = vlog2.pop %v855
    %v857 = vmul.f32 %v856, 0.6931472
    %v858 = vmul.f32 -0.5, %v729
    %v859 = vadd.f32 %v858, 1.0
    %v860 = vmul.f32 %v859, %v729
    %v861 = vand.u32 2147483647, %v729
    %vm862 = vcmp.lt.f32.partialorder %v861, 0.0004427343
    %v863 = vsel %vm862, %v860, %v857
    %v864 = vadd.f32 %v731, 1.0
    %v865 = vlog2.pop %v864
    %v866 = vmul.f32 %v865, 0.6931472
    %v867 = vmul.f32 -0.5, %v731
    %v868 = vadd.f32 %v867, 1.0
    %v869 = vmul.f32 %v868, %v731
    %v870 = vand.u32 2147483647, %v731
    %vm871 = vcmp.lt.f32.partialorder %v870, 0.0004427343
    %v872 = vsel %vm871, %v869, %v866
    %v873 = vadd.f32 %v733, 1.0
    %v874 = vlog2.pop %v873
    %v875 = vmul.f32 %v874, 0.6931472
    %v876 = vmul.f32 -0.5, %v733
    %v877 = vadd.f32 %v876, 1.0
    %v878 = vmul.f32 %v877, %v733
    %v879 = vand.u32 2147483647, %v733
    %vm880 = vcmp.lt.f32.partialorder %v879, 0.0004427343
    %v881 = vsel %vm880, %v878, %v875
    %v882 = vadd.f32 %v735, 1.0
    %v883 = vlog2.pop %v882
    %v884 = vmul.f32 %v883, 0.6931472
    %v885 = vmul.f32 -0.5, %v735
    %v886 = vadd.f32 %v885, 1.0
    %v887 = vmul.f32 %v886, %v735
    %v888 = vand.u32 2147483647, %v735
    %vm889 = vcmp.lt.f32.partialorder %v888, 0.0004427343
    %v890 = vsel %vm889, %v887, %v884
    %v891 = vadd.f32 %v737, 1.0
    %v892 = vlog2.pop %v891
    %v893 = vmul.f32 %v892, 0.6931472
    %v894 = vmul.f32 -0.5, %v737
    %v895 = vadd.f32 %v894, 1.0
    %v896 = vmul.f32 %v895, %v737
    %v897 = vand.u32 2147483647, %v737
    %vm898 = vcmp.lt.f32.partialorder %v897, 0.0004427343
    %v899 = vsel %vm898, %v896, %v893
    %v900 = vadd.f32 %v739, 1.0
    %v901 = vlog2.pop %v900
    %v902 = vmul.f32 %v901, 0.6931472
    %v903 = vmul.f32 -0.5, %v739
    %v904 = vadd.f32 %v903, 1.0
    %v905 = vmul.f32 %v904, %v739
    %v906 = vand.u32 2147483647, %v739
    %vm907 = vcmp.lt.f32.partialorder %v906, 0.0004427343
    %v908 = vsel %vm907, %v905, %v902
    %v909 = vadd.f32 %v741, 1.0
    %v910 = vlog2.pop %v909
    %v911 = vmul.f32 %v910, 0.6931472
    %v912 = vmul.f32 -0.5, %v741
    %v913 = vadd.f32 %v912, 1.0
    %v914 = vmul.f32 %v913, %v741
    %v915 = vand.u32 2147483647, %v741
    %vm916 = vcmp.lt.f32.partialorder %v915, 0.0004427343
    %v917 = vsel %vm916, %v914, %v911
    %v918 = vadd.f32 %v743, 1.0
    %v919 = vlog2.pop %v918
    %v920 = vmul.f32 %v919, 0.6931472
    %v921 = vmul.f32 -0.5, %v743
    %v922 = vadd.f32 %v921, 1.0
    %v923 = vmul.f32 %v922, %v743
    %v924 = vand.u32 2147483647, %v743
    %vm925 = vcmp.lt.f32.partialorder %v924, 0.0004427343
    %v926 = vsel %vm925, %v923, %v920
    %v927 = vadd.f32 %v745, 1.0
    %v928 = vlog2.pop %v927
    %v929 = vmul.f32 %v928, 0.6931472
    %v930 = vmul.f32 -0.5, %v745
    %v931 = vadd.f32 %v930, 1.0
    %v932 = vmul.f32 %v931, %v745
    %v933 = vand.u32 2147483647, %v745
    %vm934 = vcmp.lt.f32.partialorder %v933, 0.0004427343
    %v935 = vsel %vm934, %v932, %v929
    %v936 = vadd.f32 %v747, 1.0
    %v937 = vlog2.pop %v936
    %v938 = vmul.f32 %v937, 0.6931472
    %v939 = vmul.f32 -0.5, %v747
    %v940 = vadd.f32 %v939, 1.0
    %v941 = vmul.f32 %v940, %v747
    %v942 = vand.u32 2147483647, %v747
    %vm943 = vcmp.lt.f32.partialorder %v942, 0.0004427343
    %v944 = vsel %vm943, %v941, %v938
    %v945 = vadd.f32 %v749, 1.0
    %v946 = vlog2.pop %v945
    %v947 = vmul.f32 %v946, 0.6931472
    %v948 = vmul.f32 -0.5, %v749
    %v949 = vadd.f32 %v948, 1.0
    %v950 = vmul.f32 %v949, %v749
    %v951 = vand.u32 2147483647, %v749
    %vm952 = vcmp.lt.f32.partialorder %v951, 0.0004427343
    %v953 = vsel %vm952, %v950, %v947
    %v954 = vadd.f32 %v751, 1.0
    %v955 = vlog2.pop %v954
    %v956 = vmul.f32 %v955, 0.6931472
    %v957 = vmul.f32 -0.5, %v751
    %v958 = vadd.f32 %v957, 1.0
    %v959 = vmul.f32 %v958, %v751
    %v960 = vand.u32 2147483647, %v751
    %vm961 = vcmp.lt.f32.partialorder %v960, 0.0004427343
    %v962 = vsel %vm961, %v959, %v956
    %v963 = vadd.f32 %v753, 1.0
    %v964 = vlog2.pop %v963
    %v965 = vmul.f32 %v964, 0.6931472
    %v966 = vmul.f32 -0.5, %v753
    %v967 = vadd.f32 %v966, 1.0
    %v968 = vmul.f32 %v967, %v753
    %v969 = vand.u32 2147483647, %v753
    %vm970 = vcmp.lt.f32.partialorder %v969, 0.0004427343
    %v971 = vsel %vm970, %v968, %v965
    %v972 = vadd.f32 %v755, 1.0
    %v973 = vlog2.pop %v972
    %v974 = vmul.f32 %v973, 0.6931472
    %v975 = vmul.f32 -0.5, %v755
    %v976 = vadd.f32 %v975, 1.0
    %v977 = vmul.f32 %v976, %v755
    %v978 = vand.u32 2147483647, %v755
    %vm979 = vcmp.lt.f32.partialorder %v978, 0.0004427343
    %v980 = vsel %vm979, %v977, %v974
    %v981 = vadd.f32 %v757, 1.0
    %v982 = vlog2.pop %v981
    %v983 = vmul.f32 %v982, 0.6931472
    %v984 = vmul.f32 -0.5, %v757
    %v985 = vadd.f32 %v984, 1.0
    %v986 = vmul.f32 %v985, %v757
    %v987 = vand.u32 2147483647, %v757
    %vm988 = vcmp.lt.f32.partialorder %v987, 0.0004427343
    %v989 = vsel %vm988, %v986, %v983
    %v990 = vadd.f32 %v759, 1.0
    %v991 = vlog2.pop %v990
    %v992 = vmul.f32 %v991, 0.6931472
    %v993 = vmul.f32 -0.5, %v759
    %v994 = vadd.f32 %v993, 1.0
    %v995 = vmul.f32 %v994, %v759
    %v996 = vand.u32 2147483647, %v759
    %vm997 = vcmp.lt.f32.partialorder %v996, 0.0004427343
    %v998 = vsel %vm997, %v995, %v992
    %v999 = vadd.f32 %v761, 1.0
    %v1000 = vlog2.pop %v999
    %v1001 = vmul.f32 %v1000, 0.6931472
    %v1002 = vmul.f32 -0.5, %v761
    %v1003 = vadd.f32 %v1002, 1.0
    %v1004 = vmul.f32 %v1003, %v761
    %v1005 = vand.u32 2147483647, %v761
    %vm1006 = vcmp.lt.f32.partialorder %v1005, 0.0004427343
    %v1007 = vsel %vm1006, %v1004, %v1001
    %v1008 = vadd.f32 %v763, 1.0
    %v1009 = vlog2.pop %v1008
    %v1010 = vmul.f32 %v1009, 0.6931472
    %v1011 = vmul.f32 -0.5, %v763
    %v1012 = vadd.f32 %v1011, 1.0
    %v1013 = vmul.f32 %v1012, %v763
    %v1014 = vand.u32 2147483647, %v763
    %vm1015 = vcmp.lt.f32.partialorder %v1014, 0.0004427343
    %v1016 = vsel %vm1015, %v1013, %v1010
    %v1017 = vadd.f32 %v765, 1.0
    %v1018 = vlog2.pop %v1017
    %v1019 = vmul.f32 %v1018, 0.6931472
    %v1020 = vmul.f32 -0.5, %v765
    %v1021 = vadd.f32 %v1020, 1.0
    %v1022 = vmul.f32 %v1021, %v765
    %v1023 = vand.u32 2147483647, %v765
    %vm1024 = vcmp.lt.f32.partialorder %v1023, 0.0004427343
    %v1025 = vsel %vm1024, %v1022, %v1019
    %v1026 = vadd.f32 %v767, 1.0
    %v1027 = vlog2.pop %v1026
    %v1028 = vmul.f32 %v1027, 0.6931472
    %v1029 = vmul.f32 -0.5, %v767
    %v1030 = vadd.f32 %v1029, 1.0
    %v1031 = vmul.f32 %v1030, %v767
    %v1032 = vand.u32 2147483647, %v767
    %vm1033 = vcmp.lt.f32.partialorder %v1032, 0.0004427343
    %v1034 = vsel %vm1033, %v1031, %v1028
    %v1035 = vadd.f32 %v769, 1.0
    %v1036 = vlog2.pop %v1035
    %v1037 = vmul.f32 %v1036, 0.6931472
    %v1038 = vmul.f32 -0.5, %v769
    %v1039 = vadd.f32 %v1038, 1.0
    %v1040 = vmul.f32 %v1039, %v769
    %v1041 = vand.u32 2147483647, %v769
    %vm1042 = vcmp.lt.f32.partialorder %v1041, 0.0004427343
    %v1043 = vsel %vm1042, %v1040, %v1037
    %v1044 = vadd.f32 %v771, 1.0
    %v1045 = vlog2.pop %v1044
    %v1046 = vmul.f32 %v1045, 0.6931472
    %v1047 = vmul.f32 -0.5, %v771
    %v1048 = vadd.f32 %v1047, 1.0
    %v1049 = vmul.f32 %v1048, %v771
    %v1050 = vand.u32 2147483647, %v771
    %vm1051 = vcmp.lt.f32.partialorder %v1050, 0.0004427343
    %v1052 = vsel %vm1051, %v1049, %v1046
    %v1053 = vadd.f32 %v773, 1.0
    %v1054 = vlog2.pop %v1053
    %v1055 = vmul.f32 %v1054, 0.6931472
    %v1056 = vmul.f32 -0.5, %v773
    %v1057 = vadd.f32 %v1056, 1.0
    %v1058 = vmul.f32 %v1057, %v773
    %v1059 = vand.u32 2147483647, %v773
    %vm1060 = vcmp.lt.f32.partialorder %v1059, 0.0004427343
    %v1061 = vsel %vm1060, %v1058, %v1055
    %vm1062 = vcmask 261120
    %v1063 = vsel %vm1062, %v782, 0.0
    %1064 = vadd.xlane.f32.xlu0 %v1063
    %v1065 = vpop.xlane.xlu0 %1064
    %v1066 = vsel %vm1062, %v791, 0.0
    %1067 = vadd.xlane.f32.xlu0 %v1066
    %v1068 = vpop.xlane.xlu0 %1067
    %v1069 = vsel %vm1062, %v800, 0.0
    %1070 = vadd.xlane.f32.xlu0 %v1069
    %v1071 = vpop.xlane.xlu0 %1070
    %v1072 = vsel %vm1062, %v809, 0.0
    %1073 = vadd.xlane.f32.xlu0 %v1072
    %v1074 = vpop.xlane.xlu0 %1073
    %v1075 = vsel %vm1062, %v818, 0.0
    %1076 = vadd.xlane.f32.xlu0 %v1075
    %v1077 = vpop.xlane.xlu0 %1076
    %v1078 = vsel %vm1062, %v827, 0.0
    %1079 = vadd.xlane.f32.xlu0 %v1078
    %v1080 = vpop.xlane.xlu0 %1079
    %v1081 = vsel %vm1062, %v836, 0.0
    %1082 = vadd.xlane.f32.xlu0 %v1081
    %v1083 = vpop.xlane.xlu0 %1082
    %v1084 = vsel %vm1062, %v845, 0.0
    %1085 = vadd.xlane.f32.xlu0 %v1084
    %v1086 = vpop.xlane.xlu0 %1085
    %v1087 = vsel %vm1062, %v854, 0.0
    %1088 = vadd.xlane.f32.xlu0 %v1087
    %v1089 = vpop.xlane.xlu0 %1088
    %v1090 = vsel %vm1062, %v863, 0.0
    %1091 = vadd.xlane.f32.xlu0 %v1090
    %v1092 = vpop.xlane.xlu0 %1091
    %v1093 = vsel %vm1062, %v872, 0.0
    %1094 = vadd.xlane.f32.xlu0 %v1093
    %v1095 = vpop.xlane.xlu0 %1094
    %v1096 = vsel %vm1062, %v881, 0.0
    %1097 = vadd.xlane.f32.xlu0 %v1096
    %v1098 = vpop.xlane.xlu0 %1097
    %v1099 = vsel %vm1062, %v890, 0.0
    %1100 = vadd.xlane.f32.xlu0 %v1099
    %v1101 = vpop.xlane.xlu0 %1100
    %v1102 = vsel %vm1062, %v899, 0.0
    %1103 = vadd.xlane.f32.xlu0 %v1102
    %v1104 = vpop.xlane.xlu0 %1103
    %v1105 = vsel %vm1062, %v908, 0.0
    %1106 = vadd.xlane.f32.xlu0 %v1105
    %v1107 = vpop.xlane.xlu0 %1106
    %v1108 = vsel %vm1062, %v917, 0.0
    %1109 = vadd.xlane.f32.xlu0 %v1108
    %v1110 = vpop.xlane.xlu0 %1109
    %v1111 = vsel %vm1062, %v926, 0.0
    %1112 = vadd.xlane.f32.xlu0 %v1111
    %v1113 = vpop.xlane.xlu0 %1112
    %v1114 = vsel %vm1062, %v935, 0.0
    %1115 = vadd.xlane.f32.xlu0 %v1114
    %v1116 = vpop.xlane.xlu0 %1115
    %v1117 = vsel %vm1062, %v944, 0.0
    %1118 = vadd.xlane.f32.xlu0 %v1117
    %v1119 = vpop.xlane.xlu0 %1118
    %v1120 = vsel %vm1062, %v953, 0.0
    %1121 = vadd.xlane.f32.xlu0 %v1120
    %v1122 = vpop.xlane.xlu0 %1121
    %v1123 = vsel %vm1062, %v962, 0.0
    %1124 = vadd.xlane.f32.xlu0 %v1123
    %v1125 = vpop.xlane.xlu0 %1124
    %v1126 = vsel %vm1062, %v971, 0.0
    %1127 = vadd.xlane.f32.xlu0 %v1126
    %v1128 = vpop.xlane.xlu0 %1127
    %v1129 = vsel %vm1062, %v980, 0.0
    %1130 = vadd.xlane.f32.xlu0 %v1129
    %v1131 = vpop.xlane.xlu0 %1130
    %v1132 = vsel %vm1062, %v989, 0.0
    %1133 = vadd.xlane.f32.xlu0 %v1132
    %v1134 = vpop.xlane.xlu0 %1133
    %v1135 = vsel %vm1062, %v998, 0.0
    %1136 = vadd.xlane.f32.xlu0 %v1135
    %v1137 = vpop.xlane.xlu0 %1136
    %v1138 = vsel %vm1062, %v1007, 0.0
    %1139 = vadd.xlane.f32.xlu0 %v1138
    %v1140 = vpop.xlane.xlu0 %1139
    %v1141 = vsel %vm1062, %v1016, 0.0
    %1142 = vadd.xlane.f32.xlu0 %v1141
    %v1143 = vpop.xlane.xlu0 %1142
    %v1144 = vsel %vm1062, %v1025, 0.0
    %1145 = vadd.xlane.f32.xlu0 %v1144
    %v1146 = vpop.xlane.xlu0 %1145
    %v1147 = vsel %vm1062, %v1034, 0.0
    %1148 = vadd.xlane.f32.xlu0 %v1147
    %v1149 = vpop.xlane.xlu0 %1148
    %v1150 = vsel %vm1062, %v1043, 0.0
    %1151 = vadd.xlane.f32.xlu0 %v1150
    %v1152 = vpop.xlane.xlu0 %1151
    %v1153 = vsel %vm1062, %v1052, 0.0
    %1154 = vadd.xlane.f32.xlu0 %v1153
    %v1155 = vpop.xlane.xlu0 %1154
    %v1156 = vsel %vm1062, %v1061, 0.0
    %1157 = vadd.xlane.f32.xlu0 %v1156
    %v1158 = vpop.xlane.xlu0 %1157
    %v1159 = vadd.f32 %v513, 0.0
    %v1160 = vadd.f32 %v518, 0.0
    %v1161 = vadd.f32 %v523, 0.0
    %v1162 = vadd.f32 %v528, 0.0
    %v1163 = vadd.f32 %v533, 0.0
    %v1164 = vadd.f32 %v538, 0.0
    %v1165 = vadd.f32 %v543, 0.0
    %v1166 = vadd.f32 %v548, 0.0
    %v1167 = vadd.f32 %v553, 0.0
    %v1168 = vadd.f32 %v558, 0.0
    %v1169 = vadd.f32 %v563, 0.0
    %v1170 = vadd.f32 %v568, 0.0
    %v1171 = vadd.f32 %v573, 0.0
    %v1172 = vadd.f32 %v578, 0.0
    %v1173 = vadd.f32 %v583, 0.0
    %v1174 = vadd.f32 %v588, 0.0
    %v1175 = vadd.f32 %v593, 0.0
    %v1176 = vadd.f32 %v598, 0.0
    %v1177 = vadd.f32 %v603, 0.0
    %v1178 = vadd.f32 %v608, 0.0
    %v1179 = vadd.f32 %v613, 0.0
    %v1180 = vadd.f32 %v618, 0.0
    %v1181 = vadd.f32 %v623, 0.0
    %v1182 = vadd.f32 %v628, 0.0
    %v1183 = vadd.f32 %v633, 0.0
    %v1184 = vadd.f32 %v638, 0.0
    %v1185 = vadd.f32 %v643, 0.0
    %v1186 = vadd.f32 %v648, 0.0
    %v1187 = vadd.f32 %v653, 0.0
    %v1188 = vadd.f32 %v658, 0.0
    %v1189 = vadd.f32 %v663, 0.0
    %v1190 = vadd.f32 %v668, 0.0
    %v1191 = vadd.f32 %v1159, %v1065
    %v1192 = vadd.f32 %v1160, %v1068
    %v1193 = vadd.f32 %v1161, %v1071
    %v1194 = vadd.f32 %v1162, %v1074
    %v1195 = vadd.f32 %v1163, %v1077
    %v1196 = vadd.f32 %v1164, %v1080
    %v1197 = vadd.f32 %v1165, %v1083
    %v1198 = vadd.f32 %v1166, %v1086
    %v1199 = vadd.f32 %v1167, %v1089
    %v1200 = vadd.f32 %v1168, %v1092
    %v1201 = vadd.f32 %v1169, %v1095
    %v1202 = vadd.f32 %v1170, %v1098
    %v1203 = vadd.f32 %v1171, %v1101
    %v1204 = vadd.f32 %v1172, %v1104
    %v1205 = vadd.f32 %v1173, %v1107
    %v1206 = vadd.f32 %v1174, %v1110
    %v1207 = vadd.f32 %v1175, %v1113
    %v1208 = vadd.f32 %v1176, %v1116
    %v1209 = vadd.f32 %v1177, %v1119
    %v1210 = vadd.f32 %v1178, %v1122
    %v1211 = vadd.f32 %v1179, %v1125
    %v1212 = vadd.f32 %v1180, %v1128
    %v1213 = vadd.f32 %v1181, %v1131
    %v1214 = vadd.f32 %v1182, %v1134
    %v1215 = vadd.f32 %v1183, %v1137
    %v1216 = vadd.f32 %v1184, %v1140
    %v1217 = vadd.f32 %v1185, %v1143
    %v1218 = vadd.f32 %v1186, %v1146
    %v1219 = vadd.f32 %v1187, %v1149
    %v1220 = vadd.f32 %v1188, %v1152
    %v1221 = vadd.f32 %v1189, %v1155
    %v1222 = vadd.f32 %v1190, %v1158
    %v1223 = vsub.f32 0.0, %v1191
    %v1224 = vsub.f32 0.0, %v1192
    %v1225 = vsub.f32 0.0, %v1193
    %v1226 = vsub.f32 0.0, %v1194
    %v1227 = vsub.f32 0.0, %v1195
    %v1228 = vsub.f32 0.0, %v1196
    %v1229 = vsub.f32 0.0, %v1197
    %v1230 = vsub.f32 0.0, %v1198
    %v1231 = vsub.f32 0.0, %v1199
    %v1232 = vsub.f32 0.0, %v1200
    %v1233 = vsub.f32 0.0, %v1201
    %v1234 = vsub.f32 0.0, %v1202
    %v1235 = vsub.f32 0.0, %v1203
    %v1236 = vsub.f32 0.0, %v1204
    %v1237 = vsub.f32 0.0, %v1205
    %v1238 = vsub.f32 0.0, %v1206
    %v1239 = vsub.f32 0.0, %v1207
    %v1240 = vsub.f32 0.0, %v1208
    %v1241 = vsub.f32 0.0, %v1209
    %v1242 = vsub.f32 0.0, %v1210
    %v1243 = vsub.f32 0.0, %v1211
    %v1244 = vsub.f32 0.0, %v1212
    %v1245 = vsub.f32 0.0, %v1213
    %v1246 = vsub.f32 0.0, %v1214
    %v1247 = vsub.f32 0.0, %v1215
    %v1248 = vsub.f32 0.0, %v1216
    %v1249 = vsub.f32 0.0, %v1217
    %v1250 = vsub.f32 0.0, %v1218
    %v1251 = vsub.f32 0.0, %v1219
    %v1252 = vsub.f32 0.0, %v1220
    %v1253 = vsub.f32 0.0, %v1221
    %v1254 = vsub.f32 0.0, %v1222
    %v1287 = vcombine.high %v1223, %v1223
    %v1289 = vunpack.c.l.s4 1966171168
    %v1290 = vunpack.c.0.s8 %v1289
    %v1291 = vlaneseq
    %v1292 = vshrl.u32 %v1291, 7
    %v1293 = vsub.s32 %v1290, %v1292
    %v1294 = vrot.slane %v1223, %v1293
    %v1296 = vunpack.c.l.s4 1966171168
    %v1297 = vunpack.c.0.s8 %v1296
    %v1298 = vlaneseq
    %v1299 = vshrl.u32 %v1298, 7
    %v1300 = vsub.s32 %v1297, %v1299
    %v1301 = vrot.slane %v1287, %v1300
    %v1302 = vcombine.high %v1294, %v1294
    %v1303 = vcombine.high %v1301, %v1301
    %v1305 = vunpack.c.l.s4 1966171168
    %v1306 = vunpack.c.0.s8 %v1305
    %v1307 = vlaneseq
    %v1308 = vshrl.u32 %v1307, 7
    %v1309 = vsub.s32 %v1306, %v1308
    %v1310 = vrot.slane %v1294, %v1309
    %v1312 = vunpack.c.l.s4 1966171168
    %v1313 = vunpack.c.0.s8 %v1312
    %v1314 = vlaneseq
    %v1315 = vshrl.u32 %v1314, 7
    %v1316 = vsub.s32 %v1313, %v1315
    %v1317 = vrot.slane %v1301, %v1316
    %v1319 = vunpack.c.l.s4 1966171168
    %v1320 = vunpack.c.0.s8 %v1319
    %v1321 = vlaneseq
    %v1322 = vshrl.u32 %v1321, 7
    %v1323 = vsub.s32 %v1320, %v1322
    %v1324 = vrot.slane %v1302, %v1323
    %v1326 = vunpack.c.l.s4 1966171168
    %v1327 = vunpack.c.0.s8 %v1326
    %v1328 = vlaneseq
    %v1329 = vshrl.u32 %v1328, 7
    %v1330 = vsub.s32 %v1327, %v1329
    %v1331 = vrot.slane %v1303, %v1330
    %v1332 = vcombine.high %v1310, %v1310
    %v1333 = vcombine.high %v1317, %v1317
    %v1334 = vcombine.high %v1324, %v1324
    %v1335 = vcombine.high %v1331, %v1331
    %v1336 = vcombine.high %v1224, %v1224
    %v1338 = vunpack.c.l.s4 1966171168
    %v1339 = vunpack.c.0.s8 %v1338
    %v1340 = vlaneseq
    %v1341 = vshrl.u32 %v1340, 7
    %v1342 = vsub.s32 %v1339, %v1341
    %v1343 = vrot.slane %v1224, %v1342
    %v1345 = vunpack.c.l.s4 1966171168
    %v1346 = vunpack.c.0.s8 %v1345
    %v1347 = vlaneseq
    %v1348 = vshrl.u32 %v1347, 7
    %v1349 = vsub.s32 %v1346, %v1348
    %v1350 = vrot.slane %v1336, %v1349
    %v1351 = vcombine.high %v1343, %v1343
    %v1352 = vcombine.high %v1350, %v1350
    %v1354 = vunpack.c.l.s4 1966171168
    %v1355 = vunpack.c.0.s8 %v1354
    %v1356 = vlaneseq
    %v1357 = vshrl.u32 %v1356, 7
    %v1358 = vsub.s32 %v1355, %v1357
    %v1359 = vrot.slane %v1343, %v1358
    %v1361 = vunpack.c.l.s4 1966171168
    %v1362 = vunpack.c.0.s8 %v1361
    %v1363 = vlaneseq
    %v1364 = vshrl.u32 %v1363, 7
    %v1365 = vsub.s32 %v1362, %v1364
    %v1366 = vrot.slane %v1350, %v1365
    %v1368 = vunpack.c.l.s4 1966171168
    %v1369 = vunpack.c.0.s8 %v1368
    %v1370 = vlaneseq
    %v1371 = vshrl.u32 %v1370, 7
    %v1372 = vsub.s32 %v1369, %v1371
    %v1373 = vrot.slane %v1351, %v1372
    %v1375 = vunpack.c.l.s4 1966171168
    %v1376 = vunpack.c.0.s8 %v1375
    %v1377 = vlaneseq
    %v1378 = vshrl.u32 %v1377, 7
    %v1379 = vsub.s32 %v1376, %v1378
    %v1380 = vrot.slane %v1352, %v1379
    %v1381 = vcombine.high %v1359, %v1359
    %v1382 = vcombine.high %v1366, %v1366
    %v1383 = vcombine.high %v1373, %v1373
    %v1384 = vcombine.high %v1380, %v1380
    %v1385 = vcombine.high %v1225, %v1225
    %v1387 = vunpack.c.l.s4 1966171168
    %v1388 = vunpack.c.0.s8 %v1387
    %v1389 = vlaneseq
    %v1390 = vshrl.u32 %v1389, 7
    %v1391 = vsub.s32 %v1388, %v1390
    %v1392 = vrot.slane %v1225, %v1391
    %v1394 = vunpack.c.l.s4 1966171168
    %v1395 = vunpack.c.0.s8 %v1394
    %v1396 = vlaneseq
    %v1397 = vshrl.u32 %v1396, 7
    %v1398 = vsub.s32 %v1395, %v1397
    %v1399 = vrot.slane %v1385, %v1398
    %v1400 = vcombine.high %v1392, %v1392
    %v1401 = vcombine.high %v1399, %v1399
    %v1403 = vunpack.c.l.s4 1966171168
    %v1404 = vunpack.c.0.s8 %v1403
    %v1405 = vlaneseq
    %v1406 = vshrl.u32 %v1405, 7
    %v1407 = vsub.s32 %v1404, %v1406
    %v1408 = vrot.slane %v1392, %v1407
    %v1410 = vunpack.c.l.s4 1966171168
    %v1411 = vunpack.c.0.s8 %v1410
    %v1412 = vlaneseq
    %v1413 = vshrl.u32 %v1412, 7
    %v1414 = vsub.s32 %v1411, %v1413
    %v1415 = vrot.slane %v1399, %v1414
    %v1417 = vunpack.c.l.s4 1966171168
    %v1418 = vunpack.c.0.s8 %v1417
    %v1419 = vlaneseq
    %v1420 = vshrl.u32 %v1419, 7
    %v1421 = vsub.s32 %v1418, %v1420
    %v1422 = vrot.slane %v1400, %v1421
    %v1424 = vunpack.c.l.s4 1966171168
    %v1425 = vunpack.c.0.s8 %v1424
    %v1426 = vlaneseq
    %v1427 = vshrl.u32 %v1426, 7
    %v1428 = vsub.s32 %v1425, %v1427
    %v1429 = vrot.slane %v1401, %v1428
    %v1430 = vcombine.high %v1408, %v1408
    %v1431 = vcombine.high %v1415, %v1415
    %v1432 = vcombine.high %v1422, %v1422
    %v1433 = vcombine.high %v1429, %v1429
    %v1434 = vcombine.high %v1226, %v1226
    %v1436 = vunpack.c.l.s4 1966171168
    %v1437 = vunpack.c.0.s8 %v1436
    %v1438 = vlaneseq
    %v1439 = vshrl.u32 %v1438, 7
    %v1440 = vsub.s32 %v1437, %v1439
    %v1441 = vrot.slane %v1226, %v1440
    %v1443 = vunpack.c.l.s4 1966171168
    %v1444 = vunpack.c.0.s8 %v1443
    %v1445 = vlaneseq
    %v1446 = vshrl.u32 %v1445, 7
    %v1447 = vsub.s32 %v1444, %v1446
    %v1448 = vrot.slane %v1434, %v1447
    %v1449 = vcombine.high %v1441, %v1441
    %v1450 = vcombine.high %v1448, %v1448
    %v1452 = vunpack.c.l.s4 1966171168
    %v1453 = vunpack.c.0.s8 %v1452
    %v1454 = vlaneseq
    %v1455 = vshrl.u32 %v1454, 7
    %v1456 = vsub.s32 %v1453, %v1455
    %v1457 = vrot.slane %v1441, %v1456
    %v1459 = vunpack.c.l.s4 1966171168
    %v1460 = vunpack.c.0.s8 %v1459
    %v1461 = vlaneseq
    %v1462 = vshrl.u32 %v1461, 7
    %v1463 = vsub.s32 %v1460, %v1462
    %v1464 = vrot.slane %v1448, %v1463
    %v1466 = vunpack.c.l.s4 1966171168
    %v1467 = vunpack.c.0.s8 %v1466
    %v1468 = vlaneseq
    %v1469 = vshrl.u32 %v1468, 7
    %v1470 = vsub.s32 %v1467, %v1469
    %v1471 = vrot.slane %v1449, %v1470
    %v1473 = vunpack.c.l.s4 1966171168
    %v1474 = vunpack.c.0.s8 %v1473
    %v1475 = vlaneseq
    %v1476 = vshrl.u32 %v1475, 7
    %v1477 = vsub.s32 %v1474, %v1476
    %v1478 = vrot.slane %v1450, %v1477
    %v1479 = vcombine.high %v1457, %v1457
    %v1480 = vcombine.high %v1464, %v1464
    %v1481 = vcombine.high %v1471, %v1471
    %v1482 = vcombine.high %v1478, %v1478
    %v1483 = vcombine.high %v1227, %v1227
    %v1485 = vunpack.c.l.s4 1966171168
    %v1486 = vunpack.c.0.s8 %v1485
    %v1487 = vlaneseq
    %v1488 = vshrl.u32 %v1487, 7
    %v1489 = vsub.s32 %v1486, %v1488
    %v1490 = vrot.slane %v1227, %v1489
    %v1492 = vunpack.c.l.s4 1966171168
    %v1493 = vunpack.c.0.s8 %v1492
    %v1494 = vlaneseq
    %v1495 = vshrl.u32 %v1494, 7
    %v1496 = vsub.s32 %v1493, %v1495
    %v1497 = vrot.slane %v1483, %v1496
    %v1498 = vcombine.high %v1490, %v1490
    %v1499 = vcombine.high %v1497, %v1497
    %v1501 = vunpack.c.l.s4 1966171168
    %v1502 = vunpack.c.0.s8 %v1501
    %v1503 = vlaneseq
    %v1504 = vshrl.u32 %v1503, 7
    %v1505 = vsub.s32 %v1502, %v1504
    %v1506 = vrot.slane %v1490, %v1505
    %v1508 = vunpack.c.l.s4 1966171168
    %v1509 = vunpack.c.0.s8 %v1508
    %v1510 = vlaneseq
    %v1511 = vshrl.u32 %v1510, 7
    %v1512 = vsub.s32 %v1509, %v1511
    %v1513 = vrot.slane %v1497, %v1512
    %v1515 = vunpack.c.l.s4 1966171168
    %v1516 = vunpack.c.0.s8 %v1515
    %v1517 = vlaneseq
    %v1518 = vshrl.u32 %v1517, 7
    %v1519 = vsub.s32 %v1516, %v1518
    %v1520 = vrot.slane %v1498, %v1519
    %v1522 = vunpack.c.l.s4 1966171168
    %v1523 = vunpack.c.0.s8 %v1522
    %v1524 = vlaneseq
    %v1525 = vshrl.u32 %v1524, 7
    %v1526 = vsub.s32 %v1523, %v1525
    %v1527 = vrot.slane %v1499, %v1526
    %v1528 = vcombine.high %v1506, %v1506
    %v1529 = vcombine.high %v1513, %v1513
    %v1530 = vcombine.high %v1520, %v1520
    %v1531 = vcombine.high %v1527, %v1527
    %v1532 = vcombine.high %v1228, %v1228
    %v1534 = vunpack.c.l.s4 1966171168
    %v1535 = vunpack.c.0.s8 %v1534
    %v1536 = vlaneseq
    %v1537 = vshrl.u32 %v1536, 7
    %v1538 = vsub.s32 %v1535, %v1537
    %v1539 = vrot.slane %v1228, %v1538
    %v1541 = vunpack.c.l.s4 1966171168
    %v1542 = vunpack.c.0.s8 %v1541
    %v1543 = vlaneseq
    %v1544 = vshrl.u32 %v1543, 7
    %v1545 = vsub.s32 %v1542, %v1544
    %v1546 = vrot.slane %v1532, %v1545
    %v1547 = vcombine.high %v1539, %v1539
    %v1548 = vcombine.high %v1546, %v1546
    %v1550 = vunpack.c.l.s4 1966171168
    %v1551 = vunpack.c.0.s8 %v1550
    %v1552 = vlaneseq
    %v1553 = vshrl.u32 %v1552, 7
    %v1554 = vsub.s32 %v1551, %v1553
    %v1555 = vrot.slane %v1539, %v1554
    %v1557 = vunpack.c.l.s4 1966171168
    %v1558 = vunpack.c.0.s8 %v1557
    %v1559 = vlaneseq
    %v1560 = vshrl.u32 %v1559, 7
    %v1561 = vsub.s32 %v1558, %v1560
    %v1562 = vrot.slane %v1546, %v1561
    %v1564 = vunpack.c.l.s4 1966171168
    %v1565 = vunpack.c.0.s8 %v1564
    %v1566 = vlaneseq
    %v1567 = vshrl.u32 %v1566, 7
    %v1568 = vsub.s32 %v1565, %v1567
    %v1569 = vrot.slane %v1547, %v1568
    %v1571 = vunpack.c.l.s4 1966171168
    %v1572 = vunpack.c.0.s8 %v1571
    %v1573 = vlaneseq
    %v1574 = vshrl.u32 %v1573, 7
    %v1575 = vsub.s32 %v1572, %v1574
    %v1576 = vrot.slane %v1548, %v1575
    %v1577 = vcombine.high %v1555, %v1555
    %v1578 = vcombine.high %v1562, %v1562
    %v1579 = vcombine.high %v1569, %v1569
    %v1580 = vcombine.high %v1576, %v1576
    %v1581 = vcombine.high %v1229, %v1229
    %v1583 = vunpack.c.l.s4 1966171168
    %v1584 = vunpack.c.0.s8 %v1583
    %v1585 = vlaneseq
    %v1586 = vshrl.u32 %v1585, 7
    %v1587 = vsub.s32 %v1584, %v1586
    %v1588 = vrot.slane %v1229, %v1587
    %v1590 = vunpack.c.l.s4 1966171168
    %v1591 = vunpack.c.0.s8 %v1590
    %v1592 = vlaneseq
    %v1593 = vshrl.u32 %v1592, 7
    %v1594 = vsub.s32 %v1591, %v1593
    %v1595 = vrot.slane %v1581, %v1594
    %v1596 = vcombine.high %v1588, %v1588
    %v1597 = vcombine.high %v1595, %v1595
    %v1599 = vunpack.c.l.s4 1966171168
    %v1600 = vunpack.c.0.s8 %v1599
    %v1601 = vlaneseq
    %v1602 = vshrl.u32 %v1601, 7
    %v1603 = vsub.s32 %v1600, %v1602
    %v1604 = vrot.slane %v1588, %v1603
    %v1606 = vunpack.c.l.s4 1966171168
    %v1607 = vunpack.c.0.s8 %v1606
    %v1608 = vlaneseq
    %v1609 = vshrl.u32 %v1608, 7
    %v1610 = vsub.s32 %v1607, %v1609
    %v1611 = vrot.slane %v1595, %v1610
    %v1613 = vunpack.c.l.s4 1966171168
    %v1614 = vunpack.c.0.s8 %v1613
    %v1615 = vlaneseq
    %v1616 = vshrl.u32 %v1615, 7
    %v1617 = vsub.s32 %v1614, %v1616
    %v1618 = vrot.slane %v1596, %v1617
    %v1620 = vunpack.c.l.s4 1966171168
    %v1621 = vunpack.c.0.s8 %v1620
    %v1622 = vlaneseq
    %v1623 = vshrl.u32 %v1622, 7
    %v1624 = vsub.s32 %v1621, %v1623
    %v1625 = vrot.slane %v1597, %v1624
    %v1626 = vcombine.high %v1604, %v1604
    %v1627 = vcombine.high %v1611, %v1611
    %v1628 = vcombine.high %v1618, %v1618
    %v1629 = vcombine.high %v1625, %v1625
    %v1630 = vcombine.high %v1230, %v1230
    %v1632 = vunpack.c.l.s4 1966171168
    %v1633 = vunpack.c.0.s8 %v1632
    %v1634 = vlaneseq
    %v1635 = vshrl.u32 %v1634, 7
    %v1636 = vsub.s32 %v1633, %v1635
    %v1637 = vrot.slane %v1230, %v1636
    %v1639 = vunpack.c.l.s4 1966171168
    %v1640 = vunpack.c.0.s8 %v1639
    %v1641 = vlaneseq
    %v1642 = vshrl.u32 %v1641, 7
    %v1643 = vsub.s32 %v1640, %v1642
    %v1644 = vrot.slane %v1630, %v1643
    %v1645 = vcombine.high %v1637, %v1637
    %v1646 = vcombine.high %v1644, %v1644
    %v1648 = vunpack.c.l.s4 1966171168
    %v1649 = vunpack.c.0.s8 %v1648
    %v1650 = vlaneseq
    %v1651 = vshrl.u32 %v1650, 7
    %v1652 = vsub.s32 %v1649, %v1651
    %v1653 = vrot.slane %v1637, %v1652
    %v1655 = vunpack.c.l.s4 1966171168
    %v1656 = vunpack.c.0.s8 %v1655
    %v1657 = vlaneseq
    %v1658 = vshrl.u32 %v1657, 7
    %v1659 = vsub.s32 %v1656, %v1658
    %v1660 = vrot.slane %v1644, %v1659
    %v1662 = vunpack.c.l.s4 1966171168
    %v1663 = vunpack.c.0.s8 %v1662
    %v1664 = vlaneseq
    %v1665 = vshrl.u32 %v1664, 7
    %v1666 = vsub.s32 %v1663, %v1665
    %v1667 = vrot.slane %v1645, %v1666
    %v1669 = vunpack.c.l.s4 1966171168
    %v1670 = vunpack.c.0.s8 %v1669
    %v1671 = vlaneseq
    %v1672 = vshrl.u32 %v1671, 7
    %v1673 = vsub.s32 %v1670, %v1672
    %v1674 = vrot.slane %v1646, %v1673
    %v1675 = vcombine.high %v1653, %v1653
    %v1676 = vcombine.high %v1660, %v1660
    %v1677 = vcombine.high %v1667, %v1667
    %v1678 = vcombine.high %v1674, %v1674
    %v1679 = vcombine.high %v1231, %v1231
    %v1681 = vunpack.c.l.s4 1966171168
    %v1682 = vunpack.c.0.s8 %v1681
    %v1683 = vlaneseq
    %v1684 = vshrl.u32 %v1683, 7
    %v1685 = vsub.s32 %v1682, %v1684
    %v1686 = vrot.slane %v1231, %v1685
    %v1688 = vunpack.c.l.s4 1966171168
    %v1689 = vunpack.c.0.s8 %v1688
    %v1690 = vlaneseq
    %v1691 = vshrl.u32 %v1690, 7
    %v1692 = vsub.s32 %v1689, %v1691
    %v1693 = vrot.slane %v1679, %v1692
    %v1694 = vcombine.high %v1686, %v1686
    %v1695 = vcombine.high %v1693, %v1693
    %v1697 = vunpack.c.l.s4 1966171168
    %v1698 = vunpack.c.0.s8 %v1697
    %v1699 = vlaneseq
    %v1700 = vshrl.u32 %v1699, 7
    %v1701 = vsub.s32 %v1698, %v1700
    %v1702 = vrot.slane %v1686, %v1701
    %v1704 = vunpack.c.l.s4 1966171168
    %v1705 = vunpack.c.0.s8 %v1704
    %v1706 = vlaneseq
    %v1707 = vshrl.u32 %v1706, 7
    %v1708 = vsub.s32 %v1705, %v1707
    %v1709 = vrot.slane %v1693, %v1708
    %v1711 = vunpack.c.l.s4 1966171168
    %v1712 = vunpack.c.0.s8 %v1711
    %v1713 = vlaneseq
    %v1714 = vshrl.u32 %v1713, 7
    %v1715 = vsub.s32 %v1712, %v1714
    %v1716 = vrot.slane %v1694, %v1715
    %v1718 = vunpack.c.l.s4 1966171168
    %v1719 = vunpack.c.0.s8 %v1718
    %v1720 = vlaneseq
    %v1721 = vshrl.u32 %v1720, 7
    %v1722 = vsub.s32 %v1719, %v1721
    %v1723 = vrot.slane %v1695, %v1722
    %v1724 = vcombine.high %v1702, %v1702
    %v1725 = vcombine.high %v1709, %v1709
    %v1726 = vcombine.high %v1716, %v1716
    %v1727 = vcombine.high %v1723, %v1723
    %v1728 = vcombine.high %v1232, %v1232
    %v1730 = vunpack.c.l.s4 1966171168
    %v1731 = vunpack.c.0.s8 %v1730
    %v1732 = vlaneseq
    %v1733 = vshrl.u32 %v1732, 7
    %v1734 = vsub.s32 %v1731, %v1733
    %v1735 = vrot.slane %v1232, %v1734
    %v1737 = vunpack.c.l.s4 1966171168
    %v1738 = vunpack.c.0.s8 %v1737
    %v1739 = vlaneseq
    %v1740 = vshrl.u32 %v1739, 7
    %v1741 = vsub.s32 %v1738, %v1740
    %v1742 = vrot.slane %v1728, %v1741
    %v1743 = vcombine.high %v1735, %v1735
    %v1744 = vcombine.high %v1742, %v1742
    %v1746 = vunpack.c.l.s4 1966171168
    %v1747 = vunpack.c.0.s8 %v1746
    %v1748 = vlaneseq
    %v1749 = vshrl.u32 %v1748, 7
    %v1750 = vsub.s32 %v1747, %v1749
    %v1751 = vrot.slane %v1735, %v1750
    %v1753 = vunpack.c.l.s4 1966171168
    %v1754 = vunpack.c.0.s8 %v1753
    %v1755 = vlaneseq
    %v1756 = vshrl.u32 %v1755, 7
    %v1757 = vsub.s32 %v1754, %v1756
    %v1758 = vrot.slane %v1742, %v1757
    %v1760 = vunpack.c.l.s4 1966171168
    %v1761 = vunpack.c.0.s8 %v1760
    %v1762 = vlaneseq
    %v1763 = vshrl.u32 %v1762, 7
    %v1764 = vsub.s32 %v1761, %v1763
    %v1765 = vrot.slane %v1743, %v1764
    %v1767 = vunpack.c.l.s4 1966171168
    %v1768 = vunpack.c.0.s8 %v1767
    %v1769 = vlaneseq
    %v1770 = vshrl.u32 %v1769, 7
    %v1771 = vsub.s32 %v1768, %v1770
    %v1772 = vrot.slane %v1744, %v1771
    %v1773 = vcombine.high %v1751, %v1751
    %v1774 = vcombine.high %v1758, %v1758
    %v1775 = vcombine.high %v1765, %v1765
    %v1776 = vcombine.high %v1772, %v1772
    %v1777 = vcombine.high %v1233, %v1233
    %v1779 = vunpack.c.l.s4 1966171168
    %v1780 = vunpack.c.0.s8 %v1779
    %v1781 = vlaneseq
    %v1782 = vshrl.u32 %v1781, 7
    %v1783 = vsub.s32 %v1780, %v1782
    %v1784 = vrot.slane %v1233, %v1783
    %v1786 = vunpack.c.l.s4 1966171168
    %v1787 = vunpack.c.0.s8 %v1786
    %v1788 = vlaneseq
    %v1789 = vshrl.u32 %v1788, 7
    %v1790 = vsub.s32 %v1787, %v1789
    %v1791 = vrot.slane %v1777, %v1790
    %v1792 = vcombine.high %v1784, %v1784
    %v1793 = vcombine.high %v1791, %v1791
    %v1795 = vunpack.c.l.s4 1966171168
    %v1796 = vunpack.c.0.s8 %v1795
    %v1797 = vlaneseq
    %v1798 = vshrl.u32 %v1797, 7
    %v1799 = vsub.s32 %v1796, %v1798
    %v1800 = vrot.slane %v1784, %v1799
    %v1802 = vunpack.c.l.s4 1966171168
    %v1803 = vunpack.c.0.s8 %v1802
    %v1804 = vlaneseq
    %v1805 = vshrl.u32 %v1804, 7
    %v1806 = vsub.s32 %v1803, %v1805
    %v1807 = vrot.slane %v1791, %v1806
    %v1809 = vunpack.c.l.s4 1966171168
    %v1810 = vunpack.c.0.s8 %v1809
    %v1811 = vlaneseq
    %v1812 = vshrl.u32 %v1811, 7
    %v1813 = vsub.s32 %v1810, %v1812
    %v1814 = vrot.slane %v1792, %v1813
    %v1816 = vunpack.c.l.s4 1966171168
    %v1817 = vunpack.c.0.s8 %v1816
    %v1818 = vlaneseq
    %v1819 = vshrl.u32 %v1818, 7
    %v1820 = vsub.s32 %v1817, %v1819
    %v1821 = vrot.slane %v1793, %v1820
    %v1822 = vcombine.high %v1800, %v1800
    %v1823 = vcombine.high %v1807, %v1807
    %v1824 = vcombine.high %v1814, %v1814
    %v1825 = vcombine.high %v1821, %v1821
    %v1826 = vcombine.high %v1234, %v1234
    %v1828 = vunpack.c.l.s4 1966171168
    %v1829 = vunpack.c.0.s8 %v1828
    %v1830 = vlaneseq
    %v1831 = vshrl.u32 %v1830, 7
    %v1832 = vsub.s32 %v1829, %v1831
    %v1833 = vrot.slane %v1234, %v1832
    %v1835 = vunpack.c.l.s4 1966171168
    %v1836 = vunpack.c.0.s8 %v1835
    %v1837 = vlaneseq
    %v1838 = vshrl.u32 %v1837, 7
    %v1839 = vsub.s32 %v1836, %v1838
    %v1840 = vrot.slane %v1826, %v1839
    %v1841 = vcombine.high %v1833, %v1833
    %v1842 = vcombine.high %v1840, %v1840
    %v1844 = vunpack.c.l.s4 1966171168
    %v1845 = vunpack.c.0.s8 %v1844
    %v1846 = vlaneseq
    %v1847 = vshrl.u32 %v1846, 7
    %v1848 = vsub.s32 %v1845, %v1847
    %v1849 = vrot.slane %v1833, %v1848
    %v1851 = vunpack.c.l.s4 1966171168
    %v1852 = vunpack.c.0.s8 %v1851
    %v1853 = vlaneseq
    %v1854 = vshrl.u32 %v1853, 7
    %v1855 = vsub.s32 %v1852, %v1854
    %v1856 = vrot.slane %v1840, %v1855
    %v1858 = vunpack.c.l.s4 1966171168
    %v1859 = vunpack.c.0.s8 %v1858
    %v1860 = vlaneseq
    %v1861 = vshrl.u32 %v1860, 7
    %v1862 = vsub.s32 %v1859, %v1861
    %v1863 = vrot.slane %v1841, %v1862
    %v1865 = vunpack.c.l.s4 1966171168
    %v1866 = vunpack.c.0.s8 %v1865
    %v1867 = vlaneseq
    %v1868 = vshrl.u32 %v1867, 7
    %v1869 = vsub.s32 %v1866, %v1868
    %v1870 = vrot.slane %v1842, %v1869
    %v1871 = vcombine.high %v1849, %v1849
    %v1872 = vcombine.high %v1856, %v1856
    %v1873 = vcombine.high %v1863, %v1863
    %v1874 = vcombine.high %v1870, %v1870
    %v1875 = vcombine.high %v1235, %v1235
    %v1877 = vunpack.c.l.s4 1966171168
    %v1878 = vunpack.c.0.s8 %v1877
    %v1879 = vlaneseq
    %v1880 = vshrl.u32 %v1879, 7
    %v1881 = vsub.s32 %v1878, %v1880
    %v1882 = vrot.slane %v1235, %v1881
    %v1884 = vunpack.c.l.s4 1966171168
    %v1885 = vunpack.c.0.s8 %v1884
    %v1886 = vlaneseq
    %v1887 = vshrl.u32 %v1886, 7
    %v1888 = vsub.s32 %v1885, %v1887
    %v1889 = vrot.slane %v1875, %v1888
    %v1890 = vcombine.high %v1882, %v1882
    %v1891 = vcombine.high %v1889, %v1889
    %v1893 = vunpack.c.l.s4 1966171168
    %v1894 = vunpack.c.0.s8 %v1893
    %v1895 = vlaneseq
    %v1896 = vshrl.u32 %v1895, 7
    %v1897 = vsub.s32 %v1894, %v1896
    %v1898 = vrot.slane %v1882, %v1897
    %v1900 = vunpack.c.l.s4 1966171168
    %v1901 = vunpack.c.0.s8 %v1900
    %v1902 = vlaneseq
    %v1903 = vshrl.u32 %v1902, 7
    %v1904 = vsub.s32 %v1901, %v1903
    %v1905 = vrot.slane %v1889, %v1904
    %v1907 = vunpack.c.l.s4 1966171168
    %v1908 = vunpack.c.0.s8 %v1907
    %v1909 = vlaneseq
    %v1910 = vshrl.u32 %v1909, 7
    %v1911 = vsub.s32 %v1908, %v1910
    %v1912 = vrot.slane %v1890, %v1911
    %v1914 = vunpack.c.l.s4 1966171168
    %v1915 = vunpack.c.0.s8 %v1914
    %v1916 = vlaneseq
    %v1917 = vshrl.u32 %v1916, 7
    %v1918 = vsub.s32 %v1915, %v1917
    %v1919 = vrot.slane %v1891, %v1918
    %v1920 = vcombine.high %v1898, %v1898
    %v1921 = vcombine.high %v1905, %v1905
    %v1922 = vcombine.high %v1912, %v1912
    %v1923 = vcombine.high %v1919, %v1919
    %v1924 = vcombine.high %v1236, %v1236
    %v1926 = vunpack.c.l.s4 1966171168
    %v1927 = vunpack.c.0.s8 %v1926
    %v1928 = vlaneseq
    %v1929 = vshrl.u32 %v1928, 7
    %v1930 = vsub.s32 %v1927, %v1929
    %v1931 = vrot.slane %v1236, %v1930
    %v1933 = vunpack.c.l.s4 1966171168
    %v1934 = vunpack.c.0.s8 %v1933
    %v1935 = vlaneseq
    %v1936 = vshrl.u32 %v1935, 7
    %v1937 = vsub.s32 %v1934, %v1936
    %v1938 = vrot.slane %v1924, %v1937
    %v1939 = vcombine.high %v1931, %v1931
    %v1940 = vcombine.high %v1938, %v1938
    %v1942 = vunpack.c.l.s4 1966171168
    %v1943 = vunpack.c.0.s8 %v1942
    %v1944 = vlaneseq
    %v1945 = vshrl.u32 %v1944, 7
    %v1946 = vsub.s32 %v1943, %v1945
    %v1947 = vrot.slane %v1931, %v1946
    %v1949 = vunpack.c.l.s4 1966171168
    %v1950 = vunpack.c.0.s8 %v1949
    %v1951 = vlaneseq
    %v1952 = vshrl.u32 %v1951, 7
    %v1953 = vsub.s32 %v1950, %v1952
    %v1954 = vrot.slane %v1938, %v1953
    %v1956 = vunpack.c.l.s4 1966171168
    %v1957 = vunpack.c.0.s8 %v1956
    %v1958 = vlaneseq
    %v1959 = vshrl.u32 %v1958, 7
    %v1960 = vsub.s32 %v1957, %v1959
    %v1961 = vrot.slane %v1939, %v1960
    %v1963 = vunpack.c.l.s4 1966171168
    %v1964 = vunpack.c.0.s8 %v1963
    %v1965 = vlaneseq
    %v1966 = vshrl.u32 %v1965, 7
    %v1967 = vsub.s32 %v1964, %v1966
    %v1968 = vrot.slane %v1940, %v1967
    %v1969 = vcombine.high %v1947, %v1947
    %v1970 = vcombine.high %v1954, %v1954
    %v1971 = vcombine.high %v1961, %v1961
    %v1972 = vcombine.high %v1968, %v1968
    %v1973 = vcombine.high %v1237, %v1237
    %v1975 = vunpack.c.l.s4 1966171168
    %v1976 = vunpack.c.0.s8 %v1975
    %v1977 = vlaneseq
    %v1978 = vshrl.u32 %v1977, 7
    %v1979 = vsub.s32 %v1976, %v1978
    %v1980 = vrot.slane %v1237, %v1979
    %v1982 = vunpack.c.l.s4 1966171168
    %v1983 = vunpack.c.0.s8 %v1982
    %v1984 = vlaneseq
    %v1985 = vshrl.u32 %v1984, 7
    %v1986 = vsub.s32 %v1983, %v1985
    %v1987 = vrot.slane %v1973, %v1986
    %v1988 = vcombine.high %v1980, %v1980
    %v1989 = vcombine.high %v1987, %v1987
    %v1991 = vunpack.c.l.s4 1966171168
    %v1992 = vunpack.c.0.s8 %v1991
    %v1993 = vlaneseq
    %v1994 = vshrl.u32 %v1993, 7
    %v1995 = vsub.s32 %v1992, %v1994
    %v1996 = vrot.slane %v1980, %v1995
    %v1998 = vunpack.c.l.s4 1966171168
    %v1999 = vunpack.c.0.s8 %v1998
    %v2000 = vlaneseq
    %v2001 = vshrl.u32 %v2000, 7
    %v2002 = vsub.s32 %v1999, %v2001
    %v2003 = vrot.slane %v1987, %v2002
    %v2005 = vunpack.c.l.s4 1966171168
    %v2006 = vunpack.c.0.s8 %v2005
    %v2007 = vlaneseq
    %v2008 = vshrl.u32 %v2007, 7
    %v2009 = vsub.s32 %v2006, %v2008
    %v2010 = vrot.slane %v1988, %v2009
    %v2012 = vunpack.c.l.s4 1966171168
    %v2013 = vunpack.c.0.s8 %v2012
    %v2014 = vlaneseq
    %v2015 = vshrl.u32 %v2014, 7
    %v2016 = vsub.s32 %v2013, %v2015
    %v2017 = vrot.slane %v1989, %v2016
    %v2018 = vcombine.high %v1996, %v1996
    %v2019 = vcombine.high %v2003, %v2003
    %v2020 = vcombine.high %v2010, %v2010
    %v2021 = vcombine.high %v2017, %v2017
    %v2022 = vcombine.high %v1238, %v1238
    %v2024 = vunpack.c.l.s4 1966171168
    %v2025 = vunpack.c.0.s8 %v2024
    %v2026 = vlaneseq
    %v2027 = vshrl.u32 %v2026, 7
    %v2028 = vsub.s32 %v2025, %v2027
    %v2029 = vrot.slane %v1238, %v2028
    %v2031 = vunpack.c.l.s4 1966171168
    %v2032 = vunpack.c.0.s8 %v2031
    %v2033 = vlaneseq
    %v2034 = vshrl.u32 %v2033, 7
    %v2035 = vsub.s32 %v2032, %v2034
    %v2036 = vrot.slane %v2022, %v2035
    %v2037 = vcombine.high %v2029, %v2029
    %v2038 = vcombine.high %v2036, %v2036
    %v2040 = vunpack.c.l.s4 1966171168
    %v2041 = vunpack.c.0.s8 %v2040
    %v2042 = vlaneseq
    %v2043 = vshrl.u32 %v2042, 7
    %v2044 = vsub.s32 %v2041, %v2043
    %v2045 = vrot.slane %v2029, %v2044
    %v2047 = vunpack.c.l.s4 1966171168
    %v2048 = vunpack.c.0.s8 %v2047
    %v2049 = vlaneseq
    %v2050 = vshrl.u32 %v2049, 7
    %v2051 = vsub.s32 %v2048, %v2050
    %v2052 = vrot.slane %v2036, %v2051
    %v2054 = vunpack.c.l.s4 1966171168
    %v2055 = vunpack.c.0.s8 %v2054
    %v2056 = vlaneseq
    %v2057 = vshrl.u32 %v2056, 7
    %v2058 = vsub.s32 %v2055, %v2057
    %v2059 = vrot.slane %v2037, %v2058
    %v2061 = vunpack.c.l.s4 1966171168
    %v2062 = vunpack.c.0.s8 %v2061
    %v2063 = vlaneseq
    %v2064 = vshrl.u32 %v2063, 7
    %v2065 = vsub.s32 %v2062, %v2064
    %v2066 = vrot.slane %v2038, %v2065
    %v2067 = vcombine.high %v2045, %v2045
    %v2068 = vcombine.high %v2052, %v2052
    %v2069 = vcombine.high %v2059, %v2059
    %v2070 = vcombine.high %v2066, %v2066
    %v2071 = vcombine.high %v1239, %v1239
    %v2073 = vunpack.c.l.s4 1966171168
    %v2074 = vunpack.c.0.s8 %v2073
    %v2075 = vlaneseq
    %v2076 = vshrl.u32 %v2075, 7
    %v2077 = vsub.s32 %v2074, %v2076
    %v2078 = vrot.slane %v1239, %v2077
    %v2080 = vunpack.c.l.s4 1966171168
    %v2081 = vunpack.c.0.s8 %v2080
    %v2082 = vlaneseq
    %v2083 = vshrl.u32 %v2082, 7
    %v2084 = vsub.s32 %v2081, %v2083
    %v2085 = vrot.slane %v2071, %v2084
    %v2086 = vcombine.high %v2078, %v2078
    %v2087 = vcombine.high %v2085, %v2085
    %v2089 = vunpack.c.l.s4 1966171168
    %v2090 = vunpack.c.0.s8 %v2089
    %v2091 = vlaneseq
    %v2092 = vshrl.u32 %v2091, 7
    %v2093 = vsub.s32 %v2090, %v2092
    %v2094 = vrot.slane %v2078, %v2093
    %v2096 = vunpack.c.l.s4 1966171168
    %v2097 = vunpack.c.0.s8 %v2096
    %v2098 = vlaneseq
    %v2099 = vshrl.u32 %v2098, 7
    %v2100 = vsub.s32 %v2097, %v2099
    %v2101 = vrot.slane %v2085, %v2100
    %v2103 = vunpack.c.l.s4 1966171168
    %v2104 = vunpack.c.0.s8 %v2103
    %v2105 = vlaneseq
    %v2106 = vshrl.u32 %v2105, 7
    %v2107 = vsub.s32 %v2104, %v2106
    %v2108 = vrot.slane %v2086, %v2107
    %v2110 = vunpack.c.l.s4 1966171168
    %v2111 = vunpack.c.0.s8 %v2110
    %v2112 = vlaneseq
    %v2113 = vshrl.u32 %v2112, 7
    %v2114 = vsub.s32 %v2111, %v2113
    %v2115 = vrot.slane %v2087, %v2114
    %v2116 = vcombine.high %v2094, %v2094
    %v2117 = vcombine.high %v2101, %v2101
    %v2118 = vcombine.high %v2108, %v2108
    %v2119 = vcombine.high %v2115, %v2115
    %v2120 = vcombine.high %v1240, %v1240
    %v2122 = vunpack.c.l.s4 1966171168
    %v2123 = vunpack.c.0.s8 %v2122
    %v2124 = vlaneseq
    %v2125 = vshrl.u32 %v2124, 7
    %v2126 = vsub.s32 %v2123, %v2125
    %v2127 = vrot.slane %v1240, %v2126
    %v2129 = vunpack.c.l.s4 1966171168
    %v2130 = vunpack.c.0.s8 %v2129
    %v2131 = vlaneseq
    %v2132 = vshrl.u32 %v2131, 7
    %v2133 = vsub.s32 %v2130, %v2132
    %v2134 = vrot.slane %v2120, %v2133
    %v2135 = vcombine.high %v2127, %v2127
    %v2136 = vcombine.high %v2134, %v2134
    %v2138 = vunpack.c.l.s4 1966171168
    %v2139 = vunpack.c.0.s8 %v2138
    %v2140 = vlaneseq
    %v2141 = vshrl.u32 %v2140, 7
    %v2142 = vsub.s32 %v2139, %v2141
    %v2143 = vrot.slane %v2127, %v2142
    %v2145 = vunpack.c.l.s4 1966171168
    %v2146 = vunpack.c.0.s8 %v2145
    %v2147 = vlaneseq
    %v2148 = vshrl.u32 %v2147, 7
    %v2149 = vsub.s32 %v2146, %v2148
    %v2150 = vrot.slane %v2134, %v2149
    %v2152 = vunpack.c.l.s4 1966171168
    %v2153 = vunpack.c.0.s8 %v2152
    %v2154 = vlaneseq
    %v2155 = vshrl.u32 %v2154, 7
    %v2156 = vsub.s32 %v2153, %v2155
    %v2157 = vrot.slane %v2135, %v2156
    %v2159 = vunpack.c.l.s4 1966171168
    %v2160 = vunpack.c.0.s8 %v2159
    %v2161 = vlaneseq
    %v2162 = vshrl.u32 %v2161, 7
    %v2163 = vsub.s32 %v2160, %v2162
    %v2164 = vrot.slane %v2136, %v2163
    %v2165 = vcombine.high %v2143, %v2143
    %v2166 = vcombine.high %v2150, %v2150
    %v2167 = vcombine.high %v2157, %v2157
    %v2168 = vcombine.high %v2164, %v2164
    %v2169 = vcombine.high %v1241, %v1241
    %v2171 = vunpack.c.l.s4 1966171168
    %v2172 = vunpack.c.0.s8 %v2171
    %v2173 = vlaneseq
    %v2174 = vshrl.u32 %v2173, 7
    %v2175 = vsub.s32 %v2172, %v2174
    %v2176 = vrot.slane %v1241, %v2175
    %v2178 = vunpack.c.l.s4 1966171168
    %v2179 = vunpack.c.0.s8 %v2178
    %v2180 = vlaneseq
    %v2181 = vshrl.u32 %v2180, 7
    %v2182 = vsub.s32 %v2179, %v2181
    %v2183 = vrot.slane %v2169, %v2182
    %v2184 = vcombine.high %v2176, %v2176
    %v2185 = vcombine.high %v2183, %v2183
    %v2187 = vunpack.c.l.s4 1966171168
    %v2188 = vunpack.c.0.s8 %v2187
    %v2189 = vlaneseq
    %v2190 = vshrl.u32 %v2189, 7
    %v2191 = vsub.s32 %v2188, %v2190
    %v2192 = vrot.slane %v2176, %v2191
    %v2194 = vunpack.c.l.s4 1966171168
    %v2195 = vunpack.c.0.s8 %v2194
    %v2196 = vlaneseq
    %v2197 = vshrl.u32 %v2196, 7
    %v2198 = vsub.s32 %v2195, %v2197
    %v2199 = vrot.slane %v2183, %v2198
    %v2201 = vunpack.c.l.s4 1966171168
    %v2202 = vunpack.c.0.s8 %v2201
    %v2203 = vlaneseq
    %v2204 = vshrl.u32 %v2203, 7
    %v2205 = vsub.s32 %v2202, %v2204
    %v2206 = vrot.slane %v2184, %v2205
    %v2208 = vunpack.c.l.s4 1966171168
    %v2209 = vunpack.c.0.s8 %v2208
    %v2210 = vlaneseq
    %v2211 = vshrl.u32 %v2210, 7
    %v2212 = vsub.s32 %v2209, %v2211
    %v2213 = vrot.slane %v2185, %v2212
    %v2214 = vcombine.high %v2192, %v2192
    %v2215 = vcombine.high %v2199, %v2199
    %v2216 = vcombine.high %v2206, %v2206
    %v2217 = vcombine.high %v2213, %v2213
    %v2218 = vcombine.high %v1242, %v1242
    %v2220 = vunpack.c.l.s4 1966171168
    %v2221 = vunpack.c.0.s8 %v2220
    %v2222 = vlaneseq
    %v2223 = vshrl.u32 %v2222, 7
    %v2224 = vsub.s32 %v2221, %v2223
    %v2225 = vrot.slane %v1242, %v2224
    %v2227 = vunpack.c.l.s4 1966171168
    %v2228 = vunpack.c.0.s8 %v2227
    %v2229 = vlaneseq
    %v2230 = vshrl.u32 %v2229, 7
    %v2231 = vsub.s32 %v2228, %v2230
    %v2232 = vrot.slane %v2218, %v2231
    %v2233 = vcombine.high %v2225, %v2225
    %v2234 = vcombine.high %v2232, %v2232
    %v2236 = vunpack.c.l.s4 1966171168
    %v2237 = vunpack.c.0.s8 %v2236
    %v2238 = vlaneseq
    %v2239 = vshrl.u32 %v2238, 7
    %v2240 = vsub.s32 %v2237, %v2239
    %v2241 = vrot.slane %v2225, %v2240
    %v2243 = vunpack.c.l.s4 1966171168
    %v2244 = vunpack.c.0.s8 %v2243
    %v2245 = vlaneseq
    %v2246 = vshrl.u32 %v2245, 7
    %v2247 = vsub.s32 %v2244, %v2246
    %v2248 = vrot.slane %v2232, %v2247
    %v2250 = vunpack.c.l.s4 1966171168
    %v2251 = vunpack.c.0.s8 %v2250
    %v2252 = vlaneseq
    %v2253 = vshrl.u32 %v2252, 7
    %v2254 = vsub.s32 %v2251, %v2253
    %v2255 = vrot.slane %v2233, %v2254
    %v2257 = vunpack.c.l.s4 1966171168
    %v2258 = vunpack.c.0.s8 %v2257
    %v2259 = vlaneseq
    %v2260 = vshrl.u32 %v2259, 7
    %v2261 = vsub.s32 %v2258, %v2260
    %v2262 = vrot.slane %v2234, %v2261
    %v2263 = vcombine.high %v2241, %v2241
    %v2264 = vcombine.high %v2248, %v2248
    %v2265 = vcombine.high %v2255, %v2255
    %v2266 = vcombine.high %v2262, %v2262
    %v2267 = vcombine.high %v1243, %v1243
    %v2269 = vunpack.c.l.s4 1966171168
    %v2270 = vunpack.c.0.s8 %v2269
    %v2271 = vlaneseq
    %v2272 = vshrl.u32 %v2271, 7
    %v2273 = vsub.s32 %v2270, %v2272
    %v2274 = vrot.slane %v1243, %v2273
    %v2276 = vunpack.c.l.s4 1966171168
    %v2277 = vunpack.c.0.s8 %v2276
    %v2278 = vlaneseq
    %v2279 = vshrl.u32 %v2278, 7
    %v2280 = vsub.s32 %v2277, %v2279
    %v2281 = vrot.slane %v2267, %v2280
    %v2282 = vcombine.high %v2274, %v2274
    %v2283 = vcombine.high %v2281, %v2281
    %v2285 = vunpack.c.l.s4 1966171168
    %v2286 = vunpack.c.0.s8 %v2285
    %v2287 = vlaneseq
    %v2288 = vshrl.u32 %v2287, 7
    %v2289 = vsub.s32 %v2286, %v2288
    %v2290 = vrot.slane %v2274, %v2289
    %v2292 = vunpack.c.l.s4 1966171168
    %v2293 = vunpack.c.0.s8 %v2292
    %v2294 = vlaneseq
    %v2295 = vshrl.u32 %v2294, 7
    %v2296 = vsub.s32 %v2293, %v2295
    %v2297 = vrot.slane %v2281, %v2296
    %v2299 = vunpack.c.l.s4 1966171168
    %v2300 = vunpack.c.0.s8 %v2299
    %v2301 = vlaneseq
    %v2302 = vshrl.u32 %v2301, 7
    %v2303 = vsub.s32 %v2300, %v2302
    %v2304 = vrot.slane %v2282, %v2303
    %v2306 = vunpack.c.l.s4 1966171168
    %v2307 = vunpack.c.0.s8 %v2306
    %v2308 = vlaneseq
    %v2309 = vshrl.u32 %v2308, 7
    %v2310 = vsub.s32 %v2307, %v2309
    %v2311 = vrot.slane %v2283, %v2310
    %v2312 = vcombine.high %v2290, %v2290
    %v2313 = vcombine.high %v2297, %v2297
    %v2314 = vcombine.high %v2304, %v2304
    %v2315 = vcombine.high %v2311, %v2311
    %v2316 = vcombine.high %v1244, %v1244
    %v2318 = vunpack.c.l.s4 1966171168
    %v2319 = vunpack.c.0.s8 %v2318
    %v2320 = vlaneseq
    %v2321 = vshrl.u32 %v2320, 7
    %v2322 = vsub.s32 %v2319, %v2321
    %v2323 = vrot.slane %v1244, %v2322
    %v2325 = vunpack.c.l.s4 1966171168
    %v2326 = vunpack.c.0.s8 %v2325
    %v2327 = vlaneseq
    %v2328 = vshrl.u32 %v2327, 7
    %v2329 = vsub.s32 %v2326, %v2328
    %v2330 = vrot.slane %v2316, %v2329
    %v2331 = vcombine.high %v2323, %v2323
    %v2332 = vcombine.high %v2330, %v2330
    %v2334 = vunpack.c.l.s4 1966171168
    %v2335 = vunpack.c.0.s8 %v2334
    %v2336 = vlaneseq
    %v2337 = vshrl.u32 %v2336, 7
    %v2338 = vsub.s32 %v2335, %v2337
    %v2339 = vrot.slane %v2323, %v2338
    %v2341 = vunpack.c.l.s4 1966171168
    %v2342 = vunpack.c.0.s8 %v2341
    %v2343 = vlaneseq
    %v2344 = vshrl.u32 %v2343, 7
    %v2345 = vsub.s32 %v2342, %v2344
    %v2346 = vrot.slane %v2330, %v2345
    %v2348 = vunpack.c.l.s4 1966171168
    %v2349 = vunpack.c.0.s8 %v2348
    %v2350 = vlaneseq
    %v2351 = vshrl.u32 %v2350, 7
    %v2352 = vsub.s32 %v2349, %v2351
    %v2353 = vrot.slane %v2331, %v2352
    %v2355 = vunpack.c.l.s4 1966171168
    %v2356 = vunpack.c.0.s8 %v2355
    %v2357 = vlaneseq
    %v2358 = vshrl.u32 %v2357, 7
    %v2359 = vsub.s32 %v2356, %v2358
    %v2360 = vrot.slane %v2332, %v2359
    %v2361 = vcombine.high %v2339, %v2339
    %v2362 = vcombine.high %v2346, %v2346
    %v2363 = vcombine.high %v2353, %v2353
    %v2364 = vcombine.high %v2360, %v2360
    %v2365 = vcombine.high %v1245, %v1245
    %v2367 = vunpack.c.l.s4 1966171168
    %v2368 = vunpack.c.0.s8 %v2367
    %v2369 = vlaneseq
    %v2370 = vshrl.u32 %v2369, 7
    %v2371 = vsub.s32 %v2368, %v2370
    %v2372 = vrot.slane %v1245, %v2371
    %v2374 = vunpack.c.l.s4 1966171168
    %v2375 = vunpack.c.0.s8 %v2374
    %v2376 = vlaneseq
    %v2377 = vshrl.u32 %v2376, 7
    %v2378 = vsub.s32 %v2375, %v2377
    %v2379 = vrot.slane %v2365, %v2378
    %v2380 = vcombine.high %v2372, %v2372
    %v2381 = vcombine.high %v2379, %v2379
    %v2383 = vunpack.c.l.s4 1966171168
    %v2384 = vunpack.c.0.s8 %v2383
    %v2385 = vlaneseq
    %v2386 = vshrl.u32 %v2385, 7
    %v2387 = vsub.s32 %v2384, %v2386
    %v2388 = vrot.slane %v2372, %v2387
    %v2390 = vunpack.c.l.s4 1966171168
    %v2391 = vunpack.c.0.s8 %v2390
    %v2392 = vlaneseq
    %v2393 = vshrl.u32 %v2392, 7
    %v2394 = vsub.s32 %v2391, %v2393
    %v2395 = vrot.slane %v2379, %v2394
    %v2397 = vunpack.c.l.s4 1966171168
    %v2398 = vunpack.c.0.s8 %v2397
    %v2399 = vlaneseq
    %v2400 = vshrl.u32 %v2399, 7
    %v2401 = vsub.s32 %v2398, %v2400
    %v2402 = vrot.slane %v2380, %v2401
    %v2404 = vunpack.c.l.s4 1966171168
    %v2405 = vunpack.c.0.s8 %v2404
    %v2406 = vlaneseq
    %v2407 = vshrl.u32 %v2406, 7
    %v2408 = vsub.s32 %v2405, %v2407
    %v2409 = vrot.slane %v2381, %v2408
    %v2410 = vcombine.high %v2388, %v2388
    %v2411 = vcombine.high %v2395, %v2395
    %v2412 = vcombine.high %v2402, %v2402
    %v2413 = vcombine.high %v2409, %v2409
    %v2414 = vcombine.high %v1246, %v1246
    %v2416 = vunpack.c.l.s4 1966171168
    %v2417 = vunpack.c.0.s8 %v2416
    %v2418 = vlaneseq
    %v2419 = vshrl.u32 %v2418, 7
    %v2420 = vsub.s32 %v2417, %v2419
    %v2421 = vrot.slane %v1246, %v2420
    %v2423 = vunpack.c.l.s4 1966171168
    %v2424 = vunpack.c.0.s8 %v2423
    %v2425 = vlaneseq
    %v2426 = vshrl.u32 %v2425, 7
    %v2427 = vsub.s32 %v2424, %v2426
    %v2428 = vrot.slane %v2414, %v2427
    %v2429 = vcombine.high %v2421, %v2421
    %v2430 = vcombine.high %v2428, %v2428
    %v2432 = vunpack.c.l.s4 1966171168
    %v2433 = vunpack.c.0.s8 %v2432
    %v2434 = vlaneseq
    %v2435 = vshrl.u32 %v2434, 7
    %v2436 = vsub.s32 %v2433, %v2435
    %v2437 = vrot.slane %v2421, %v2436
    %v2439 = vunpack.c.l.s4 1966171168
    %v2440 = vunpack.c.0.s8 %v2439
    %v2441 = vlaneseq
    %v2442 = vshrl.u32 %v2441, 7
    %v2443 = vsub.s32 %v2440, %v2442
    %v2444 = vrot.slane %v2428, %v2443
    %v2446 = vunpack.c.l.s4 1966171168
    %v2447 = vunpack.c.0.s8 %v2446
    %v2448 = vlaneseq
    %v2449 = vshrl.u32 %v2448, 7
    %v2450 = vsub.s32 %v2447, %v2449
    %v2451 = vrot.slane %v2429, %v2450
    %v2453 = vunpack.c.l.s4 1966171168
    %v2454 = vunpack.c.0.s8 %v2453
    %v2455 = vlaneseq
    %v2456 = vshrl.u32 %v2455, 7
    %v2457 = vsub.s32 %v2454, %v2456
    %v2458 = vrot.slane %v2430, %v2457
    %v2459 = vcombine.high %v2437, %v2437
    %v2460 = vcombine.high %v2444, %v2444
    %v2461 = vcombine.high %v2451, %v2451
    %v2462 = vcombine.high %v2458, %v2458
    %v2463 = vcombine.high %v1247, %v1247
    %v2465 = vunpack.c.l.s4 1966171168
    %v2466 = vunpack.c.0.s8 %v2465
    %v2467 = vlaneseq
    %v2468 = vshrl.u32 %v2467, 7
    %v2469 = vsub.s32 %v2466, %v2468
    %v2470 = vrot.slane %v1247, %v2469
    %v2472 = vunpack.c.l.s4 1966171168
    %v2473 = vunpack.c.0.s8 %v2472
    %v2474 = vlaneseq
    %v2475 = vshrl.u32 %v2474, 7
    %v2476 = vsub.s32 %v2473, %v2475
    %v2477 = vrot.slane %v2463, %v2476
    %v2478 = vcombine.high %v2470, %v2470
    %v2479 = vcombine.high %v2477, %v2477
    %v2481 = vunpack.c.l.s4 1966171168
    %v2482 = vunpack.c.0.s8 %v2481
    %v2483 = vlaneseq
    %v2484 = vshrl.u32 %v2483, 7
    %v2485 = vsub.s32 %v2482, %v2484
    %v2486 = vrot.slane %v2470, %v2485
    %v2488 = vunpack.c.l.s4 1966171168
    %v2489 = vunpack.c.0.s8 %v2488
    %v2490 = vlaneseq
    %v2491 = vshrl.u32 %v2490, 7
    %v2492 = vsub.s32 %v2489, %v2491
    %v2493 = vrot.slane %v2477, %v2492
    %v2495 = vunpack.c.l.s4 1966171168
    %v2496 = vunpack.c.0.s8 %v2495
    %v2497 = vlaneseq
    %v2498 = vshrl.u32 %v2497, 7
    %v2499 = vsub.s32 %v2496, %v2498
    %v2500 = vrot.slane %v2478, %v2499
    %v2502 = vunpack.c.l.s4 1966171168
    %v2503 = vunpack.c.0.s8 %v2502
    %v2504 = vlaneseq
    %v2505 = vshrl.u32 %v2504, 7
    %v2506 = vsub.s32 %v2503, %v2505
    %v2507 = vrot.slane %v2479, %v2506
    %v2508 = vcombine.high %v2486, %v2486
    %v2509 = vcombine.high %v2493, %v2493
    %v2510 = vcombine.high %v2500, %v2500
    %v2511 = vcombine.high %v2507, %v2507
    %v2512 = vcombine.high %v1248, %v1248
    %v2514 = vunpack.c.l.s4 1966171168
    %v2515 = vunpack.c.0.s8 %v2514
    %v2516 = vlaneseq
    %v2517 = vshrl.u32 %v2516, 7
    %v2518 = vsub.s32 %v2515, %v2517
    %v2519 = vrot.slane %v1248, %v2518
    %v2521 = vunpack.c.l.s4 1966171168
    %v2522 = vunpack.c.0.s8 %v2521
    %v2523 = vlaneseq
    %v2524 = vshrl.u32 %v2523, 7
    %v2525 = vsub.s32 %v2522, %v2524
    %v2526 = vrot.slane %v2512, %v2525
    %v2527 = vcombine.high %v2519, %v2519
    %v2528 = vcombine.high %v2526, %v2526
    %v2530 = vunpack.c.l.s4 1966171168
    %v2531 = vunpack.c.0.s8 %v2530
    %v2532 = vlaneseq
    %v2533 = vshrl.u32 %v2532, 7
    %v2534 = vsub.s32 %v2531, %v2533
    %v2535 = vrot.slane %v2519, %v2534
    %v2537 = vunpack.c.l.s4 1966171168
    %v2538 = vunpack.c.0.s8 %v2537
    %v2539 = vlaneseq
    %v2540 = vshrl.u32 %v2539, 7
    %v2541 = vsub.s32 %v2538, %v2540
    %v2542 = vrot.slane %v2526, %v2541
    %v2544 = vunpack.c.l.s4 1966171168
    %v2545 = vunpack.c.0.s8 %v2544
    %v2546 = vlaneseq
    %v2547 = vshrl.u32 %v2546, 7
    %v2548 = vsub.s32 %v2545, %v2547
    %v2549 = vrot.slane %v2527, %v2548
    %v2551 = vunpack.c.l.s4 1966171168
    %v2552 = vunpack.c.0.s8 %v2551
    %v2553 = vlaneseq
    %v2554 = vshrl.u32 %v2553, 7
    %v2555 = vsub.s32 %v2552, %v2554
    %v2556 = vrot.slane %v2528, %v2555
    %v2557 = vcombine.high %v2535, %v2535
    %v2558 = vcombine.high %v2542, %v2542
    %v2559 = vcombine.high %v2549, %v2549
    %v2560 = vcombine.high %v2556, %v2556
    %v2561 = vcombine.high %v1249, %v1249
    %v2563 = vunpack.c.l.s4 1966171168
    %v2564 = vunpack.c.0.s8 %v2563
    %v2565 = vlaneseq
    %v2566 = vshrl.u32 %v2565, 7
    %v2567 = vsub.s32 %v2564, %v2566
    %v2568 = vrot.slane %v1249, %v2567
    %v2570 = vunpack.c.l.s4 1966171168
    %v2571 = vunpack.c.0.s8 %v2570
    %v2572 = vlaneseq
    %v2573 = vshrl.u32 %v2572, 7
    %v2574 = vsub.s32 %v2571, %v2573
    %v2575 = vrot.slane %v2561, %v2574
    %v2576 = vcombine.high %v2568, %v2568
    %v2577 = vcombine.high %v2575, %v2575
    %v2579 = vunpack.c.l.s4 1966171168
    %v2580 = vunpack.c.0.s8 %v2579
    %v2581 = vlaneseq
    %v2582 = vshrl.u32 %v2581, 7
    %v2583 = vsub.s32 %v2580, %v2582
    %v2584 = vrot.slane %v2568, %v2583
    %v2586 = vunpack.c.l.s4 1966171168
    %v2587 = vunpack.c.0.s8 %v2586
    %v2588 = vlaneseq
    %v2589 = vshrl.u32 %v2588, 7
    %v2590 = vsub.s32 %v2587, %v2589
    %v2591 = vrot.slane %v2575, %v2590
    %v2593 = vunpack.c.l.s4 1966171168
    %v2594 = vunpack.c.0.s8 %v2593
    %v2595 = vlaneseq
    %v2596 = vshrl.u32 %v2595, 7
    %v2597 = vsub.s32 %v2594, %v2596
    %v2598 = vrot.slane %v2576, %v2597
    %v2600 = vunpack.c.l.s4 1966171168
    %v2601 = vunpack.c.0.s8 %v2600
    %v2602 = vlaneseq
    %v2603 = vshrl.u32 %v2602, 7
    %v2604 = vsub.s32 %v2601, %v2603
    %v2605 = vrot.slane %v2577, %v2604
    %v2606 = vcombine.high %v2584, %v2584
    %v2607 = vcombine.high %v2591, %v2591
    %v2608 = vcombine.high %v2598, %v2598
    %v2609 = vcombine.high %v2605, %v2605
    %v2610 = vcombine.high %v1250, %v1250
    %v2612 = vunpack.c.l.s4 1966171168
    %v2613 = vunpack.c.0.s8 %v2612
    %v2614 = vlaneseq
    %v2615 = vshrl.u32 %v2614, 7
    %v2616 = vsub.s32 %v2613, %v2615
    %v2617 = vrot.slane %v1250, %v2616
    %v2619 = vunpack.c.l.s4 1966171168
    %v2620 = vunpack.c.0.s8 %v2619
    %v2621 = vlaneseq
    %v2622 = vshrl.u32 %v2621, 7
    %v2623 = vsub.s32 %v2620, %v2622
    %v2624 = vrot.slane %v2610, %v2623
    %v2625 = vcombine.high %v2617, %v2617
    %v2626 = vcombine.high %v2624, %v2624
    %v2628 = vunpack.c.l.s4 1966171168
    %v2629 = vunpack.c.0.s8 %v2628
    %v2630 = vlaneseq
    %v2631 = vshrl.u32 %v2630, 7
    %v2632 = vsub.s32 %v2629, %v2631
    %v2633 = vrot.slane %v2617, %v2632
    %v2635 = vunpack.c.l.s4 1966171168
    %v2636 = vunpack.c.0.s8 %v2635
    %v2637 = vlaneseq
    %v2638 = vshrl.u32 %v2637, 7
    %v2639 = vsub.s32 %v2636, %v2638
    %v2640 = vrot.slane %v2624, %v2639
    %v2642 = vunpack.c.l.s4 1966171168
    %v2643 = vunpack.c.0.s8 %v2642
    %v2644 = vlaneseq
    %v2645 = vshrl.u32 %v2644, 7
    %v2646 = vsub.s32 %v2643, %v2645
    %v2647 = vrot.slane %v2625, %v2646
    %v2649 = vunpack.c.l.s4 1966171168
    %v2650 = vunpack.c.0.s8 %v2649
    %v2651 = vlaneseq
    %v2652 = vshrl.u32 %v2651, 7
    %v2653 = vsub.s32 %v2650, %v2652
    %v2654 = vrot.slane %v2626, %v2653
    %v2655 = vcombine.high %v2633, %v2633
    %v2656 = vcombine.high %v2640, %v2640
    %v2657 = vcombine.high %v2647, %v2647
    %v2658 = vcombine.high %v2654, %v2654
    %v2659 = vcombine.high %v1251, %v1251
    %v2661 = vunpack.c.l.s4 1966171168
    %v2662 = vunpack.c.0.s8 %v2661
    %v2663 = vlaneseq
    %v2664 = vshrl.u32 %v2663, 7
    %v2665 = vsub.s32 %v2662, %v2664
    %v2666 = vrot.slane %v1251, %v2665
    %v2668 = vunpack.c.l.s4 1966171168
    %v2669 = vunpack.c.0.s8 %v2668
    %v2670 = vlaneseq
    %v2671 = vshrl.u32 %v2670, 7
    %v2672 = vsub.s32 %v2669, %v2671
    %v2673 = vrot.slane %v2659, %v2672
    %v2674 = vcombine.high %v2666, %v2666
    %v2675 = vcombine.high %v2673, %v2673
    %v2677 = vunpack.c.l.s4 1966171168
    %v2678 = vunpack.c.0.s8 %v2677
    %v2679 = vlaneseq
    %v2680 = vshrl.u32 %v2679, 7
    %v2681 = vsub.s32 %v2678, %v2680
    %v2682 = vrot.slane %v2666, %v2681
    %v2684 = vunpack.c.l.s4 1966171168
    %v2685 = vunpack.c.0.s8 %v2684
    %v2686 = vlaneseq
    %v2687 = vshrl.u32 %v2686, 7
    %v2688 = vsub.s32 %v2685, %v2687
    %v2689 = vrot.slane %v2673, %v2688
    %v2691 = vunpack.c.l.s4 1966171168
    %v2692 = vunpack.c.0.s8 %v2691
    %v2693 = vlaneseq
    %v2694 = vshrl.u32 %v2693, 7
    %v2695 = vsub.s32 %v2692, %v2694
    %v2696 = vrot.slane %v2674, %v2695
    %v2698 = vunpack.c.l.s4 1966171168
    %v2699 = vunpack.c.0.s8 %v2698
    %v2700 = vlaneseq
    %v2701 = vshrl.u32 %v2700, 7
    %v2702 = vsub.s32 %v2699, %v2701
    %v2703 = vrot.slane %v2675, %v2702
    %v2704 = vcombine.high %v2682, %v2682
    %v2705 = vcombine.high %v2689, %v2689
    %v2706 = vcombine.high %v2696, %v2696
    %v2707 = vcombine.high %v2703, %v2703
    %v2708 = vcombine.high %v1252, %v1252
    %v2710 = vunpack.c.l.s4 1966171168
    %v2711 = vunpack.c.0.s8 %v2710
    %v2712 = vlaneseq
    %v2713 = vshrl.u32 %v2712, 7
    %v2714 = vsub.s32 %v2711, %v2713
    %v2715 = vrot.slane %v1252, %v2714
    %v2717 = vunpack.c.l.s4 1966171168
    %v2718 = vunpack.c.0.s8 %v2717
    %v2719 = vlaneseq
    %v2720 = vshrl.u32 %v2719, 7
    %v2721 = vsub.s32 %v2718, %v2720
    %v2722 = vrot.slane %v2708, %v2721
    %v2723 = vcombine.high %v2715, %v2715
    %v2724 = vcombine.high %v2722, %v2722
    %v2726 = vunpack.c.l.s4 1966171168
    %v2727 = vunpack.c.0.s8 %v2726
    %v2728 = vlaneseq
    %v2729 = vshrl.u32 %v2728, 7
    %v2730 = vsub.s32 %v2727, %v2729
    %v2731 = vrot.slane %v2715, %v2730
    %v2733 = vunpack.c.l.s4 1966171168
    %v2734 = vunpack.c.0.s8 %v2733
    %v2735 = vlaneseq
    %v2736 = vshrl.u32 %v2735, 7
    %v2737 = vsub.s32 %v2734, %v2736
    %v2738 = vrot.slane %v2722, %v2737
    %v2740 = vunpack.c.l.s4 1966171168
    %v2741 = vunpack.c.0.s8 %v2740
    %v2742 = vlaneseq
    %v2743 = vshrl.u32 %v2742, 7
    %v2744 = vsub.s32 %v2741, %v2743
    %v2745 = vrot.slane %v2723, %v2744
    %v2747 = vunpack.c.l.s4 1966171168
    %v2748 = vunpack.c.0.s8 %v2747
    %v2749 = vlaneseq
    %v2750 = vshrl.u32 %v2749, 7
    %v2751 = vsub.s32 %v2748, %v2750
    %v2752 = vrot.slane %v2724, %v2751
    %v2753 = vcombine.high %v2731, %v2731
    %v2754 = vcombine.high %v2738, %v2738
    %v2755 = vcombine.high %v2745, %v2745
    %v2756 = vcombine.high %v2752, %v2752
    %v2757 = vcombine.high %v1253, %v1253
    %v2759 = vunpack.c.l.s4 1966171168
    %v2760 = vunpack.c.0.s8 %v2759
    %v2761 = vlaneseq
    %v2762 = vshrl.u32 %v2761, 7
    %v2763 = vsub.s32 %v2760, %v2762
    %v2764 = vrot.slane %v1253, %v2763
    %v2766 = vunpack.c.l.s4 1966171168
    %v2767 = vunpack.c.0.s8 %v2766
    %v2768 = vlaneseq
    %v2769 = vshrl.u32 %v2768, 7
    %v2770 = vsub.s32 %v2767, %v2769
    %v2771 = vrot.slane %v2757, %v2770
    %v2772 = vcombine.high %v2764, %v2764
    %v2773 = vcombine.high %v2771, %v2771
    %v2775 = vunpack.c.l.s4 1966171168
    %v2776 = vunpack.c.0.s8 %v2775
    %v2777 = vlaneseq
    %v2778 = vshrl.u32 %v2777, 7
    %v2779 = vsub.s32 %v2776, %v2778
    %v2780 = vrot.slane %v2764, %v2779
    %v2782 = vunpack.c.l.s4 1966171168
    %v2783 = vunpack.c.0.s8 %v2782
    %v2784 = vlaneseq
    %v2785 = vshrl.u32 %v2784, 7
    %v2786 = vsub.s32 %v2783, %v2785
    %v2787 = vrot.slane %v2771, %v2786
    %v2789 = vunpack.c.l.s4 1966171168
    %v2790 = vunpack.c.0.s8 %v2789
    %v2791 = vlaneseq
    %v2792 = vshrl.u32 %v2791, 7
    %v2793 = vsub.s32 %v2790, %v2792
    %v2794 = vrot.slane %v2772, %v2793
    %v2796 = vunpack.c.l.s4 1966171168
    %v2797 = vunpack.c.0.s8 %v2796
    %v2798 = vlaneseq
    %v2799 = vshrl.u32 %v2798, 7
    %v2800 = vsub.s32 %v2797, %v2799
    %v2801 = vrot.slane %v2773, %v2800
    %v2802 = vcombine.high %v2780, %v2780
    %v2803 = vcombine.high %v2787, %v2787
    %v2804 = vcombine.high %v2794, %v2794
    %v2805 = vcombine.high %v2801, %v2801
    %v2806 = vcombine.high %v1254, %v1254
    %v2808 = vunpack.c.l.s4 1966171168
    %v2809 = vunpack.c.0.s8 %v2808
    %v2810 = vlaneseq
    %v2811 = vshrl.u32 %v2810, 7
    %v2812 = vsub.s32 %v2809, %v2811
    %v2813 = vrot.slane %v1254, %v2812
    %v2815 = vunpack.c.l.s4 1966171168
    %v2816 = vunpack.c.0.s8 %v2815
    %v2817 = vlaneseq
    %v2818 = vshrl.u32 %v2817, 7
    %v2819 = vsub.s32 %v2816, %v2818
    %v2820 = vrot.slane %v2806, %v2819
    %v2821 = vcombine.high %v2813, %v2813
    %v2822 = vcombine.high %v2820, %v2820
    %v2824 = vunpack.c.l.s4 1966171168
    %v2825 = vunpack.c.0.s8 %v2824
    %v2826 = vlaneseq
    %v2827 = vshrl.u32 %v2826, 7
    %v2828 = vsub.s32 %v2825, %v2827
    %v2829 = vrot.slane %v2813, %v2828
    %v2831 = vunpack.c.l.s4 1966171168
    %v2832 = vunpack.c.0.s8 %v2831
    %v2833 = vlaneseq
    %v2834 = vshrl.u32 %v2833, 7
    %v2835 = vsub.s32 %v2832, %v2834
    %v2836 = vrot.slane %v2820, %v2835
    %v2838 = vunpack.c.l.s4 1966171168
    %v2839 = vunpack.c.0.s8 %v2838
    %v2840 = vlaneseq
    %v2841 = vshrl.u32 %v2840, 7
    %v2842 = vsub.s32 %v2839, %v2841
    %v2843 = vrot.slane %v2821, %v2842
    %v2845 = vunpack.c.l.s4 1966171168
    %v2846 = vunpack.c.0.s8 %v2845
    %v2847 = vlaneseq
    %v2848 = vshrl.u32 %v2847, 7
    %v2849 = vsub.s32 %v2846, %v2848
    %v2850 = vrot.slane %v2822, %v2849
    %v2851 = vcombine.high %v2829, %v2829
    %v2852 = vcombine.high %v2836, %v2836
    %v2853 = vcombine.high %v2843, %v2843
    %v2854 = vcombine.high %v2850, %v2850
    %v2855 = vcombine.low %v1310, %v1324
    %v2856 = vcombine.low %v1332, %v1334
    %v2857 = vcombine.low %v1317, %v1331
    %v2858 = vcombine.low %v1333, %v1335
    %v2860 = vunpack.c.l.s4 1966171168
    %v2861 = vunpack.c.0.s8 %v2860
    %v2862 = vlaneseq
    %v2863 = vshrl.u32 %v2862, 7
    %v2864 = vsub.s32 %v2861, %v2863
    %v2865 = vrot.slane %v2855, %v2864
    %v2867 = vunpack.c.l.s4 1966171168
    %v2868 = vunpack.c.0.s8 %v2867
    %v2869 = vlaneseq
    %v2870 = vshrl.u32 %v2869, 7
    %v2871 = vsub.s32 %v2868, %v2870
    %v2872 = vrot.slane %v2856, %v2871
    %v2874 = vunpack.c.l.s4 1966171168
    %v2875 = vunpack.c.0.s8 %v2874
    %v2876 = vlaneseq
    %v2877 = vshrl.u32 %v2876, 7
    %v2878 = vsub.s32 %v2875, %v2877
    %v2879 = vrot.slane %v2857, %v2878
    %v2881 = vunpack.c.l.s4 1966171168
    %v2882 = vunpack.c.0.s8 %v2881
    %v2883 = vlaneseq
    %v2884 = vshrl.u32 %v2883, 7
    %v2885 = vsub.s32 %v2882, %v2884
    %v2886 = vrot.slane %v2858, %v2885
    %v2887 = vcombine.low %v2865, %v2872
    %v2888 = vcombine.low %v2879, %v2886
    %v2890 = vunpack.c.l.s4 1966171168
    %v2891 = vunpack.c.0.s8 %v2890
    %v2892 = vlaneseq
    %v2893 = vshrl.u32 %v2892, 7
    %v2894 = vsub.s32 %v2891, %v2893
    %v2895 = vrot.slane %v2887, %v2894
    %v2897 = vunpack.c.l.s4 1966171168
    %v2898 = vunpack.c.0.s8 %v2897
    %v2899 = vlaneseq
    %v2900 = vshrl.u32 %v2899, 7
    %v2901 = vsub.s32 %v2898, %v2900
    %v2902 = vrot.slane %v2888, %v2901
    %v2903 = vcombine.low %v2895, %v2902
    %v2904 = vcombine.low %v1359, %v1373
    %v2905 = vcombine.low %v1381, %v1383
    %v2906 = vcombine.low %v1366, %v1380
    %v2907 = vcombine.low %v1382, %v1384
    %v2909 = vunpack.c.l.s4 1966171168
    %v2910 = vunpack.c.0.s8 %v2909
    %v2911 = vlaneseq
    %v2912 = vshrl.u32 %v2911, 7
    %v2913 = vsub.s32 %v2910, %v2912
    %v2914 = vrot.slane %v2904, %v2913
    %v2916 = vunpack.c.l.s4 1966171168
    %v2917 = vunpack.c.0.s8 %v2916
    %v2918 = vlaneseq
    %v2919 = vshrl.u32 %v2918, 7
    %v2920 = vsub.s32 %v2917, %v2919
    %v2921 = vrot.slane %v2905, %v2920
    %v2923 = vunpack.c.l.s4 1966171168
    %v2924 = vunpack.c.0.s8 %v2923
    %v2925 = vlaneseq
    %v2926 = vshrl.u32 %v2925, 7
    %v2927 = vsub.s32 %v2924, %v2926
    %v2928 = vrot.slane %v2906, %v2927
    %v2930 = vunpack.c.l.s4 1966171168
    %v2931 = vunpack.c.0.s8 %v2930
    %v2932 = vlaneseq
    %v2933 = vshrl.u32 %v2932, 7
    %v2934 = vsub.s32 %v2931, %v2933
    %v2935 = vrot.slane %v2907, %v2934
    %v2936 = vcombine.low %v2914, %v2921
    %v2937 = vcombine.low %v2928, %v2935
    %v2939 = vunpack.c.l.s4 1966171168
    %v2940 = vunpack.c.0.s8 %v2939
    %v2941 = vlaneseq
    %v2942 = vshrl.u32 %v2941, 7
    %v2943 = vsub.s32 %v2940, %v2942
    %v2944 = vrot.slane %v2936, %v2943
    %v2946 = vunpack.c.l.s4 1966171168
    %v2947 = vunpack.c.0.s8 %v2946
    %v2948 = vlaneseq
    %v2949 = vshrl.u32 %v2948, 7
    %v2950 = vsub.s32 %v2947, %v2949
    %v2951 = vrot.slane %v2937, %v2950
    %v2952 = vcombine.low %v2944, %v2951
    %v2953 = vcombine.low %v1408, %v1422
    %v2954 = vcombine.low %v1430, %v1432
    %v2955 = vcombine.low %v1415, %v1429
    %v2956 = vcombine.low %v1431, %v1433
    %v2958 = vunpack.c.l.s4 1966171168
    %v2959 = vunpack.c.0.s8 %v2958
    %v2960 = vlaneseq
    %v2961 = vshrl.u32 %v2960, 7
    %v2962 = vsub.s32 %v2959, %v2961
    %v2963 = vrot.slane %v2953, %v2962
    %v2965 = vunpack.c.l.s4 1966171168
    %v2966 = vunpack.c.0.s8 %v2965
    %v2967 = vlaneseq
    %v2968 = vshrl.u32 %v2967, 7
    %v2969 = vsub.s32 %v2966, %v2968
    %v2970 = vrot.slane %v2954, %v2969
    %v2972 = vunpack.c.l.s4 1966171168
    %v2973 = vunpack.c.0.s8 %v2972
    %v2974 = vlaneseq
    %v2975 = vshrl.u32 %v2974, 7
    %v2976 = vsub.s32 %v2973, %v2975
    %v2977 = vrot.slane %v2955, %v2976
    %v2979 = vunpack.c.l.s4 1966171168
    %v2980 = vunpack.c.0.s8 %v2979
    %v2981 = vlaneseq
    %v2982 = vshrl.u32 %v2981, 7
    %v2983 = vsub.s32 %v2980, %v2982
    %v2984 = vrot.slane %v2956, %v2983
    %v2985 = vcombine.low %v2963, %v2970
    %v2986 = vcombine.low %v2977, %v2984
    %v2988 = vunpack.c.l.s4 1966171168
    %v2989 = vunpack.c.0.s8 %v2988
    %v2990 = vlaneseq
    %v2991 = vshrl.u32 %v2990, 7
    %v2992 = vsub.s32 %v2989, %v2991
    %v2993 = vrot.slane %v2985, %v2992
    %v2995 = vunpack.c.l.s4 1966171168
    %v2996 = vunpack.c.0.s8 %v2995
    %v2997 = vlaneseq
    %v2998 = vshrl.u32 %v2997, 7
    %v2999 = vsub.s32 %v2996, %v2998
    %v3000 = vrot.slane %v2986, %v2999
    %v3001 = vcombine.low %v2993, %v3000
    %v3002 = vcombine.low %v1457, %v1471
    %v3003 = vcombine.low %v1479, %v1481
    %v3004 = vcombine.low %v1464, %v1478
    %v3005 = vcombine.low %v1480, %v1482
    %v3007 = vunpack.c.l.s4 1966171168
    %v3008 = vunpack.c.0.s8 %v3007
    %v3009 = vlaneseq
    %v3010 = vshrl.u32 %v3009, 7
    %v3011 = vsub.s32 %v3008, %v3010
    %v3012 = vrot.slane %v3002, %v3011
    %v3014 = vunpack.c.l.s4 1966171168
    %v3015 = vunpack.c.0.s8 %v3014
    %v3016 = vlaneseq
    %v3017 = vshrl.u32 %v3016, 7
    %v3018 = vsub.s32 %v3015, %v3017
    %v3019 = vrot.slane %v3003, %v3018
    %v3021 = vunpack.c.l.s4 1966171168
    %v3022 = vunpack.c.0.s8 %v3021
    %v3023 = vlaneseq
    %v3024 = vshrl.u32 %v3023, 7
    %v3025 = vsub.s32 %v3022, %v3024
    %v3026 = vrot.slane %v3004, %v3025
    %v3028 = vunpack.c.l.s4 1966171168
    %v3029 = vunpack.c.0.s8 %v3028
    %v3030 = vlaneseq
    %v3031 = vshrl.u32 %v3030, 7
    %v3032 = vsub.s32 %v3029, %v3031
    %v3033 = vrot.slane %v3005, %v3032
    %v3034 = vcombine.low %v3012, %v3019
    %v3035 = vcombine.low %v3026, %v3033
    %v3037 = vunpack.c.l.s4 1966171168
    %v3038 = vunpack.c.0.s8 %v3037
    %v3039 = vlaneseq
    %v3040 = vshrl.u32 %v3039, 7
    %v3041 = vsub.s32 %v3038, %v3040
    %v3042 = vrot.slane %v3034, %v3041
    %v3044 = vunpack.c.l.s4 1966171168
    %v3045 = vunpack.c.0.s8 %v3044
    %v3046 = vlaneseq
    %v3047 = vshrl.u32 %v3046, 7
    %v3048 = vsub.s32 %v3045, %v3047
    %v3049 = vrot.slane %v3035, %v3048
    %v3050 = vcombine.low %v3042, %v3049
    %v3051 = vcombine.low %v1506, %v1520
    %v3052 = vcombine.low %v1528, %v1530
    %v3053 = vcombine.low %v1513, %v1527
    %v3054 = vcombine.low %v1529, %v1531
    %v3056 = vunpack.c.l.s4 1966171168
    %v3057 = vunpack.c.0.s8 %v3056
    %v3058 = vlaneseq
    %v3059 = vshrl.u32 %v3058, 7
    %v3060 = vsub.s32 %v3057, %v3059
    %v3061 = vrot.slane %v3051, %v3060
    %v3063 = vunpack.c.l.s4 1966171168
    %v3064 = vunpack.c.0.s8 %v3063
    %v3065 = vlaneseq
    %v3066 = vshrl.u32 %v3065, 7
    %v3067 = vsub.s32 %v3064, %v3066
    %v3068 = vrot.slane %v3052, %v3067
    %v3070 = vunpack.c.l.s4 1966171168
    %v3071 = vunpack.c.0.s8 %v3070
    %v3072 = vlaneseq
    %v3073 = vshrl.u32 %v3072, 7
    %v3074 = vsub.s32 %v3071, %v3073
    %v3075 = vrot.slane %v3053, %v3074
    %v3077 = vunpack.c.l.s4 1966171168
    %v3078 = vunpack.c.0.s8 %v3077
    %v3079 = vlaneseq
    %v3080 = vshrl.u32 %v3079, 7
    %v3081 = vsub.s32 %v3078, %v3080
    %v3082 = vrot.slane %v3054, %v3081
    %v3083 = vcombine.low %v3061, %v3068
    %v3084 = vcombine.low %v3075, %v3082
    %v3086 = vunpack.c.l.s4 1966171168
    %v3087 = vunpack.c.0.s8 %v3086
    %v3088 = vlaneseq
    %v3089 = vshrl.u32 %v3088, 7
    %v3090 = vsub.s32 %v3087, %v3089
    %v3091 = vrot.slane %v3083, %v3090
    %v3093 = vunpack.c.l.s4 1966171168
    %v3094 = vunpack.c.0.s8 %v3093
    %v3095 = vlaneseq
    %v3096 = vshrl.u32 %v3095, 7
    %v3097 = vsub.s32 %v3094, %v3096
    %v3098 = vrot.slane %v3084, %v3097
    %v3099 = vcombine.low %v3091, %v3098
    %v3100 = vcombine.low %v1555, %v1569
    %v3101 = vcombine.low %v1577, %v1579
    %v3102 = vcombine.low %v1562, %v1576
    %v3103 = vcombine.low %v1578, %v1580
    %v3105 = vunpack.c.l.s4 1966171168
    %v3106 = vunpack.c.0.s8 %v3105
    %v3107 = vlaneseq
    %v3108 = vshrl.u32 %v3107, 7
    %v3109 = vsub.s32 %v3106, %v3108
    %v3110 = vrot.slane %v3100, %v3109
    %v3112 = vunpack.c.l.s4 1966171168
    %v3113 = vunpack.c.0.s8 %v3112
    %v3114 = vlaneseq
    %v3115 = vshrl.u32 %v3114, 7
    %v3116 = vsub.s32 %v3113, %v3115
    %v3117 = vrot.slane %v3101, %v3116
    %v3119 = vunpack.c.l.s4 1966171168
    %v3120 = vunpack.c.0.s8 %v3119
    %v3121 = vlaneseq
    %v3122 = vshrl.u32 %v3121, 7
    %v3123 = vsub.s32 %v3120, %v3122
    %v3124 = vrot.slane %v3102, %v3123
    %v3126 = vunpack.c.l.s4 1966171168
    %v3127 = vunpack.c.0.s8 %v3126
    %v3128 = vlaneseq
    %v3129 = vshrl.u32 %v3128, 7
    %v3130 = vsub.s32 %v3127, %v3129
    %v3131 = vrot.slane %v3103, %v3130
    %v3132 = vcombine.low %v3110, %v3117
    %v3133 = vcombine.low %v3124, %v3131
    %v3135 = vunpack.c.l.s4 1966171168
    %v3136 = vunpack.c.0.s8 %v3135
    %v3137 = vlaneseq
    %v3138 = vshrl.u32 %v3137, 7
    %v3139 = vsub.s32 %v3136, %v3138
    %v3140 = vrot.slane %v3132, %v3139
    %v3142 = vunpack.c.l.s4 1966171168
    %v3143 = vunpack.c.0.s8 %v3142
    %v3144 = vlaneseq
    %v3145 = vshrl.u32 %v3144, 7
    %v3146 = vsub.s32 %v3143, %v3145
    %v3147 = vrot.slane %v3133, %v3146
    %v3148 = vcombine.low %v3140, %v3147
    %v3149 = vcombine.low %v1604, %v1618
    %v3150 = vcombine.low %v1626, %v1628
    %v3151 = vcombine.low %v1611, %v1625
    %v3152 = vcombine.low %v1627, %v1629
    %v3154 = vunpack.c.l.s4 1966171168
    %v3155 = vunpack.c.0.s8 %v3154
    %v3156 = vlaneseq
    %v3157 = vshrl.u32 %v3156, 7
    %v3158 = vsub.s32 %v3155, %v3157
    %v3159 = vrot.slane %v3149, %v3158
    %v3161 = vunpack.c.l.s4 1966171168
    %v3162 = vunpack.c.0.s8 %v3161
    %v3163 = vlaneseq
    %v3164 = vshrl.u32 %v3163, 7
    %v3165 = vsub.s32 %v3162, %v3164
    %v3166 = vrot.slane %v3150, %v3165
    %v3168 = vunpack.c.l.s4 1966171168
    %v3169 = vunpack.c.0.s8 %v3168
    %v3170 = vlaneseq
    %v3171 = vshrl.u32 %v3170, 7
    %v3172 = vsub.s32 %v3169, %v3171
    %v3173 = vrot.slane %v3151, %v3172
    %v3175 = vunpack.c.l.s4 1966171168
    %v3176 = vunpack.c.0.s8 %v3175
    %v3177 = vlaneseq
    %v3178 = vshrl.u32 %v3177, 7
    %v3179 = vsub.s32 %v3176, %v3178
    %v3180 = vrot.slane %v3152, %v3179
    %v3181 = vcombine.low %v3159, %v3166
    %v3182 = vcombine.low %v3173, %v3180
    %v3184 = vunpack.c.l.s4 1966171168
    %v3185 = vunpack.c.0.s8 %v3184
    %v3186 = vlaneseq
    %v3187 = vshrl.u32 %v3186, 7
    %v3188 = vsub.s32 %v3185, %v3187
    %v3189 = vrot.slane %v3181, %v3188
    %v3191 = vunpack.c.l.s4 1966171168
    %v3192 = vunpack.c.0.s8 %v3191
    %v3193 = vlaneseq
    %v3194 = vshrl.u32 %v3193, 7
    %v3195 = vsub.s32 %v3192, %v3194
    %v3196 = vrot.slane %v3182, %v3195
    %v3197 = vcombine.low %v3189, %v3196
    %v3198 = vcombine.low %v1653, %v1667
    %v3199 = vcombine.low %v1675, %v1677
    %v3200 = vcombine.low %v1660, %v1674
    %v3201 = vcombine.low %v1676, %v1678
    %v3203 = vunpack.c.l.s4 1966171168
    %v3204 = vunpack.c.0.s8 %v3203
    %v3205 = vlaneseq
    %v3206 = vshrl.u32 %v3205, 7
    %v3207 = vsub.s32 %v3204, %v3206
    %v3208 = vrot.slane %v3198, %v3207
    %v3210 = vunpack.c.l.s4 1966171168
    %v3211 = vunpack.c.0.s8 %v3210
    %v3212 = vlaneseq
    %v3213 = vshrl.u32 %v3212, 7
    %v3214 = vsub.s32 %v3211, %v3213
    %v3215 = vrot.slane %v3199, %v3214
    %v3217 = vunpack.c.l.s4 1966171168
    %v3218 = vunpack.c.0.s8 %v3217
    %v3219 = vlaneseq
    %v3220 = vshrl.u32 %v3219, 7
    %v3221 = vsub.s32 %v3218, %v3220
    %v3222 = vrot.slane %v3200, %v3221
    %v3224 = vunpack.c.l.s4 1966171168
    %v3225 = vunpack.c.0.s8 %v3224
    %v3226 = vlaneseq
    %v3227 = vshrl.u32 %v3226, 7
    %v3228 = vsub.s32 %v3225, %v3227
    %v3229 = vrot.slane %v3201, %v3228
    %v3230 = vcombine.low %v3208, %v3215
    %v3231 = vcombine.low %v3222, %v3229
    %v3233 = vunpack.c.l.s4 1966171168
    %v3234 = vunpack.c.0.s8 %v3233
    %v3235 = vlaneseq
    %v3236 = vshrl.u32 %v3235, 7
    %v3237 = vsub.s32 %v3234, %v3236
    %v3238 = vrot.slane %v3230, %v3237
    %v3240 = vunpack.c.l.s4 1966171168
    %v3241 = vunpack.c.0.s8 %v3240
    %v3242 = vlaneseq
    %v3243 = vshrl.u32 %v3242, 7
    %v3244 = vsub.s32 %v3241, %v3243
    %v3245 = vrot.slane %v3231, %v3244
    %v3246 = vcombine.low %v3238, %v3245
    %v3247 = vcombine.low %v1702, %v1716
    %v3248 = vcombine.low %v1724, %v1726
    %v3249 = vcombine.low %v1709, %v1723
    %v3250 = vcombine.low %v1725, %v1727
    %v3252 = vunpack.c.l.s4 1966171168
    %v3253 = vunpack.c.0.s8 %v3252
    %v3254 = vlaneseq
    %v3255 = vshrl.u32 %v3254, 7
    %v3256 = vsub.s32 %v3253, %v3255
    %v3257 = vrot.slane %v3247, %v3256
    %v3259 = vunpack.c.l.s4 1966171168
    %v3260 = vunpack.c.0.s8 %v3259
    %v3261 = vlaneseq
    %v3262 = vshrl.u32 %v3261, 7
    %v3263 = vsub.s32 %v3260, %v3262
    %v3264 = vrot.slane %v3248, %v3263
    %v3266 = vunpack.c.l.s4 1966171168
    %v3267 = vunpack.c.0.s8 %v3266
    %v3268 = vlaneseq
    %v3269 = vshrl.u32 %v3268, 7
    %v3270 = vsub.s32 %v3267, %v3269
    %v3271 = vrot.slane %v3249, %v3270
    %v3273 = vunpack.c.l.s4 1966171168
    %v3274 = vunpack.c.0.s8 %v3273
    %v3275 = vlaneseq
    %v3276 = vshrl.u32 %v3275, 7
    %v3277 = vsub.s32 %v3274, %v3276
    %v3278 = vrot.slane %v3250, %v3277
    %v3279 = vcombine.low %v3257, %v3264
    %v3280 = vcombine.low %v3271, %v3278
    %v3282 = vunpack.c.l.s4 1966171168
    %v3283 = vunpack.c.0.s8 %v3282
    %v3284 = vlaneseq
    %v3285 = vshrl.u32 %v3284, 7
    %v3286 = vsub.s32 %v3283, %v3285
    %v3287 = vrot.slane %v3279, %v3286
    %v3289 = vunpack.c.l.s4 1966171168
    %v3290 = vunpack.c.0.s8 %v3289
    %v3291 = vlaneseq
    %v3292 = vshrl.u32 %v3291, 7
    %v3293 = vsub.s32 %v3290, %v3292
    %v3294 = vrot.slane %v3280, %v3293
    %v3295 = vcombine.low %v3287, %v3294
    %v3296 = vcombine.low %v1751, %v1765
    %v3297 = vcombine.low %v1773, %v1775
    %v3298 = vcombine.low %v1758, %v1772
    %v3299 = vcombine.low %v1774, %v1776
    %v3301 = vunpack.c.l.s4 1966171168
    %v3302 = vunpack.c.0.s8 %v3301
    %v3303 = vlaneseq
    %v3304 = vshrl.u32 %v3303, 7
    %v3305 = vsub.s32 %v3302, %v3304
    %v3306 = vrot.slane %v3296, %v3305
    %v3308 = vunpack.c.l.s4 1966171168
    %v3309 = vunpack.c.0.s8 %v3308
    %v3310 = vlaneseq
    %v3311 = vshrl.u32 %v3310, 7
    %v3312 = vsub.s32 %v3309, %v3311
    %v3313 = vrot.slane %v3297, %v3312
    %v3315 = vunpack.c.l.s4 1966171168
    %v3316 = vunpack.c.0.s8 %v3315
    %v3317 = vlaneseq
    %v3318 = vshrl.u32 %v3317, 7
    %v3319 = vsub.s32 %v3316, %v3318
    %v3320 = vrot.slane %v3298, %v3319
    %v3322 = vunpack.c.l.s4 1966171168
    %v3323 = vunpack.c.0.s8 %v3322
    %v3324 = vlaneseq
    %v3325 = vshrl.u32 %v3324, 7
    %v3326 = vsub.s32 %v3323, %v3325
    %v3327 = vrot.slane %v3299, %v3326
    %v3328 = vcombine.low %v3306, %v3313
    %v3329 = vcombine.low %v3320, %v3327
    %v3331 = vunpack.c.l.s4 1966171168
    %v3332 = vunpack.c.0.s8 %v3331
    %v3333 = vlaneseq
    %v3334 = vshrl.u32 %v3333, 7
    %v3335 = vsub.s32 %v3332, %v3334
    %v3336 = vrot.slane %v3328, %v3335
    %v3338 = vunpack.c.l.s4 1966171168
    %v3339 = vunpack.c.0.s8 %v3338
    %v3340 = vlaneseq
    %v3341 = vshrl.u32 %v3340, 7
    %v3342 = vsub.s32 %v3339, %v3341
    %v3343 = vrot.slane %v3329, %v3342
    %v3344 = vcombine.low %v3336, %v3343
    %v3345 = vcombine.low %v1800, %v1814
    %v3346 = vcombine.low %v1822, %v1824
    %v3347 = vcombine.low %v1807, %v1821
    %v3348 = vcombine.low %v1823, %v1825
    %v3350 = vunpack.c.l.s4 1966171168
    %v3351 = vunpack.c.0.s8 %v3350
    %v3352 = vlaneseq
    %v3353 = vshrl.u32 %v3352, 7
    %v3354 = vsub.s32 %v3351, %v3353
    %v3355 = vrot.slane %v3345, %v3354
    %v3357 = vunpack.c.l.s4 1966171168
    %v3358 = vunpack.c.0.s8 %v3357
    %v3359 = vlaneseq
    %v3360 = vshrl.u32 %v3359, 7
    %v3361 = vsub.s32 %v3358, %v3360
    %v3362 = vrot.slane %v3346, %v3361
    %v3364 = vunpack.c.l.s4 1966171168
    %v3365 = vunpack.c.0.s8 %v3364
    %v3366 = vlaneseq
    %v3367 = vshrl.u32 %v3366, 7
    %v3368 = vsub.s32 %v3365, %v3367
    %v3369 = vrot.slane %v3347, %v3368
    %v3371 = vunpack.c.l.s4 1966171168
    %v3372 = vunpack.c.0.s8 %v3371
    %v3373 = vlaneseq
    %v3374 = vshrl.u32 %v3373, 7
    %v3375 = vsub.s32 %v3372, %v3374
    %v3376 = vrot.slane %v3348, %v3375
    %v3377 = vcombine.low %v3355, %v3362
    %v3378 = vcombine.low %v3369, %v3376
    %v3380 = vunpack.c.l.s4 1966171168
    %v3381 = vunpack.c.0.s8 %v3380
    %v3382 = vlaneseq
    %v3383 = vshrl.u32 %v3382, 7
    %v3384 = vsub.s32 %v3381, %v3383
    %v3385 = vrot.slane %v3377, %v3384
    %v3387 = vunpack.c.l.s4 1966171168
    %v3388 = vunpack.c.0.s8 %v3387
    %v3389 = vlaneseq
    %v3390 = vshrl.u32 %v3389, 7
    %v3391 = vsub.s32 %v3388, %v3390
    %v3392 = vrot.slane %v3378, %v3391
    %v3393 = vcombine.low %v3385, %v3392
    %v3394 = vcombine.low %v1849, %v1863
    %v3395 = vcombine.low %v1871, %v1873
    %v3396 = vcombine.low %v1856, %v1870
    %v3397 = vcombine.low %v1872, %v1874
    %v3399 = vunpack.c.l.s4 1966171168
    %v3400 = vunpack.c.0.s8 %v3399
    %v3401 = vlaneseq
    %v3402 = vshrl.u32 %v3401, 7
    %v3403 = vsub.s32 %v3400, %v3402
    %v3404 = vrot.slane %v3394, %v3403
    %v3406 = vunpack.c.l.s4 1966171168
    %v3407 = vunpack.c.0.s8 %v3406
    %v3408 = vlaneseq
    %v3409 = vshrl.u32 %v3408, 7
    %v3410 = vsub.s32 %v3407, %v3409
    %v3411 = vrot.slane %v3395, %v3410
    %v3413 = vunpack.c.l.s4 1966171168
    %v3414 = vunpack.c.0.s8 %v3413
    %v3415 = vlaneseq
    %v3416 = vshrl.u32 %v3415, 7
    %v3417 = vsub.s32 %v3414, %v3416
    %v3418 = vrot.slane %v3396, %v3417
    %v3420 = vunpack.c.l.s4 1966171168
    %v3421 = vunpack.c.0.s8 %v3420
    %v3422 = vlaneseq
    %v3423 = vshrl.u32 %v3422, 7
    %v3424 = vsub.s32 %v3421, %v3423
    %v3425 = vrot.slane %v3397, %v3424
    %v3426 = vcombine.low %v3404, %v3411
    %v3427 = vcombine.low %v3418, %v3425
    %v3429 = vunpack.c.l.s4 1966171168
    %v3430 = vunpack.c.0.s8 %v3429
    %v3431 = vlaneseq
    %v3432 = vshrl.u32 %v3431, 7
    %v3433 = vsub.s32 %v3430, %v3432
    %v3434 = vrot.slane %v3426, %v3433
    %v3436 = vunpack.c.l.s4 1966171168
    %v3437 = vunpack.c.0.s8 %v3436
    %v3438 = vlaneseq
    %v3439 = vshrl.u32 %v3438, 7
    %v3440 = vsub.s32 %v3437, %v3439
    %v3441 = vrot.slane %v3427, %v3440
    %v3442 = vcombine.low %v3434, %v3441
    %v3443 = vcombine.low %v1898, %v1912
    %v3444 = vcombine.low %v1920, %v1922
    %v3445 = vcombine.low %v1905, %v1919
    %v3446 = vcombine.low %v1921, %v1923
    %v3448 = vunpack.c.l.s4 1966171168
    %v3449 = vunpack.c.0.s8 %v3448
    %v3450 = vlaneseq
    %v3451 = vshrl.u32 %v3450, 7
    %v3452 = vsub.s32 %v3449, %v3451
    %v3453 = vrot.slane %v3443, %v3452
    %v3455 = vunpack.c.l.s4 1966171168
    %v3456 = vunpack.c.0.s8 %v3455
    %v3457 = vlaneseq
    %v3458 = vshrl.u32 %v3457, 7
    %v3459 = vsub.s32 %v3456, %v3458
    %v3460 = vrot.slane %v3444, %v3459
    %v3462 = vunpack.c.l.s4 1966171168
    %v3463 = vunpack.c.0.s8 %v3462
    %v3464 = vlaneseq
    %v3465 = vshrl.u32 %v3464, 7
    %v3466 = vsub.s32 %v3463, %v3465
    %v3467 = vrot.slane %v3445, %v3466
    %v3469 = vunpack.c.l.s4 1966171168
    %v3470 = vunpack.c.0.s8 %v3469
    %v3471 = vlaneseq
    %v3472 = vshrl.u32 %v3471, 7
    %v3473 = vsub.s32 %v3470, %v3472
    %v3474 = vrot.slane %v3446, %v3473
    %v3475 = vcombine.low %v3453, %v3460
    %v3476 = vcombine.low %v3467, %v3474
    %v3478 = vunpack.c.l.s4 1966171168
    %v3479 = vunpack.c.0.s8 %v3478
    %v3480 = vlaneseq
    %v3481 = vshrl.u32 %v3480, 7
    %v3482 = vsub.s32 %v3479, %v3481
    %v3483 = vrot.slane %v3475, %v3482
    %v3485 = vunpack.c.l.s4 1966171168
    %v3486 = vunpack.c.0.s8 %v3485
    %v3487 = vlaneseq
    %v3488 = vshrl.u32 %v3487, 7
    %v3489 = vsub.s32 %v3486, %v3488
    %v3490 = vrot.slane %v3476, %v3489
    %v3491 = vcombine.low %v3483, %v3490
    %v3492 = vcombine.low %v1947, %v1961
    %v3493 = vcombine.low %v1969, %v1971
    %v3494 = vcombine.low %v1954, %v1968
    %v3495 = vcombine.low %v1970, %v1972
    %v3497 = vunpack.c.l.s4 1966171168
    %v3498 = vunpack.c.0.s8 %v3497
    %v3499 = vlaneseq
    %v3500 = vshrl.u32 %v3499, 7
    %v3501 = vsub.s32 %v3498, %v3500
    %v3502 = vrot.slane %v3492, %v3501
    %v3504 = vunpack.c.l.s4 1966171168
    %v3505 = vunpack.c.0.s8 %v3504
    %v3506 = vlaneseq
    %v3507 = vshrl.u32 %v3506, 7
    %v3508 = vsub.s32 %v3505, %v3507
    %v3509 = vrot.slane %v3493, %v3508
    %v3511 = vunpack.c.l.s4 1966171168
    %v3512 = vunpack.c.0.s8 %v3511
    %v3513 = vlaneseq
    %v3514 = vshrl.u32 %v3513, 7
    %v3515 = vsub.s32 %v3512, %v3514
    %v3516 = vrot.slane %v3494, %v3515
    %v3518 = vunpack.c.l.s4 1966171168
    %v3519 = vunpack.c.0.s8 %v3518
    %v3520 = vlaneseq
    %v3521 = vshrl.u32 %v3520, 7
    %v3522 = vsub.s32 %v3519, %v3521
    %v3523 = vrot.slane %v3495, %v3522
    %v3524 = vcombine.low %v3502, %v3509
    %v3525 = vcombine.low %v3516, %v3523
    %v3527 = vunpack.c.l.s4 1966171168
    %v3528 = vunpack.c.0.s8 %v3527
    %v3529 = vlaneseq
    %v3530 = vshrl.u32 %v3529, 7
    %v3531 = vsub.s32 %v3528, %v3530
    %v3532 = vrot.slane %v3524, %v3531
    %v3534 = vunpack.c.l.s4 1966171168
    %v3535 = vunpack.c.0.s8 %v3534
    %v3536 = vlaneseq
    %v3537 = vshrl.u32 %v3536, 7
    %v3538 = vsub.s32 %v3535, %v3537
    %v3539 = vrot.slane %v3525, %v3538
    %v3540 = vcombine.low %v3532, %v3539
    %v3541 = vcombine.low %v1996, %v2010
    %v3542 = vcombine.low %v2018, %v2020
    %v3543 = vcombine.low %v2003, %v2017
    %v3544 = vcombine.low %v2019, %v2021
    %v3546 = vunpack.c.l.s4 1966171168
    %v3547 = vunpack.c.0.s8 %v3546
    %v3548 = vlaneseq
    %v3549 = vshrl.u32 %v3548, 7
    %v3550 = vsub.s32 %v3547, %v3549
    %v3551 = vrot.slane %v3541, %v3550
    %v3553 = vunpack.c.l.s4 1966171168
    %v3554 = vunpack.c.0.s8 %v3553
    %v3555 = vlaneseq
    %v3556 = vshrl.u32 %v3555, 7
    %v3557 = vsub.s32 %v3554, %v3556
    %v3558 = vrot.slane %v3542, %v3557
    %v3560 = vunpack.c.l.s4 1966171168
    %v3561 = vunpack.c.0.s8 %v3560
    %v3562 = vlaneseq
    %v3563 = vshrl.u32 %v3562, 7
    %v3564 = vsub.s32 %v3561, %v3563
    %v3565 = vrot.slane %v3543, %v3564
    %v3567 = vunpack.c.l.s4 1966171168
    %v3568 = vunpack.c.0.s8 %v3567
    %v3569 = vlaneseq
    %v3570 = vshrl.u32 %v3569, 7
    %v3571 = vsub.s32 %v3568, %v3570
    %v3572 = vrot.slane %v3544, %v3571
    %v3573 = vcombine.low %v3551, %v3558
    %v3574 = vcombine.low %v3565, %v3572
    %v3576 = vunpack.c.l.s4 1966171168
    %v3577 = vunpack.c.0.s8 %v3576
    %v3578 = vlaneseq
    %v3579 = vshrl.u32 %v3578, 7
    %v3580 = vsub.s32 %v3577, %v3579
    %v3581 = vrot.slane %v3573, %v3580
    %v3583 = vunpack.c.l.s4 1966171168
    %v3584 = vunpack.c.0.s8 %v3583
    %v3585 = vlaneseq
    %v3586 = vshrl.u32 %v3585, 7
    %v3587 = vsub.s32 %v3584, %v3586
    %v3588 = vrot.slane %v3574, %v3587
    %v3589 = vcombine.low %v3581, %v3588
    %v3590 = vcombine.low %v2045, %v2059
    %v3591 = vcombine.low %v2067, %v2069
    %v3592 = vcombine.low %v2052, %v2066
    %v3593 = vcombine.low %v2068, %v2070
    %v3595 = vunpack.c.l.s4 1966171168
    %v3596 = vunpack.c.0.s8 %v3595
    %v3597 = vlaneseq
    %v3598 = vshrl.u32 %v3597, 7
    %v3599 = vsub.s32 %v3596, %v3598
    %v3600 = vrot.slane %v3590, %v3599
    %v3602 = vunpack.c.l.s4 1966171168
    %v3603 = vunpack.c.0.s8 %v3602
    %v3604 = vlaneseq
    %v3605 = vshrl.u32 %v3604, 7
    %v3606 = vsub.s32 %v3603, %v3605
    %v3607 = vrot.slane %v3591, %v3606
    %v3609 = vunpack.c.l.s4 1966171168
    %v3610 = vunpack.c.0.s8 %v3609
    %v3611 = vlaneseq
    %v3612 = vshrl.u32 %v3611, 7
    %v3613 = vsub.s32 %v3610, %v3612
    %v3614 = vrot.slane %v3592, %v3613
    %v3616 = vunpack.c.l.s4 1966171168
    %v3617 = vunpack.c.0.s8 %v3616
    %v3618 = vlaneseq
    %v3619 = vshrl.u32 %v3618, 7
    %v3620 = vsub.s32 %v3617, %v3619
    %v3621 = vrot.slane %v3593, %v3620
    %v3622 = vcombine.low %v3600, %v3607
    %v3623 = vcombine.low %v3614, %v3621
    %v3625 = vunpack.c.l.s4 1966171168
    %v3626 = vunpack.c.0.s8 %v3625
    %v3627 = vlaneseq
    %v3628 = vshrl.u32 %v3627, 7
    %v3629 = vsub.s32 %v3626, %v3628
    %v3630 = vrot.slane %v3622, %v3629
    %v3632 = vunpack.c.l.s4 1966171168
    %v3633 = vunpack.c.0.s8 %v3632
    %v3634 = vlaneseq
    %v3635 = vshrl.u32 %v3634, 7
    %v3636 = vsub.s32 %v3633, %v3635
    %v3637 = vrot.slane %v3623, %v3636
    %v3638 = vcombine.low %v3630, %v3637
    %v3639 = vcombine.low %v2094, %v2108
    %v3640 = vcombine.low %v2116, %v2118
    %v3641 = vcombine.low %v2101, %v2115
    %v3642 = vcombine.low %v2117, %v2119
    %v3644 = vunpack.c.l.s4 1966171168
    %v3645 = vunpack.c.0.s8 %v3644
    %v3646 = vlaneseq
    %v3647 = vshrl.u32 %v3646, 7
    %v3648 = vsub.s32 %v3645, %v3647
    %v3649 = vrot.slane %v3639, %v3648
    %v3651 = vunpack.c.l.s4 1966171168
    %v3652 = vunpack.c.0.s8 %v3651
    %v3653 = vlaneseq
    %v3654 = vshrl.u32 %v3653, 7
    %v3655 = vsub.s32 %v3652, %v3654
    %v3656 = vrot.slane %v3640, %v3655
    %v3658 = vunpack.c.l.s4 1966171168
    %v3659 = vunpack.c.0.s8 %v3658
    %v3660 = vlaneseq
    %v3661 = vshrl.u32 %v3660, 7
    %v3662 = vsub.s32 %v3659, %v3661
    %v3663 = vrot.slane %v3641, %v3662
    %v3665 = vunpack.c.l.s4 1966171168
    %v3666 = vunpack.c.0.s8 %v3665
    %v3667 = vlaneseq
    %v3668 = vshrl.u32 %v3667, 7
    %v3669 = vsub.s32 %v3666, %v3668
    %v3670 = vrot.slane %v3642, %v3669
    %v3671 = vcombine.low %v3649, %v3656
    %v3672 = vcombine.low %v3663, %v3670
    %v3674 = vunpack.c.l.s4 1966171168
    %v3675 = vunpack.c.0.s8 %v3674
    %v3676 = vlaneseq
    %v3677 = vshrl.u32 %v3676, 7
    %v3678 = vsub.s32 %v3675, %v3677
    %v3679 = vrot.slane %v3671, %v3678
    %v3681 = vunpack.c.l.s4 1966171168
    %v3682 = vunpack.c.0.s8 %v3681
    %v3683 = vlaneseq
    %v3684 = vshrl.u32 %v3683, 7
    %v3685 = vsub.s32 %v3682, %v3684
    %v3686 = vrot.slane %v3672, %v3685
    %v3687 = vcombine.low %v3679, %v3686
    %v3688 = vcombine.low %v2143, %v2157
    %v3689 = vcombine.low %v2165, %v2167
    %v3690 = vcombine.low %v2150, %v2164
    %v3691 = vcombine.low %v2166, %v2168
    %v3693 = vunpack.c.l.s4 1966171168
    %v3694 = vunpack.c.0.s8 %v3693
    %v3695 = vlaneseq
    %v3696 = vshrl.u32 %v3695, 7
    %v3697 = vsub.s32 %v3694, %v3696
    %v3698 = vrot.slane %v3688, %v3697
    %v3700 = vunpack.c.l.s4 1966171168
    %v3701 = vunpack.c.0.s8 %v3700
    %v3702 = vlaneseq
    %v3703 = vshrl.u32 %v3702, 7
    %v3704 = vsub.s32 %v3701, %v3703
    %v3705 = vrot.slane %v3689, %v3704
    %v3707 = vunpack.c.l.s4 1966171168
    %v3708 = vunpack.c.0.s8 %v3707
    %v3709 = vlaneseq
    %v3710 = vshrl.u32 %v3709, 7
    %v3711 = vsub.s32 %v3708, %v3710
    %v3712 = vrot.slane %v3690, %v3711
    %v3714 = vunpack.c.l.s4 1966171168
    %v3715 = vunpack.c.0.s8 %v3714
    %v3716 = vlaneseq
    %v3717 = vshrl.u32 %v3716, 7
    %v3718 = vsub.s32 %v3715, %v3717
    %v3719 = vrot.slane %v3691, %v3718
    %v3720 = vcombine.low %v3698, %v3705
    %v3721 = vcombine.low %v3712, %v3719
    %v3723 = vunpack.c.l.s4 1966171168
    %v3724 = vunpack.c.0.s8 %v3723
    %v3725 = vlaneseq
    %v3726 = vshrl.u32 %v3725, 7
    %v3727 = vsub.s32 %v3724, %v3726
    %v3728 = vrot.slane %v3720, %v3727
    %v3730 = vunpack.c.l.s4 1966171168
    %v3731 = vunpack.c.0.s8 %v3730
    %v3732 = vlaneseq
    %v3733 = vshrl.u32 %v3732, 7
    %v3734 = vsub.s32 %v3731, %v3733
    %v3735 = vrot.slane %v3721, %v3734
    %v3736 = vcombine.low %v3728, %v3735
    %v3737 = vcombine.low %v2192, %v2206
    %v3738 = vcombine.low %v2214, %v2216
    %v3739 = vcombine.low %v2199, %v2213
    %v3740 = vcombine.low %v2215, %v2217
    %v3742 = vunpack.c.l.s4 1966171168
    %v3743 = vunpack.c.0.s8 %v3742
    %v3744 = vlaneseq
    %v3745 = vshrl.u32 %v3744, 7
    %v3746 = vsub.s32 %v3743, %v3745
    %v3747 = vrot.slane %v3737, %v3746
    %v3749 = vunpack.c.l.s4 1966171168
    %v3750 = vunpack.c.0.s8 %v3749
    %v3751 = vlaneseq
    %v3752 = vshrl.u32 %v3751, 7
    %v3753 = vsub.s32 %v3750, %v3752
    %v3754 = vrot.slane %v3738, %v3753
    %v3756 = vunpack.c.l.s4 1966171168
    %v3757 = vunpack.c.0.s8 %v3756
    %v3758 = vlaneseq
    %v3759 = vshrl.u32 %v3758, 7
    %v3760 = vsub.s32 %v3757, %v3759
    %v3761 = vrot.slane %v3739, %v3760
    %v3763 = vunpack.c.l.s4 1966171168
    %v3764 = vunpack.c.0.s8 %v3763
    %v3765 = vlaneseq
    %v3766 = vshrl.u32 %v3765, 7
    %v3767 = vsub.s32 %v3764, %v3766
    %v3768 = vrot.slane %v3740, %v3767
    %v3769 = vcombine.low %v3747, %v3754
    %v3770 = vcombine.low %v3761, %v3768
    %v3772 = vunpack.c.l.s4 1966171168
    %v3773 = vunpack.c.0.s8 %v3772
    %v3774 = vlaneseq
    %v3775 = vshrl.u32 %v3774, 7
    %v3776 = vsub.s32 %v3773, %v3775
    %v3777 = vrot.slane %v3769, %v3776
    %v3779 = vunpack.c.l.s4 1966171168
    %v3780 = vunpack.c.0.s8 %v3779
    %v3781 = vlaneseq
    %v3782 = vshrl.u32 %v3781, 7
    %v3783 = vsub.s32 %v3780, %v3782
    %v3784 = vrot.slane %v3770, %v3783
    %v3785 = vcombine.low %v3777, %v3784
    %v3786 = vcombine.low %v2241, %v2255
    %v3787 = vcombine.low %v2263, %v2265
    %v3788 = vcombine.low %v2248, %v2262
    %v3789 = vcombine.low %v2264, %v2266
    %v3791 = vunpack.c.l.s4 1966171168
    %v3792 = vunpack.c.0.s8 %v3791
    %v3793 = vlaneseq
    %v3794 = vshrl.u32 %v3793, 7
    %v3795 = vsub.s32 %v3792, %v3794
    %v3796 = vrot.slane %v3786, %v3795
    %v3798 = vunpack.c.l.s4 1966171168
    %v3799 = vunpack.c.0.s8 %v3798
    %v3800 = vlaneseq
    %v3801 = vshrl.u32 %v3800, 7
    %v3802 = vsub.s32 %v3799, %v3801
    %v3803 = vrot.slane %v3787, %v3802
    %v3805 = vunpack.c.l.s4 1966171168
    %v3806 = vunpack.c.0.s8 %v3805
    %v3807 = vlaneseq
    %v3808 = vshrl.u32 %v3807, 7
    %v3809 = vsub.s32 %v3806, %v3808
    %v3810 = vrot.slane %v3788, %v3809
    %v3812 = vunpack.c.l.s4 1966171168
    %v3813 = vunpack.c.0.s8 %v3812
    %v3814 = vlaneseq
    %v3815 = vshrl.u32 %v3814, 7
    %v3816 = vsub.s32 %v3813, %v3815
    %v3817 = vrot.slane %v3789, %v3816
    %v3818 = vcombine.low %v3796, %v3803
    %v3819 = vcombine.low %v3810, %v3817
    %v3821 = vunpack.c.l.s4 1966171168
    %v3822 = vunpack.c.0.s8 %v3821
    %v3823 = vlaneseq
    %v3824 = vshrl.u32 %v3823, 7
    %v3825 = vsub.s32 %v3822, %v3824
    %v3826 = vrot.slane %v3818, %v3825
    %v3828 = vunpack.c.l.s4 1966171168
    %v3829 = vunpack.c.0.s8 %v3828
    %v3830 = vlaneseq
    %v3831 = vshrl.u32 %v3830, 7
    %v3832 = vsub.s32 %v3829, %v3831
    %v3833 = vrot.slane %v3819, %v3832
    %v3834 = vcombine.low %v3826, %v3833
    %v3835 = vcombine.low %v2290, %v2304
    %v3836 = vcombine.low %v2312, %v2314
    %v3837 = vcombine.low %v2297, %v2311
    %v3838 = vcombine.low %v2313, %v2315
    %v3840 = vunpack.c.l.s4 1966171168
    %v3841 = vunpack.c.0.s8 %v3840
    %v3842 = vlaneseq
    %v3843 = vshrl.u32 %v3842, 7
    %v3844 = vsub.s32 %v3841, %v3843
    %v3845 = vrot.slane %v3835, %v3844
    %v3847 = vunpack.c.l.s4 1966171168
    %v3848 = vunpack.c.0.s8 %v3847
    %v3849 = vlaneseq
    %v3850 = vshrl.u32 %v3849, 7
    %v3851 = vsub.s32 %v3848, %v3850
    %v3852 = vrot.slane %v3836, %v3851
    %v3854 = vunpack.c.l.s4 1966171168
    %v3855 = vunpack.c.0.s8 %v3854
    %v3856 = vlaneseq
    %v3857 = vshrl.u32 %v3856, 7
    %v3858 = vsub.s32 %v3855, %v3857
    %v3859 = vrot.slane %v3837, %v3858
    %v3861 = vunpack.c.l.s4 1966171168
    %v3862 = vunpack.c.0.s8 %v3861
    %v3863 = vlaneseq
    %v3864 = vshrl.u32 %v3863, 7
    %v3865 = vsub.s32 %v3862, %v3864
    %v3866 = vrot.slane %v3838, %v3865
    %v3867 = vcombine.low %v3845, %v3852
    %v3868 = vcombine.low %v3859, %v3866
    %v3870 = vunpack.c.l.s4 1966171168
    %v3871 = vunpack.c.0.s8 %v3870
    %v3872 = vlaneseq
    %v3873 = vshrl.u32 %v3872, 7
    %v3874 = vsub.s32 %v3871, %v3873
    %v3875 = vrot.slane %v3867, %v3874
    %v3877 = vunpack.c.l.s4 1966171168
    %v3878 = vunpack.c.0.s8 %v3877
    %v3879 = vlaneseq
    %v3880 = vshrl.u32 %v3879, 7
    %v3881 = vsub.s32 %v3878, %v3880
    %v3882 = vrot.slane %v3868, %v3881
    %v3883 = vcombine.low %v3875, %v3882
    %v3884 = vcombine.low %v2339, %v2353
    %v3885 = vcombine.low %v2361, %v2363
    %v3886 = vcombine.low %v2346, %v2360
    %v3887 = vcombine.low %v2362, %v2364
    %v3889 = vunpack.c.l.s4 1966171168
    %v3890 = vunpack.c.0.s8 %v3889
    %v3891 = vlaneseq
    %v3892 = vshrl.u32 %v3891, 7
    %v3893 = vsub.s32 %v3890, %v3892
    %v3894 = vrot.slane %v3884, %v3893
    %v3896 = vunpack.c.l.s4 1966171168
    %v3897 = vunpack.c.0.s8 %v3896
    %v3898 = vlaneseq
    %v3899 = vshrl.u32 %v3898, 7
    %v3900 = vsub.s32 %v3897, %v3899
    %v3901 = vrot.slane %v3885, %v3900
    %v3903 = vunpack.c.l.s4 1966171168
    %v3904 = vunpack.c.0.s8 %v3903
    %v3905 = vlaneseq
    %v3906 = vshrl.u32 %v3905, 7
    %v3907 = vsub.s32 %v3904, %v3906
    %v3908 = vrot.slane %v3886, %v3907
    %v3910 = vunpack.c.l.s4 1966171168
    %v3911 = vunpack.c.0.s8 %v3910
    %v3912 = vlaneseq
    %v3913 = vshrl.u32 %v3912, 7
    %v3914 = vsub.s32 %v3911, %v3913
    %v3915 = vrot.slane %v3887, %v3914
    %v3916 = vcombine.low %v3894, %v3901
    %v3917 = vcombine.low %v3908, %v3915
    %v3919 = vunpack.c.l.s4 1966171168
    %v3920 = vunpack.c.0.s8 %v3919
    %v3921 = vlaneseq
    %v3922 = vshrl.u32 %v3921, 7
    %v3923 = vsub.s32 %v3920, %v3922
    %v3924 = vrot.slane %v3916, %v3923
    %v3926 = vunpack.c.l.s4 1966171168
    %v3927 = vunpack.c.0.s8 %v3926
    %v3928 = vlaneseq
    %v3929 = vshrl.u32 %v3928, 7
    %v3930 = vsub.s32 %v3927, %v3929
    %v3931 = vrot.slane %v3917, %v3930
    %v3932 = vcombine.low %v3924, %v3931
    %v3933 = vcombine.low %v2388, %v2402
    %v3934 = vcombine.low %v2410, %v2412
    %v3935 = vcombine.low %v2395, %v2409
    %v3936 = vcombine.low %v2411, %v2413
    %v3938 = vunpack.c.l.s4 1966171168
    %v3939 = vunpack.c.0.s8 %v3938
    %v3940 = vlaneseq
    %v3941 = vshrl.u32 %v3940, 7
    %v3942 = vsub.s32 %v3939, %v3941
    %v3943 = vrot.slane %v3933, %v3942
    %v3945 = vunpack.c.l.s4 1966171168
    %v3946 = vunpack.c.0.s8 %v3945
    %v3947 = vlaneseq
    %v3948 = vshrl.u32 %v3947, 7
    %v3949 = vsub.s32 %v3946, %v3948
    %v3950 = vrot.slane %v3934, %v3949
    %v3952 = vunpack.c.l.s4 1966171168
    %v3953 = vunpack.c.0.s8 %v3952
    %v3954 = vlaneseq
    %v3955 = vshrl.u32 %v3954, 7
    %v3956 = vsub.s32 %v3953, %v3955
    %v3957 = vrot.slane %v3935, %v3956
    %v3959 = vunpack.c.l.s4 1966171168
    %v3960 = vunpack.c.0.s8 %v3959
    %v3961 = vlaneseq
    %v3962 = vshrl.u32 %v3961, 7
    %v3963 = vsub.s32 %v3960, %v3962
    %v3964 = vrot.slane %v3936, %v3963
    %v3965 = vcombine.low %v3943, %v3950
    %v3966 = vcombine.low %v3957, %v3964
    %v3968 = vunpack.c.l.s4 1966171168
    %v3969 = vunpack.c.0.s8 %v3968
    %v3970 = vlaneseq
    %v3971 = vshrl.u32 %v3970, 7
    %v3972 = vsub.s32 %v3969, %v3971
    %v3973 = vrot.slane %v3965, %v3972
    %v3975 = vunpack.c.l.s4 1966171168
    %v3976 = vunpack.c.0.s8 %v3975
    %v3977 = vlaneseq
    %v3978 = vshrl.u32 %v3977, 7
    %v3979 = vsub.s32 %v3976, %v3978
    %v3980 = vrot.slane %v3966, %v3979
    %v3981 = vcombine.low %v3973, %v3980
    %v3982 = vcombine.low %v2437, %v2451
    %v3983 = vcombine.low %v2459, %v2461
    %v3984 = vcombine.low %v2444, %v2458
    %v3985 = vcombine.low %v2460, %v2462
    %v3987 = vunpack.c.l.s4 1966171168
    %v3988 = vunpack.c.0.s8 %v3987
    %v3989 = vlaneseq
    %v3990 = vshrl.u32 %v3989, 7
    %v3991 = vsub.s32 %v3988, %v3990
    %v3992 = vrot.slane %v3982, %v3991
    %v3994 = vunpack.c.l.s4 1966171168
    %v3995 = vunpack.c.0.s8 %v3994
    %v3996 = vlaneseq
    %v3997 = vshrl.u32 %v3996, 7
    %v3998 = vsub.s32 %v3995, %v3997
    %v3999 = vrot.slane %v3983, %v3998
    %v4001 = vunpack.c.l.s4 1966171168
    %v4002 = vunpack.c.0.s8 %v4001
    %v4003 = vlaneseq
    %v4004 = vshrl.u32 %v4003, 7
    %v4005 = vsub.s32 %v4002, %v4004
    %v4006 = vrot.slane %v3984, %v4005
    %v4008 = vunpack.c.l.s4 1966171168
    %v4009 = vunpack.c.0.s8 %v4008
    %v4010 = vlaneseq
    %v4011 = vshrl.u32 %v4010, 7
    %v4012 = vsub.s32 %v4009, %v4011
    %v4013 = vrot.slane %v3985, %v4012
    %v4014 = vcombine.low %v3992, %v3999
    %v4015 = vcombine.low %v4006, %v4013
    %v4017 = vunpack.c.l.s4 1966171168
    %v4018 = vunpack.c.0.s8 %v4017
    %v4019 = vlaneseq
    %v4020 = vshrl.u32 %v4019, 7
    %v4021 = vsub.s32 %v4018, %v4020
    %v4022 = vrot.slane %v4014, %v4021
    %v4024 = vunpack.c.l.s4 1966171168
    %v4025 = vunpack.c.0.s8 %v4024
    %v4026 = vlaneseq
    %v4027 = vshrl.u32 %v4026, 7
    %v4028 = vsub.s32 %v4025, %v4027
    %v4029 = vrot.slane %v4015, %v4028
    %v4030 = vcombine.low %v4022, %v4029
    %v4031 = vcombine.low %v2486, %v2500
    %v4032 = vcombine.low %v2508, %v2510
    %v4033 = vcombine.low %v2493, %v2507
    %v4034 = vcombine.low %v2509, %v2511
    %v4036 = vunpack.c.l.s4 1966171168
    %v4037 = vunpack.c.0.s8 %v4036
    %v4038 = vlaneseq
    %v4039 = vshrl.u32 %v4038, 7
    %v4040 = vsub.s32 %v4037, %v4039
    %v4041 = vrot.slane %v4031, %v4040
    %v4043 = vunpack.c.l.s4 1966171168
    %v4044 = vunpack.c.0.s8 %v4043
    %v4045 = vlaneseq
    %v4046 = vshrl.u32 %v4045, 7
    %v4047 = vsub.s32 %v4044, %v4046
    %v4048 = vrot.slane %v4032, %v4047
    %v4050 = vunpack.c.l.s4 1966171168
    %v4051 = vunpack.c.0.s8 %v4050
    %v4052 = vlaneseq
    %v4053 = vshrl.u32 %v4052, 7
    %v4054 = vsub.s32 %v4051, %v4053
    %v4055 = vrot.slane %v4033, %v4054
    %v4057 = vunpack.c.l.s4 1966171168
    %v4058 = vunpack.c.0.s8 %v4057
    %v4059 = vlaneseq
    %v4060 = vshrl.u32 %v4059, 7
    %v4061 = vsub.s32 %v4058, %v4060
    %v4062 = vrot.slane %v4034, %v4061
    %v4063 = vcombine.low %v4041, %v4048
    %v4064 = vcombine.low %v4055, %v4062
    %v4066 = vunpack.c.l.s4 1966171168
    %v4067 = vunpack.c.0.s8 %v4066
    %v4068 = vlaneseq
    %v4069 = vshrl.u32 %v4068, 7
    %v4070 = vsub.s32 %v4067, %v4069
    %v4071 = vrot.slane %v4063, %v4070
    %v4073 = vunpack.c.l.s4 1966171168
    %v4074 = vunpack.c.0.s8 %v4073
    %v4075 = vlaneseq
    %v4076 = vshrl.u32 %v4075, 7
    %v4077 = vsub.s32 %v4074, %v4076
    %v4078 = vrot.slane %v4064, %v4077
    %v4079 = vcombine.low %v4071, %v4078
    %v4080 = vcombine.low %v2535, %v2549
    %v4081 = vcombine.low %v2557, %v2559
    %v4082 = vcombine.low %v2542, %v2556
    %v4083 = vcombine.low %v2558, %v2560
    %v4085 = vunpack.c.l.s4 1966171168
    %v4086 = vunpack.c.0.s8 %v4085
    %v4087 = vlaneseq
    %v4088 = vshrl.u32 %v4087, 7
    %v4089 = vsub.s32 %v4086, %v4088
    %v4090 = vrot.slane %v4080, %v4089
    %v4092 = vunpack.c.l.s4 1966171168
    %v4093 = vunpack.c.0.s8 %v4092
    %v4094 = vlaneseq
    %v4095 = vshrl.u32 %v4094, 7
    %v4096 = vsub.s32 %v4093, %v4095
    %v4097 = vrot.slane %v4081, %v4096
    %v4099 = vunpack.c.l.s4 1966171168
    %v4100 = vunpack.c.0.s8 %v4099
    %v4101 = vlaneseq
    %v4102 = vshrl.u32 %v4101, 7
    %v4103 = vsub.s32 %v4100, %v4102
    %v4104 = vrot.slane %v4082, %v4103
    %v4106 = vunpack.c.l.s4 1966171168
    %v4107 = vunpack.c.0.s8 %v4106
    %v4108 = vlaneseq
    %v4109 = vshrl.u32 %v4108, 7
    %v4110 = vsub.s32 %v4107, %v4109
    %v4111 = vrot.slane %v4083, %v4110
    %v4112 = vcombine.low %v4090, %v4097
    %v4113 = vcombine.low %v4104, %v4111
    %v4115 = vunpack.c.l.s4 1966171168
    %v4116 = vunpack.c.0.s8 %v4115
    %v4117 = vlaneseq
    %v4118 = vshrl.u32 %v4117, 7
    %v4119 = vsub.s32 %v4116, %v4118
    %v4120 = vrot.slane %v4112, %v4119
    %v4122 = vunpack.c.l.s4 1966171168
    %v4123 = vunpack.c.0.s8 %v4122
    %v4124 = vlaneseq
    %v4125 = vshrl.u32 %v4124, 7
    %v4126 = vsub.s32 %v4123, %v4125
    %v4127 = vrot.slane %v4113, %v4126
    %v4128 = vcombine.low %v4120, %v4127
    %v4129 = vcombine.low %v2584, %v2598
    %v4130 = vcombine.low %v2606, %v2608
    %v4131 = vcombine.low %v2591, %v2605
    %v4132 = vcombine.low %v2607, %v2609
    %v4134 = vunpack.c.l.s4 1966171168
    %v4135 = vunpack.c.0.s8 %v4134
    %v4136 = vlaneseq
    %v4137 = vshrl.u32 %v4136, 7
    %v4138 = vsub.s32 %v4135, %v4137
    %v4139 = vrot.slane %v4129, %v4138
    %v4141 = vunpack.c.l.s4 1966171168
    %v4142 = vunpack.c.0.s8 %v4141
    %v4143 = vlaneseq
    %v4144 = vshrl.u32 %v4143, 7
    %v4145 = vsub.s32 %v4142, %v4144
    %v4146 = vrot.slane %v4130, %v4145
    %v4148 = vunpack.c.l.s4 1966171168
    %v4149 = vunpack.c.0.s8 %v4148
    %v4150 = vlaneseq
    %v4151 = vshrl.u32 %v4150, 7
    %v4152 = vsub.s32 %v4149, %v4151
    %v4153 = vrot.slane %v4131, %v4152
    %v4155 = vunpack.c.l.s4 1966171168
    %v4156 = vunpack.c.0.s8 %v4155
    %v4157 = vlaneseq
    %v4158 = vshrl.u32 %v4157, 7
    %v4159 = vsub.s32 %v4156, %v4158
    %v4160 = vrot.slane %v4132, %v4159
    %v4161 = vcombine.low %v4139, %v4146
    %v4162 = vcombine.low %v4153, %v4160
    %v4164 = vunpack.c.l.s4 1966171168
    %v4165 = vunpack.c.0.s8 %v4164
    %v4166 = vlaneseq
    %v4167 = vshrl.u32 %v4166, 7
    %v4168 = vsub.s32 %v4165, %v4167
    %v4169 = vrot.slane %v4161, %v4168
    %v4171 = vunpack.c.l.s4 1966171168
    %v4172 = vunpack.c.0.s8 %v4171
    %v4173 = vlaneseq
    %v4174 = vshrl.u32 %v4173, 7
    %v4175 = vsub.s32 %v4172, %v4174
    %v4176 = vrot.slane %v4162, %v4175
    %v4177 = vcombine.low %v4169, %v4176
    %v4178 = vcombine.low %v2633, %v2647
    %v4179 = vcombine.low %v2655, %v2657
    %v4180 = vcombine.low %v2640, %v2654
    %v4181 = vcombine.low %v2656, %v2658
    %v4183 = vunpack.c.l.s4 1966171168
    %v4184 = vunpack.c.0.s8 %v4183
    %v4185 = vlaneseq
    %v4186 = vshrl.u32 %v4185, 7
    %v4187 = vsub.s32 %v4184, %v4186
    %v4188 = vrot.slane %v4178, %v4187
    %v4190 = vunpack.c.l.s4 1966171168
    %v4191 = vunpack.c.0.s8 %v4190
    %v4192 = vlaneseq
    %v4193 = vshrl.u32 %v4192, 7
    %v4194 = vsub.s32 %v4191, %v4193
    %v4195 = vrot.slane %v4179, %v4194
    %v4197 = vunpack.c.l.s4 1966171168
    %v4198 = vunpack.c.0.s8 %v4197
    %v4199 = vlaneseq
    %v4200 = vshrl.u32 %v4199, 7
    %v4201 = vsub.s32 %v4198, %v4200
    %v4202 = vrot.slane %v4180, %v4201
    %v4204 = vunpack.c.l.s4 1966171168
    %v4205 = vunpack.c.0.s8 %v4204
    %v4206 = vlaneseq
    %v4207 = vshrl.u32 %v4206, 7
    %v4208 = vsub.s32 %v4205, %v4207
    %v4209 = vrot.slane %v4181, %v4208
    %v4210 = vcombine.low %v4188, %v4195
    %v4211 = vcombine.low %v4202, %v4209
    %v4213 = vunpack.c.l.s4 1966171168
    %v4214 = vunpack.c.0.s8 %v4213
    %v4215 = vlaneseq
    %v4216 = vshrl.u32 %v4215, 7
    %v4217 = vsub.s32 %v4214, %v4216
    %v4218 = vrot.slane %v4210, %v4217
    %v4220 = vunpack.c.l.s4 1966171168
    %v4221 = vunpack.c.0.s8 %v4220
    %v4222 = vlaneseq
    %v4223 = vshrl.u32 %v4222, 7
    %v4224 = vsub.s32 %v4221, %v4223
    %v4225 = vrot.slane %v4211, %v4224
    %v4226 = vcombine.low %v4218, %v4225
    %v4227 = vcombine.low %v2682, %v2696
    %v4228 = vcombine.low %v2704, %v2706
    %v4229 = vcombine.low %v2689, %v2703
    %v4230 = vcombine.low %v2705, %v2707
    %v4232 = vunpack.c.l.s4 1966171168
    %v4233 = vunpack.c.0.s8 %v4232
    %v4234 = vlaneseq
    %v4235 = vshrl.u32 %v4234, 7
    %v4236 = vsub.s32 %v4233, %v4235
    %v4237 = vrot.slane %v4227, %v4236
    %v4239 = vunpack.c.l.s4 1966171168
    %v4240 = vunpack.c.0.s8 %v4239
    %v4241 = vlaneseq
    %v4242 = vshrl.u32 %v4241, 7
    %v4243 = vsub.s32 %v4240, %v4242
    %v4244 = vrot.slane %v4228, %v4243
    %v4246 = vunpack.c.l.s4 1966171168
    %v4247 = vunpack.c.0.s8 %v4246
    %v4248 = vlaneseq
    %v4249 = vshrl.u32 %v4248, 7
    %v4250 = vsub.s32 %v4247, %v4249
    %v4251 = vrot.slane %v4229, %v4250
    %v4253 = vunpack.c.l.s4 1966171168
    %v4254 = vunpack.c.0.s8 %v4253
    %v4255 = vlaneseq
    %v4256 = vshrl.u32 %v4255, 7
    %v4257 = vsub.s32 %v4254, %v4256
    %v4258 = vrot.slane %v4230, %v4257
    %v4259 = vcombine.low %v4237, %v4244
    %v4260 = vcombine.low %v4251, %v4258
    %v4262 = vunpack.c.l.s4 1966171168
    %v4263 = vunpack.c.0.s8 %v4262
    %v4264 = vlaneseq
    %v4265 = vshrl.u32 %v4264, 7
    %v4266 = vsub.s32 %v4263, %v4265
    %v4267 = vrot.slane %v4259, %v4266
    %v4269 = vunpack.c.l.s4 1966171168
    %v4270 = vunpack.c.0.s8 %v4269
    %v4271 = vlaneseq
    %v4272 = vshrl.u32 %v4271, 7
    %v4273 = vsub.s32 %v4270, %v4272
    %v4274 = vrot.slane %v4260, %v4273
    %v4275 = vcombine.low %v4267, %v4274
    %v4276 = vcombine.low %v2731, %v2745
    %v4277 = vcombine.low %v2753, %v2755
    %v4278 = vcombine.low %v2738, %v2752
    %v4279 = vcombine.low %v2754, %v2756
    %v4281 = vunpack.c.l.s4 1966171168
    %v4282 = vunpack.c.0.s8 %v4281
    %v4283 = vlaneseq
    %v4284 = vshrl.u32 %v4283, 7
    %v4285 = vsub.s32 %v4282, %v4284
    %v4286 = vrot.slane %v4276, %v4285
    %v4288 = vunpack.c.l.s4 1966171168
    %v4289 = vunpack.c.0.s8 %v4288
    %v4290 = vlaneseq
    %v4291 = vshrl.u32 %v4290, 7
    %v4292 = vsub.s32 %v4289, %v4291
    %v4293 = vrot.slane %v4277, %v4292
    %v4295 = vunpack.c.l.s4 1966171168
    %v4296 = vunpack.c.0.s8 %v4295
    %v4297 = vlaneseq
    %v4298 = vshrl.u32 %v4297, 7
    %v4299 = vsub.s32 %v4296, %v4298
    %v4300 = vrot.slane %v4278, %v4299
    %v4302 = vunpack.c.l.s4 1966171168
    %v4303 = vunpack.c.0.s8 %v4302
    %v4304 = vlaneseq
    %v4305 = vshrl.u32 %v4304, 7
    %v4306 = vsub.s32 %v4303, %v4305
    %v4307 = vrot.slane %v4279, %v4306
    %v4308 = vcombine.low %v4286, %v4293
    %v4309 = vcombine.low %v4300, %v4307
    %v4311 = vunpack.c.l.s4 1966171168
    %v4312 = vunpack.c.0.s8 %v4311
    %v4313 = vlaneseq
    %v4314 = vshrl.u32 %v4313, 7
    %v4315 = vsub.s32 %v4312, %v4314
    %v4316 = vrot.slane %v4308, %v4315
    %v4318 = vunpack.c.l.s4 1966171168
    %v4319 = vunpack.c.0.s8 %v4318
    %v4320 = vlaneseq
    %v4321 = vshrl.u32 %v4320, 7
    %v4322 = vsub.s32 %v4319, %v4321
    %v4323 = vrot.slane %v4309, %v4322
    %v4324 = vcombine.low %v4316, %v4323
    %v4325 = vcombine.low %v2780, %v2794
    %v4326 = vcombine.low %v2802, %v2804
    %v4327 = vcombine.low %v2787, %v2801
    %v4328 = vcombine.low %v2803, %v2805
    %v4330 = vunpack.c.l.s4 1966171168
    %v4331 = vunpack.c.0.s8 %v4330
    %v4332 = vlaneseq
    %v4333 = vshrl.u32 %v4332, 7
    %v4334 = vsub.s32 %v4331, %v4333
    %v4335 = vrot.slane %v4325, %v4334
    %v4337 = vunpack.c.l.s4 1966171168
    %v4338 = vunpack.c.0.s8 %v4337
    %v4339 = vlaneseq
    %v4340 = vshrl.u32 %v4339, 7
    %v4341 = vsub.s32 %v4338, %v4340
    %v4342 = vrot.slane %v4326, %v4341
    %v4344 = vunpack.c.l.s4 1966171168
    %v4345 = vunpack.c.0.s8 %v4344
    %v4346 = vlaneseq
    %v4347 = vshrl.u32 %v4346, 7
    %v4348 = vsub.s32 %v4345, %v4347
    %v4349 = vrot.slane %v4327, %v4348
    %v4351 = vunpack.c.l.s4 1966171168
    %v4352 = vunpack.c.0.s8 %v4351
    %v4353 = vlaneseq
    %v4354 = vshrl.u32 %v4353, 7
    %v4355 = vsub.s32 %v4352, %v4354
    %v4356 = vrot.slane %v4328, %v4355
    %v4357 = vcombine.low %v4335, %v4342
    %v4358 = vcombine.low %v4349, %v4356
    %v4360 = vunpack.c.l.s4 1966171168
    %v4361 = vunpack.c.0.s8 %v4360
    %v4362 = vlaneseq
    %v4363 = vshrl.u32 %v4362, 7
    %v4364 = vsub.s32 %v4361, %v4363
    %v4365 = vrot.slane %v4357, %v4364
    %v4367 = vunpack.c.l.s4 1966171168
    %v4368 = vunpack.c.0.s8 %v4367
    %v4369 = vlaneseq
    %v4370 = vshrl.u32 %v4369, 7
    %v4371 = vsub.s32 %v4368, %v4370
    %v4372 = vrot.slane %v4358, %v4371
    %v4373 = vcombine.low %v4365, %v4372
    %v4374 = vcombine.low %v2829, %v2843
    %v4375 = vcombine.low %v2851, %v2853
    %v4376 = vcombine.low %v2836, %v2850
    %v4377 = vcombine.low %v2852, %v2854
    %v4379 = vunpack.c.l.s4 1966171168
    %v4380 = vunpack.c.0.s8 %v4379
    %v4381 = vlaneseq
    %v4382 = vshrl.u32 %v4381, 7
    %v4383 = vsub.s32 %v4380, %v4382
    %v4384 = vrot.slane %v4374, %v4383
    %v4386 = vunpack.c.l.s4 1966171168
    %v4387 = vunpack.c.0.s8 %v4386
    %v4388 = vlaneseq
    %v4389 = vshrl.u32 %v4388, 7
    %v4390 = vsub.s32 %v4387, %v4389
    %v4391 = vrot.slane %v4375, %v4390
    %v4393 = vunpack.c.l.s4 1966171168
    %v4394 = vunpack.c.0.s8 %v4393
    %v4395 = vlaneseq
    %v4396 = vshrl.u32 %v4395, 7
    %v4397 = vsub.s32 %v4394, %v4396
    %v4398 = vrot.slane %v4376, %v4397
    %v4400 = vunpack.c.l.s4 1966171168
    %v4401 = vunpack.c.0.s8 %v4400
    %v4402 = vlaneseq
    %v4403 = vshrl.u32 %v4402, 7
    %v4404 = vsub.s32 %v4401, %v4403
    %v4405 = vrot.slane %v4377, %v4404
    %v4406 = vcombine.low %v4384, %v4391
    %v4407 = vcombine.low %v4398, %v4405
    %v4409 = vunpack.c.l.s4 1966171168
    %v4410 = vunpack.c.0.s8 %v4409
    %v4411 = vlaneseq
    %v4412 = vshrl.u32 %v4411, 7
    %v4413 = vsub.s32 %v4410, %v4412
    %v4414 = vrot.slane %v4406, %v4413
    %v4416 = vunpack.c.l.s4 1966171168
    %v4417 = vunpack.c.0.s8 %v4416
    %v4418 = vlaneseq
    %v4419 = vshrl.u32 %v4418, 7
    %v4420 = vsub.s32 %v4417, %v4419
    %v4421 = vrot.slane %v4407, %v4420
    %v4422 = vcombine.low %v4414, %v4421
    %4423 = vset.pattern.permute.xlu0 32
    %4424 = vperm.xlu0 %4423, %v2903
    %v4425 = vpop.permute.xlu0 %4424
    %4426 = vset.pattern.permute.xlu0 32
    %4427 = vperm.xlu0 %4426, %v2952
    %v4428 = vpop.permute.xlu0 %4427
    %4429 = vset.pattern.permute.xlu0 32
    %4430 = vperm.xlu0 %4429, %v3001
    %v4431 = vpop.permute.xlu0 %4430
    %4432 = vset.pattern.permute.xlu0 32
    %4433 = vperm.xlu0 %4432, %v3050
    %v4434 = vpop.permute.xlu0 %4433
    %4435 = vset.pattern.permute.xlu0 32
    %4436 = vperm.xlu0 %4435, %v3099
    %v4437 = vpop.permute.xlu0 %4436
    %4438 = vset.pattern.permute.xlu0 32
    %4439 = vperm.xlu0 %4438, %v3148
    %v4440 = vpop.permute.xlu0 %4439
    %4441 = vset.pattern.permute.xlu0 32
    %4442 = vperm.xlu0 %4441, %v3197
    %v4443 = vpop.permute.xlu0 %4442
    %4444 = vset.pattern.permute.xlu0 32
    %4445 = vperm.xlu0 %4444, %v3246
    %v4446 = vpop.permute.xlu0 %4445
    %4447 = vset.pattern.permute.xlu0 32
    %4448 = vperm.xlu0 %4447, %v3295
    %v4449 = vpop.permute.xlu0 %4448
    %4450 = vset.pattern.permute.xlu0 32
    %4451 = vperm.xlu0 %4450, %v3344
    %v4452 = vpop.permute.xlu0 %4451
    %4453 = vset.pattern.permute.xlu0 32
    %4454 = vperm.xlu0 %4453, %v3393
    %v4455 = vpop.permute.xlu0 %4454
    %4456 = vset.pattern.permute.xlu0 32
    %4457 = vperm.xlu0 %4456, %v3442
    %v4458 = vpop.permute.xlu0 %4457
    %4459 = vset.pattern.permute.xlu0 32
    %4460 = vperm.xlu0 %4459, %v3491
    %v4461 = vpop.permute.xlu0 %4460
    %4462 = vset.pattern.permute.xlu0 32
    %4463 = vperm.xlu0 %4462, %v3540
    %v4464 = vpop.permute.xlu0 %4463
    %4465 = vset.pattern.permute.xlu0 32
    %4466 = vperm.xlu0 %4465, %v3589
    %v4467 = vpop.permute.xlu0 %4466
    %4468 = vset.pattern.permute.xlu0 32
    %4469 = vperm.xlu0 %4468, %v3638
    %v4470 = vpop.permute.xlu0 %4469
    %4471 = vset.pattern.permute.xlu0 32
    %4472 = vperm.xlu0 %4471, %v3687
    %v4473 = vpop.permute.xlu0 %4472
    %4474 = vset.pattern.permute.xlu0 32
    %4475 = vperm.xlu0 %4474, %v3736
    %v4476 = vpop.permute.xlu0 %4475
    %4477 = vset.pattern.permute.xlu0 32
    %4478 = vperm.xlu0 %4477, %v3785
    %v4479 = vpop.permute.xlu0 %4478
    %4480 = vset.pattern.permute.xlu0 32
    %4481 = vperm.xlu0 %4480, %v3834
    %v4482 = vpop.permute.xlu0 %4481
    %4483 = vset.pattern.permute.xlu0 32
    %4484 = vperm.xlu0 %4483, %v3883
    %v4485 = vpop.permute.xlu0 %4484
    %4486 = vset.pattern.permute.xlu0 32
    %4487 = vperm.xlu0 %4486, %v3932
    %v4488 = vpop.permute.xlu0 %4487
    %4489 = vset.pattern.permute.xlu0 32
    %4490 = vperm.xlu0 %4489, %v3981
    %v4491 = vpop.permute.xlu0 %4490
    %4492 = vset.pattern.permute.xlu0 32
    %4493 = vperm.xlu0 %4492, %v4030
    %v4494 = vpop.permute.xlu0 %4493
    %4495 = vset.pattern.permute.xlu0 32
    %4496 = vperm.xlu0 %4495, %v4079
    %v4497 = vpop.permute.xlu0 %4496
    %4498 = vset.pattern.permute.xlu0 32
    %4499 = vperm.xlu0 %4498, %v4128
    %v4500 = vpop.permute.xlu0 %4499
    %4501 = vset.pattern.permute.xlu0 32
    %4502 = vperm.xlu0 %4501, %v4177
    %v4503 = vpop.permute.xlu0 %4502
    %4504 = vset.pattern.permute.xlu0 32
    %4505 = vperm.xlu0 %4504, %v4226
    %v4506 = vpop.permute.xlu0 %4505
    %4507 = vset.pattern.permute.xlu0 32
    %4508 = vperm.xlu0 %4507, %v4275
    %v4509 = vpop.permute.xlu0 %4508
    %4510 = vset.pattern.permute.xlu0 32
    %4511 = vperm.xlu0 %4510, %v4324
    %v4512 = vpop.permute.xlu0 %4511
    %4513 = vset.pattern.permute.xlu0 32
    %4514 = vperm.xlu0 %4513, %v4373
    %v4515 = vpop.permute.xlu0 %4514
    %4516 = vset.pattern.permute.xlu0 32
    %4517 = vperm.xlu0 %4516, %v4422
    %v4518 = vpop.permute.xlu0 %4517
    %v4519 = vlaneseq
    %v4520 = vand.u32 %v4519, 127
    %v4521 = vlaneseq
    %v4522 = vshrl.u32 %v4521, 7
    %v4523 = vsub.s32 %v4520, %v4522
    %v4524 = vrot.slane %v4425, %v4523
    %v4525 = vadd.s32 %v4520, 4294967288
    %v4526 = vlaneseq
    %v4527 = vshrl.u32 %v4526, 7
    %v4528 = vsub.s32 %v4525, %v4527
    %v4529 = vrot.slane %v4428, %v4528
    %vm4530 = vcmask 130112
    %v4531 = vsel %vm4530, %v4529, %v4524
    %v4532 = vadd.s32 %v4520, 4294967280
    %v4533 = vlaneseq
    %v4534 = vshrl.u32 %v4533, 7
    %v4535 = vsub.s32 %v4532, %v4534
    %v4536 = vrot.slane %v4431, %v4535
    %vm4537 = vcmask 195712
    %v4538 = vsel %vm4537, %v4536, %v4531
    %v4539 = vadd.s32 %v4520, 4294967272
    %v4540 = vlaneseq
    %v4541 = vshrl.u32 %v4540, 7
    %v4542 = vsub.s32 %v4539, %v4541
    %v4543 = vrot.slane %v4434, %v4542
    %vm4544 = vcmask 261312
    %v4545 = vsel %vm4544, %v4543, %v4538
    %v4546 = vadd.s32 %v4520, 4294967264
    %v4547 = vlaneseq
    %v4548 = vshrl.u32 %v4547, 7
    %v4549 = vsub.s32 %v4546, %v4548
    %v4550 = vrot.slane %v4437, %v4549
    %vm4551 = vcmask 326912
    %v4552 = vsel %vm4551, %v4550, %v4545
    %v4553 = vadd.s32 %v4520, 4294967256
    %v4554 = vlaneseq
    %v4555 = vshrl.u32 %v4554, 7
    %v4556 = vsub.s32 %v4553, %v4555
    %v4557 = vrot.slane %v4440, %v4556
    %vm4558 = vcmask 392512
    %v4559 = vsel %vm4558, %v4557, %v4552
    %v4560 = vadd.s32 %v4520, 4294967248
    %v4561 = vlaneseq
    %v4562 = vshrl.u32 %v4561, 7
    %v4563 = vsub.s32 %v4560, %v4562
    %v4564 = vrot.slane %v4443, %v4563
    %vm4565 = vcmask 458112
    %v4566 = vsel %vm4565, %v4564, %v4559
    %v4567 = vadd.s32 %v4520, 4294967240
    %v4568 = vlaneseq
    %v4569 = vshrl.u32 %v4568, 7
    %v4570 = vsub.s32 %v4567, %v4569
    %v4571 = vrot.slane %v4446, %v4570
    %vm4572 = vcmask 523712
    %v4573 = vsel %vm4572, %v4571, %v4566
    %v4574 = vadd.s32 %v4520, 4294967232
    %v4575 = vlaneseq
    %v4576 = vshrl.u32 %v4575, 7
    %v4577 = vsub.s32 %v4574, %v4576
    %v4578 = vrot.slane %v4449, %v4577
    %vm4579 = vcmask 589312
    %v4580 = vsel %vm4579, %v4578, %v4573
    %v4581 = vadd.s32 %v4520, 4294967224
    %v4582 = vlaneseq
    %v4583 = vshrl.u32 %v4582, 7
    %v4584 = vsub.s32 %v4581, %v4583
    %v4585 = vrot.slane %v4452, %v4584
    %vm4586 = vcmask 654912
    %v4587 = vsel %vm4586, %v4585, %v4580
    %v4588 = vadd.s32 %v4520, 4294967216
    %v4589 = vlaneseq
    %v4590 = vshrl.u32 %v4589, 7
    %v4591 = vsub.s32 %v4588, %v4590
    %v4592 = vrot.slane %v4455, %v4591
    %vm4593 = vcmask 720512
    %v4594 = vsel %vm4593, %v4592, %v4587
    %v4595 = vadd.s32 %v4520, 4294967208
    %v4596 = vlaneseq
    %v4597 = vshrl.u32 %v4596, 7
    %v4598 = vsub.s32 %v4595, %v4597
    %v4599 = vrot.slane %v4458, %v4598
    %vm4600 = vcmask 786112
    %v4601 = vsel %vm4600, %v4599, %v4594
    %v4602 = vadd.s32 %v4520, 4294967200
    %v4603 = vlaneseq
    %v4604 = vshrl.u32 %v4603, 7
    %v4605 = vsub.s32 %v4602, %v4604
    %v4606 = vrot.slane %v4461, %v4605
    %vm4607 = vcmask 851712
    %v4608 = vsel %vm4607, %v4606, %v4601
    %v4609 = vadd.s32 %v4520, 4294967192
    %v4610 = vlaneseq
    %v4611 = vshrl.u32 %v4610, 7
    %v4612 = vsub.s32 %v4609, %v4611
    %v4613 = vrot.slane %v4464, %v4612
    %vm4614 = vcmask 917312
    %v4615 = vsel %vm4614, %v4613, %v4608
    %v4616 = vadd.s32 %v4520, 4294967184
    %v4617 = vlaneseq
    %v4618 = vshrl.u32 %v4617, 7
    %v4619 = vsub.s32 %v4616, %v4618
    %v4620 = vrot.slane %v4467, %v4619
    %vm4621 = vcmask 982912
    %v4622 = vsel %vm4621, %v4620, %v4615
    %v4623 = vadd.s32 %v4520, 4294967176
    %v4624 = vlaneseq
    %v4625 = vshrl.u32 %v4624, 7
    %v4626 = vsub.s32 %v4623, %v4625
    %v4627 = vrot.slane %v4470, %v4626
    %vm4628 = vcmask 1048512
    %v4629 = vsel %vm4628, %v4627, %v4622
    %v4630 = vlaneseq
    %v4631 = vshrl.u32 %v4630, 7
    %v4632 = vsub.s32 %v4520, %v4631
    %v4633 = vrot.slane %v4473, %v4632
    %v4634 = vlaneseq
    %v4635 = vshrl.u32 %v4634, 7
    %v4636 = vsub.s32 %v4525, %v4635
    %v4637 = vrot.slane %v4476, %v4636
    %v4638 = vsel %vm4530, %v4637, %v4633
    %v4639 = vlaneseq
    %v4640 = vshrl.u32 %v4639, 7
    %v4641 = vsub.s32 %v4532, %v4640
    %v4642 = vrot.slane %v4479, %v4641
    %v4643 = vsel %vm4537, %v4642, %v4638
    %v4644 = vlaneseq
    %v4645 = vshrl.u32 %v4644, 7
    %v4646 = vsub.s32 %v4539, %v4645
    %v4647 = vrot.slane %v4482, %v4646
    %v4648 = vsel %vm4544, %v4647, %v4643
    %v4649 = vlaneseq
    %v4650 = vshrl.u32 %v4649, 7
    %v4651 = vsub.s32 %v4546, %v4650
    %v4652 = vrot.slane %v4485, %v4651
    %v4653 = vsel %vm4551, %v4652, %v4648
    %v4654 = vlaneseq
    %v4655 = vshrl.u32 %v4654, 7
    %v4656 = vsub.s32 %v4553, %v4655
    %v4657 = vrot.slane %v4488, %v4656
    %v4658 = vsel %vm4558, %v4657, %v4653
    %v4659 = vlaneseq
    %v4660 = vshrl.u32 %v4659, 7
    %v4661 = vsub.s32 %v4560, %v4660
    %v4662 = vrot.slane %v4491, %v4661
    %v4663 = vsel %vm4565, %v4662, %v4658
    %v4664 = vlaneseq
    %v4665 = vshrl.u32 %v4664, 7
    %v4666 = vsub.s32 %v4567, %v4665
    %v4667 = vrot.slane %v4494, %v4666
    %v4668 = vsel %vm4572, %v4667, %v4663
    %v4669 = vlaneseq
    %v4670 = vshrl.u32 %v4669, 7
    %v4671 = vsub.s32 %v4574, %v4670
    %v4672 = vrot.slane %v4497, %v4671
    %v4673 = vsel %vm4579, %v4672, %v4668
    %v4674 = vlaneseq
    %v4675 = vshrl.u32 %v4674, 7
    %v4676 = vsub.s32 %v4581, %v4675
    %v4677 = vrot.slane %v4500, %v4676
    %v4678 = vsel %vm4586, %v4677, %v4673
    %v4679 = vlaneseq
    %v4680 = vshrl.u32 %v4679, 7
    %v4681 = vsub.s32 %v4588, %v4680
    %v4682 = vrot.slane %v4503, %v4681
    %v4683 = vsel %vm4593, %v4682, %v4678
    %v4684 = vlaneseq
    %v4685 = vshrl.u32 %v4684, 7
    %v4686 = vsub.s32 %v4595, %v4685
    %v4687 = vrot.slane %v4506, %v4686
    %v4688 = vsel %vm4600, %v4687, %v4683
    %v4689 = vlaneseq
    %v4690 = vshrl.u32 %v4689, 7
    %v4691 = vsub.s32 %v4602, %v4690
    %v4692 = vrot.slane %v4509, %v4691
    %v4693 = vsel %vm4607, %v4692, %v4688
    %v4694 = vlaneseq
    %v4695 = vshrl.u32 %v4694, 7
    %v4696 = vsub.s32 %v4609, %v4695
    %v4697 = vrot.slane %v4512, %v4696
    %v4698 = vsel %vm4614, %v4697, %v4693
    %v4699 = vlaneseq
    %v4700 = vshrl.u32 %v4699, 7
    %v4701 = vsub.s32 %v4616, %v4700
    %v4702 = vrot.slane %v4515, %v4701
    %v4703 = vsel %vm4621, %v4702, %v4698
    %v4704 = vlaneseq
    %v4705 = vshrl.u32 %v4704, 7
    %v4706 = vsub.s32 %v4623, %v4705
    %v4707 = vrot.slane %v4518, %v4706
    %v4708 = vsel %vm4628, %v4707, %v4703
    %v4709 = vcombine.low %v4629, %v4708
    %v4711 = vunpack.c.l.s4 1966171168
    %v4712 = vunpack.c.0.s8 %v4711
    %v4713 = vlaneseq
    %v4714 = vshrl.u32 %v4713, 7
    %v4715 = vsub.s32 %v4712, %v4714
    %v4716 = vrot.slane %v4709, %v4715
    %v4718 = vunpack.c.l.s4 1966171168
    %v4719 = vunpack.c.0.s8 %v4718
    %v4720 = vlaneseq
    %v4721 = vshrl.u32 %v4720, 7
    %v4722 = vsub.s32 %v4719, %v4721
    %v4723 = vrot.slane %v4716, %v4722
    %v4725 = vlaneseq
    %vm4726 = vcmp.ge.s32.totalorder %v4725, 0
    %vm4727 = vcmp.lt.s32.totalorder %v4725, 256
    %vm4728 = vmand %vm4726, %vm4727
    %4729 = vst.msk [vmem:[#allocation5] sm:$0x3] %vm4728, %v4723
    // Predicated region
    $region18: #{tpu_custom_call.1} parent=1 // pred_check
      _
    $region19: #{tpu_custom_call.1} parent=1 // pred_check_branch
      %4731 = sbr.rel (0) target = $region21
    $region20: #{tpu_custom_call.1} parent=1 // pred_region
      %s4733 = ssub.s32 32, 32
      %4734 = vsyncadd [#allocation4], %s4733
      %s4736 = sshll.u32 [#allocation5], 4
      %s4737 = int_to_ptr.vmem [resolvable:$true] %s4736
      %4739 = dma.vmem_to_hbm [thread:$0]  %s4737, 32, %s3, [#allocation4]
    $region21: #{tpu_custom_call.1} parent=1 // pred_fallthru
      _
    // Predicated region
    $region22: #{tpu_custom_call.1} parent=1 // pred_check
      _
    $region23: #{tpu_custom_call.1} parent=1 // pred_check_branch
      %4741 = sbr.rel (0) target = $region25
    $region24: #{tpu_custom_call.1} parent=1 // pred_region
      %4742 = dma.done [#allocation4], 32
    $region25: #{tpu_custom_call.1} parent=1 // pred_fallthru
      _
    %4743 = vsyncpa [#allocation3], 1
    %4744 = vsyncpa [#allocation4], 1

</llo_original>
